<compile_context>
chip_gen: v6e
topology: v6e:2x2x1
jax: 0.10.0
libtpu: 0.0.40
codegen_flags: <defaults>
</compile_context>

<pallas_src>
import math

import jax
import jax.numpy as jnp
from jax import lax
from jax.experimental import pallas as pl
from jax.experimental.pallas import tpu as pltpu

# ---- small, deterministic model config (consistent with args.d / args.l / args.num_heads) ----
B, T, D = 2, 8, 128          # batch, seq len, hidden size (args.d)
H = 2                        # num heads (args.num_heads)
HD = D // H                  # head dim
FF = 4 * D                   # MLP inner dim
L = 2                        # num layers (args.l)
V = 256                      # vocab size
P = 32                       # max positions
BT = B * T                   # merged batch*seq rows fed to every matmul
EPS = 1e-5
NEG = -1e9
HEAD_PAD = 128               # lane-dense padded width for the 2-class head output


def _gelu(x):
    # GPT-2 tanh-approx GELU (f32, VPU/EUP)
    return 0.5 * x * (1.0 + jnp.tanh(
        jnp.sqrt(2.0 / jnp.pi) * (x + 0.044715 * x * x * x)))


def _layernorm(x, g, b):
    mu = jnp.mean(x, axis=-1, keepdims=True)
    var = jnp.mean((x - mu) ** 2, axis=-1, keepdims=True)
    return (x - mu) * lax.rsqrt(var + EPS) * g + b


# ----------------------------- fused whole-model kernel -----------------------------
def model_kernel(x_ref, mask_ref,
                 ln1g_ref, ln1b_ref, wqkv_ref, bqkv_ref, wo_ref, bo_ref,
                 ln2g_ref, ln2b_ref, wfc_ref, bfc_ref, wpr_ref, bpr_ref,
                 lnfg_ref, lnfb_ref, headw_ref, headb_ref,
                 out_ref):
    x = x_ref[...]                       # [BT, D]  f32 merged-batch activations
    mask3 = mask_ref[...][None, :, :]    # [1, BT, BT] additive mask (hoisted: broadcast once)
    scale = 1.0 / math.sqrt(HD)

    for l in range(L):      # static unroll; all layer weights VMEM-resident for the whole call
        # ---- multi-head causal self-attention ----
        h = _layernorm(x, ln1g_ref[l], ln1b_ref[l])
        qkv = jnp.dot(h.astype(jnp.bfloat16), wqkv_ref[l],
                      preferred_element_type=jnp.float32) + bqkv_ref[l]      # [BT, 3D]
        q = qkv[:, 0:D].reshape(BT, H, HD).transpose(1, 0, 2)                # [H, BT, HD]
        k = qkv[:, D:2 * D].reshape(BT, H, HD).transpose(1, 0, 2)
        v = qkv[:, 2 * D:3 * D].reshape(BT, H, HD).transpose(1, 0, 2)

        s = jnp.einsum('hqd,hkd->hqk',
                       q.astype(jnp.bfloat16), k.astype(jnp.bfloat16),
                       preferred_element_type=jnp.float32)                   # [H, BT, BT]
        s = s * scale + mask3
        s = s - jnp.max(s, axis=-1, keepdims=True)
        p = jnp.exp(s)
        p = p * pl.reciprocal(jnp.sum(p, axis=-1, keepdims=True), approx=True)

        ah = jnp.einsum('hqk,hkd->hqd',
                        p.astype(jnp.bfloat16), v.astype(jnp.bfloat16),
                        preferred_element_type=jnp.float32)                  # [H, BT, HD]
        attn = ah.transpose(1, 0, 2).reshape(BT, D)                          # [BT, D]
        attn = jnp.dot(attn.astype(jnp.bfloat16), wo_ref[l],
                       preferred_element_type=jnp.float32) + bo_ref[l]
        x = x + attn

        # ---- GELU MLP ----
        h2 = _layernorm(x, ln2g_ref[l], ln2b_ref[l])
        f = jnp.dot(h2.astype(jnp.bfloat16), wfc_ref[l],
                    preferred_element_type=jnp.float32) + bfc_ref[l]
        f = _gelu(f)
        f = jnp.dot(f.astype(jnp.bfloat16), wpr_ref[l],
                    preferred_element_type=jnp.float32) + bpr_ref[l]
        x = x + f

    # ---- final ln_f + paraphrase head on the literal last token of each sequence ----
    x_last = jnp.concatenate(
        [x[b * T + T - 1: b * T + T, :] for b in range(B)], axis=0)          # [B, D]
    hfin = _layernorm(x_last, lnfg_ref[...], lnfb_ref[...])
    out_ref[...] = jnp.dot(hfin.astype(jnp.bfloat16), headw_ref[...],
                           preferred_element_type=jnp.float32) + headb_ref[...]


def paraphrase_gpt_forward(params, input_ids, attention_mask):
    """ParaphraseGPT.forward: gpt(...) -> last_hidden_state[:, -1, :] -> Linear(d, 2)."""
    # embedding lookup (glue, gather stays in JAX)
    pos = jnp.arange(T)
    x = params["wte"][input_ids] + params["wpe"][pos][None, :, :]            # [B, T, D]
    x = x.reshape(BT, D).astype(jnp.float32)

    # combined additive mask, built once: same-batch & causal & key-not-pad
    bi = jnp.arange(BT) // T
    pi = jnp.arange(BT) % T
    allowed = (bi[:, None] == bi[None, :]) \
        & (pi[None, :] <= pi[:, None]) \
        & (attention_mask.reshape(-1)[None, :] > 0)
    mask = jnp.where(allowed, 0.0, NEG).astype(jnp.float32)                  # [BT, BT]

    args = [x, mask,
            params["ln1_g"], params["ln1_b"], params["wqkv"], params["bqkv"],
            params["wo"], params["bo"],
            params["ln2_g"], params["ln2_b"], params["wfc"], params["bfc"],
            params["wpr"], params["bpr"],
            params["lnf_g"], params["lnf_b"], params["head_w"], params["head_b"]]

    logits_padded = pl.pallas_call(
        model_kernel,
        out_shape=jax.ShapeDtypeStruct((B, HEAD_PAD), jnp.float32),
        in_specs=[pl.BlockSpec(a.shape, lambda nd=a.ndim: (0,) * nd) for a in args],
        out_specs=pl.BlockSpec((B, HEAD_PAD), lambda: (0, 0)),
        compiler_params=pltpu.CompilerParams(vmem_limit_bytes=32 * 1024 * 1024),
    )(*args)
    return logits_padded[:, :2]                                              # [B, 2]
    # TODO(synk): LoRA / ReFT adapter branches only alter parameter init/trainability,
    #             not the forward math, so they are not represented in the kernel.
    # TODO(synk): on v7x a 2-way batch split across TensorCores (core_map) could be added;
    #             at this size a single fused launch is dominated by launch overhead anyway.


# ----------------------------- params -----------------------------
def init_params(key):
    def nrm(k, shape, std=0.02):
        return (std * jax.random.normal(k, shape)).astype(jnp.float32)

    k_wte, k_wpe, k_qkv, k_wo, k_wfc, k_wpr, k_head, _ = jax.random.split(key, 8)
    head_w = jnp.zeros((D, HEAD_PAD), jnp.float32).at[:, :2].set(nrm(k_head, (D, 2)))
    return {
        "wte": nrm(k_wte, (V, D)),
        "wpe": nrm(k_wpe, (P, D)),
        # stacked per-layer weights, [L, ...]; matmul weights stored bf16 (MXU operands)
        "ln1_g": jnp.ones((L, 1, D), jnp.float32),
        "ln1_b": jnp.zeros((L, 1, D), jnp.float32),
        "wqkv": nrm(k_qkv, (L, D, 3 * D)).astype(jnp.bfloat16),
        "bqkv": jnp.zeros((L, 1, 3 * D), jnp.float32),
        "wo":   nrm(k_wo, (L, D, D)).astype(jnp.bfloat16),
        "bo":   jnp.zeros((L, 1, D), jnp.float32),
        "ln2_g": jnp.ones((L, 1, D), jnp.float32),
        "ln2_b": jnp.zeros((L, 1, D), jnp.float32),
        "wfc":  nrm(k_wfc, (L, D, FF)).astype(jnp.bfloat16),
        "bfc":  jnp.zeros((L, 1, FF), jnp.float32),
        "wpr":  nrm(k_wpr, (L, FF, D)).astype(jnp.bfloat16),
        "bpr":  jnp.zeros((L, 1, D), jnp.float32),
        # final LayerNorm + paraphrase_detection_head (Linear(d, 2), zero-padded to 128 lanes)
        "lnf_g": jnp.ones((1, D), jnp.float32),
        "lnf_b": jnp.zeros((1, D), jnp.float32),
        "head_w": head_w.astype(jnp.bfloat16),
        "head_b": jnp.zeros((1, HEAD_PAD), jnp.float32),
    }


if __name__ == "__main__":
    key = jax.random.PRNGKey(0)
    k_param, k_ids = jax.random.split(key)
    params = init_params(k_param)

    input_ids = jax.random.randint(k_ids, (B, T), 0, V, dtype=jnp.int32)
    attention_mask = jnp.array([[1, 1, 1, 1, 1, 1, 1, 1],
                                [1, 1, 1, 1, 1, 1, 0, 0]], dtype=jnp.int32)

    logits = paraphrase_gpt_forward(params, input_ids, attention_mask)
    logits = jax.block_until_ready(logits)
    assert logits.shape == (B, 2) and logits.dtype == jnp.float32
    assert bool(jnp.all(jnp.isfinite(logits)))
    print("KERNEL_OK")
</pallas_src>

<mosaic_0001>
module attributes {stable_mosaic.version = 11 : i64} {
  func.func @model_kernel(%arg0: memref<16x128xf32, #tpu.memory_space<vmem>>, %arg1: memref<16x16xf32, #tpu.memory_space<vmem>>, %arg2: memref<2x1x128xf32, #tpu.memory_space<vmem>>, %arg3: memref<2x1x128xf32, #tpu.memory_space<vmem>>, %arg4: memref<2x128x384xbf16, #tpu.memory_space<vmem>>, %arg5: memref<2x1x384xf32, #tpu.memory_space<vmem>>, %arg6: memref<2x128x128xbf16, #tpu.memory_space<vmem>>, %arg7: memref<2x1x128xf32, #tpu.memory_space<vmem>>, %arg8: memref<2x1x128xf32, #tpu.memory_space<vmem>>, %arg9: memref<2x1x128xf32, #tpu.memory_space<vmem>>, %arg10: memref<2x128x512xbf16, #tpu.memory_space<vmem>>, %arg11: memref<2x1x512xf32, #tpu.memory_space<vmem>>, %arg12: memref<2x512x128xbf16, #tpu.memory_space<vmem>>, %arg13: memref<2x1x128xf32, #tpu.memory_space<vmem>>, %arg14: memref<1x128xf32, #tpu.memory_space<vmem>>, %arg15: memref<1x128xf32, #tpu.memory_space<vmem>>, %arg16: memref<128x128xbf16, #tpu.memory_space<vmem>>, %arg17: memref<1x128xf32, #tpu.memory_space<vmem>>, %arg18: memref<2x128xf32, #tpu.memory_space<vmem>>) attributes {dimension_semantics = [], scalar_prefetch = 0 : i64, scratch_operands = 0 : i64, tpu.core_type = #tpu.core_type<tc>} {
    %c0 = arith.constant 0 : index
    %c0_0 = arith.constant 0 : index
    %0 = vector.load %arg0[%c0, %c0_0] : memref<16x128xf32, #tpu.memory_space<vmem>>, vector<16x128xf32>
    %c0_1 = arith.constant 0 : index
    %c0_2 = arith.constant 0 : index
    %1 = vector.load %arg1[%c0_1, %c0_2] : memref<16x16xf32, #tpu.memory_space<vmem>>, vector<16x16xf32>
    %2 = vector.shape_cast %1 : vector<16x16xf32> to vector<1x16x16xf32>
    %c0_3 = arith.constant 0 : index
    %c0_4 = arith.constant 0 : index
    %c0_5 = arith.constant 0 : index
    %3 = vector.load %arg2[%c0_3, %c0_4, %c0_5] : memref<2x1x128xf32, #tpu.memory_space<vmem>>, vector<1x1x128xf32>
    %4 = vector.shape_cast %3 : vector<1x1x128xf32> to vector<1x128xf32>
    %c0_6 = arith.constant 0 : index
    %c0_7 = arith.constant 0 : index
    %c0_8 = arith.constant 0 : index
    %5 = vector.load %arg3[%c0_6, %c0_7, %c0_8] : memref<2x1x128xf32, #tpu.memory_space<vmem>>, vector<1x1x128xf32>
    %6 = vector.shape_cast %5 : vector<1x1x128xf32> to vector<1x128xf32>
    %cst = arith.constant dense<0.000000e+00> : vector<16xf32>
    %7 = vector.multi_reduction <add>, %0, %cst [1] : vector<16x128xf32> to vector<16xf32>
    %8 = vector.shape_cast %7 : vector<16xf32> to vector<16x1xf32>
    %cst_9 = arith.constant 1.280000e+02 : f32
    %9 = vector.broadcast %cst_9 : f32 to vector<16x1xf32>
    %10 = arith.divf %8, %9 : vector<16x1xf32>
    %11 = vector.broadcast %10 : vector<16x1xf32> to vector<16x128xf32>
    %12 = arith.subf %0, %11 : vector<16x128xf32>
    %13 = arith.mulf %12, %12 : vector<16x128xf32>
    %cst_10 = arith.constant dense<0.000000e+00> : vector<16xf32>
    %14 = vector.multi_reduction <add>, %13, %cst_10 [1] : vector<16x128xf32> to vector<16xf32>
    %15 = vector.shape_cast %14 : vector<16xf32> to vector<16x1xf32>
    %cst_11 = arith.constant 1.280000e+02 : f32
    %16 = vector.broadcast %cst_11 : f32 to vector<16x1xf32>
    %17 = arith.divf %15, %16 : vector<16x1xf32>
    %18 = vector.broadcast %10 : vector<16x1xf32> to vector<16x128xf32>
    %19 = arith.subf %0, %18 : vector<16x128xf32>
    %cst_12 = arith.constant 9.99999974E-6 : f32
    %20 = vector.broadcast %cst_12 : f32 to vector<16x1xf32>
    %21 = arith.addf %17, %20 : vector<16x1xf32>
    %22 = math.rsqrt %21 : vector<16x1xf32>
    %23 = vector.broadcast %22 : vector<16x1xf32> to vector<16x128xf32>
    %24 = arith.mulf %19, %23 : vector<16x128xf32>
    %25 = vector.broadcast %4 : vector<1x128xf32> to vector<16x128xf32>
    %26 = arith.mulf %24, %25 : vector<16x128xf32>
    %27 = vector.broadcast %6 : vector<1x128xf32> to vector<16x128xf32>
    %28 = arith.addf %26, %27 : vector<16x128xf32>
    %29 = arith.truncf %28 : vector<16x128xf32> to vector<16x128xbf16>
    %c0_13 = arith.constant 0 : index
    %c0_14 = arith.constant 0 : index
    %c0_15 = arith.constant 0 : index
    %30 = vector.load %arg4[%c0_13, %c0_14, %c0_15] : memref<2x128x384xbf16, #tpu.memory_space<vmem>>, vector<1x128x384xbf16>
    %31 = vector.shape_cast %30 : vector<1x128x384xbf16> to vector<128x384xbf16>
    %cst_16 = arith.constant dense<0.000000e+00> : vector<16x384xf32>
    %32 = tpu.matmul %29, %31, %cst_16 {dimension_numbers = #tpu.dot_dimension_numbers<[1], [0], [0], [1], [0, 0, 1, 1], [], []>} : vector<16x128xbf16>, vector<128x384xbf16>, vector<16x384xf32> -> vector<16x384xf32>
    %c0_17 = arith.constant 0 : index
    %c0_18 = arith.constant 0 : index
    %c0_19 = arith.constant 0 : index
    %33 = vector.load %arg5[%c0_17, %c0_18, %c0_19] : memref<2x1x384xf32, #tpu.memory_space<vmem>>, vector<1x1x384xf32>
    %34 = vector.shape_cast %33 : vector<1x1x384xf32> to vector<1x384xf32>
    %35 = vector.broadcast %34 : vector<1x384xf32> to vector<16x384xf32>
    %36 = arith.addf %32, %35 : vector<16x384xf32>
    %37 = vector.extract_strided_slice %36 {offsets = [0, 0], sizes = [16, 128], strides = [1, 1]} : vector<16x384xf32> to vector<16x128xf32>
    %38 = vector.shape_cast %37 : vector<16x128xf32> to vector<16x2x64xf32>
    %39 = tpu.transpose %38, [1, 0, 2] : vector<16x2x64xf32> -> vector<2x16x64xf32>
    %40 = vector.extract_strided_slice %36 {offsets = [0, 128], sizes = [16, 128], strides = [1, 1]} : vector<16x384xf32> to vector<16x128xf32>
    %41 = vector.shape_cast %40 : vector<16x128xf32> to vector<16x2x64xf32>
    %42 = tpu.transpose %41, [1, 0, 2] : vector<16x2x64xf32> -> vector<2x16x64xf32>
    %43 = vector.extract_strided_slice %36 {offsets = [0, 256], sizes = [16, 128], strides = [1, 1]} : vector<16x384xf32> to vector<16x128xf32>
    %44 = vector.shape_cast %43 : vector<16x128xf32> to vector<16x2x64xf32>
    %45 = tpu.transpose %44, [1, 0, 2] : vector<16x2x64xf32> -> vector<2x16x64xf32>
    %46 = arith.truncf %39 : vector<2x16x64xf32> to vector<2x16x64xbf16>
    %47 = arith.truncf %42 : vector<2x16x64xf32> to vector<2x16x64xbf16>
    "tpu.trace_start"() <{level = 10 : i32, message = "hqd,hkd->hqk"}> : () -> ()
    %cst_20 = arith.constant dense<0.000000e+00> : vector<2x16x16xf32>
    %48 = tpu.matmul %46, %47, %cst_20 {dimension_numbers = #tpu.dot_dimension_numbers<[2], [2], [1], [1], [0, 0, 0, 1, 1, 1], [0], [0]>} : vector<2x16x64xbf16>, vector<2x16x64xbf16>, vector<2x16x16xf32> -> vector<2x16x16xf32>
    "tpu.trace_stop"() : () -> ()
    %cst_21 = arith.constant 1.250000e-01 : f32
    %49 = vector.broadcast %cst_21 : f32 to vector<2x16x16xf32>
    %50 = arith.mulf %48, %49 : vector<2x16x16xf32>
    %51 = vector.broadcast %2 : vector<1x16x16xf32> to vector<2x16x16xf32>
    %52 = arith.addf %50, %51 : vector<2x16x16xf32>
    %cst_22 = arith.constant dense<0xFF800000> : vector<2x16xf32>
    %53 = vector.multi_reduction <maximumf>, %52, %cst_22 [2] : vector<2x16x16xf32> to vector<2x16xf32>
    %54 = vector.shape_cast %53 : vector<2x16xf32> to vector<2x16x1xf32>
    %55 = vector.broadcast %54 : vector<2x16x1xf32> to vector<2x16x16xf32>
    %56 = arith.subf %52, %55 : vector<2x16x16xf32>
    %57 = math.exp %56 : vector<2x16x16xf32>
    %cst_23 = arith.constant dense<0.000000e+00> : vector<2x16xf32>
    %58 = vector.multi_reduction <add>, %57, %cst_23 [2] : vector<2x16x16xf32> to vector<2x16xf32>
    %59 = vector.shape_cast %58 : vector<2x16xf32> to vector<2x16x1xf32>
    %60 = tpu.reciprocal %59 {approx = true} : vector<2x16x1xf32> -> vector<2x16x1xf32>
    %61 = vector.broadcast %60 : vector<2x16x1xf32> to vector<2x16x16xf32>
    %62 = arith.mulf %57, %61 : vector<2x16x16xf32>
    %63 = arith.truncf %62 : vector<2x16x16xf32> to vector<2x16x16xbf16>
    %64 = arith.truncf %45 : vector<2x16x64xf32> to vector<2x16x64xbf16>
    "tpu.trace_start"() <{level = 10 : i32, message = "hqk,hkd->hqd"}> : () -> ()
    %cst_24 = arith.constant dense<0.000000e+00> : vector<2x16x64xf32>
    %65 = tpu.matmul %63, %64, %cst_24 {dimension_numbers = #tpu.dot_dimension_numbers<[2], [1], [1], [2], [0, 0, 0, 1, 1, 2], [0], [0]>} : vector<2x16x16xbf16>, vector<2x16x64xbf16>, vector<2x16x64xf32> -> vector<2x16x64xf32>
    "tpu.trace_stop"() : () -> ()
    %66 = tpu.transpose %65, [1, 0, 2] : vector<2x16x64xf32> -> vector<16x2x64xf32>
    %67 = vector.shape_cast %66 : vector<16x2x64xf32> to vector<16x128xf32>
    %68 = arith.truncf %67 : vector<16x128xf32> to vector<16x128xbf16>
    %c0_25 = arith.constant 0 : index
    %c0_26 = arith.constant 0 : index
    %c0_27 = arith.constant 0 : index
    %69 = vector.load %arg6[%c0_25, %c0_26, %c0_27] : memref<2x128x128xbf16, #tpu.memory_space<vmem>>, vector<1x128x128xbf16>
    %70 = vector.shape_cast %69 : vector<1x128x128xbf16> to vector<128x128xbf16>
    %cst_28 = arith.constant dense<0.000000e+00> : vector<16x128xf32>
    %71 = tpu.matmul %68, %70, %cst_28 {dimension_numbers = #tpu.dot_dimension_numbers<[1], [0], [0], [1], [0, 0, 1, 1], [], []>} : vector<16x128xbf16>, vector<128x128xbf16>, vector<16x128xf32> -> vector<16x128xf32>
    %c0_29 = arith.constant 0 : index
    %c0_30 = arith.constant 0 : index
    %c0_31 = arith.constant 0 : index
    %72 = vector.load %arg7[%c0_29, %c0_30, %c0_31] : memref<2x1x128xf32, #tpu.memory_space<vmem>>, vector<1x1x128xf32>
    %73 = vector.shape_cast %72 : vector<1x1x128xf32> to vector<1x128xf32>
    %74 = vector.broadcast %73 : vector<1x128xf32> to vector<16x128xf32>
    %75 = arith.addf %71, %74 : vector<16x128xf32>
    %76 = arith.addf %0, %75 : vector<16x128xf32>
    %c0_32 = arith.constant 0 : index
    %c0_33 = arith.constant 0 : index
    %c0_34 = arith.constant 0 : index
    %77 = vector.load %arg8[%c0_32, %c0_33, %c0_34] : memref<2x1x128xf32, #tpu.memory_space<vmem>>, vector<1x1x128xf32>
    %78 = vector.shape_cast %77 : vector<1x1x128xf32> to vector<1x128xf32>
    %c0_35 = arith.constant 0 : index
    %c0_36 = arith.constant 0 : index
    %c0_37 = arith.constant 0 : index
    %79 = vector.load %arg9[%c0_35, %c0_36, %c0_37] : memref<2x1x128xf32, #tpu.memory_space<vmem>>, vector<1x1x128xf32>
    %80 = vector.shape_cast %79 : vector<1x1x128xf32> to vector<1x128xf32>
    %cst_38 = arith.constant dense<0.000000e+00> : vector<16xf32>
    %81 = vector.multi_reduction <add>, %76, %cst_38 [1] : vector<16x128xf32> to vector<16xf32>
    %82 = vector.shape_cast %81 : vector<16xf32> to vector<16x1xf32>
    %cst_39 = arith.constant 1.280000e+02 : f32
    %83 = vector.broadcast %cst_39 : f32 to vector<16x1xf32>
    %84 = arith.divf %82, %83 : vector<16x1xf32>
    %85 = vector.broadcast %84 : vector<16x1xf32> to vector<16x128xf32>
    %86 = arith.subf %76, %85 : vector<16x128xf32>
    %87 = arith.mulf %86, %86 : vector<16x128xf32>
    %cst_40 = arith.constant dense<0.000000e+00> : vector<16xf32>
    %88 = vector.multi_reduction <add>, %87, %cst_40 [1] : vector<16x128xf32> to vector<16xf32>
    %89 = vector.shape_cast %88 : vector<16xf32> to vector<16x1xf32>
    %cst_41 = arith.constant 1.280000e+02 : f32
    %90 = vector.broadcast %cst_41 : f32 to vector<16x1xf32>
    %91 = arith.divf %89, %90 : vector<16x1xf32>
    %92 = vector.broadcast %84 : vector<16x1xf32> to vector<16x128xf32>
    %93 = arith.subf %76, %92 : vector<16x128xf32>
    %cst_42 = arith.constant 9.99999974E-6 : f32
    %94 = vector.broadcast %cst_42 : f32 to vector<16x1xf32>
    %95 = arith.addf %91, %94 : vector<16x1xf32>
    %96 = math.rsqrt %95 : vector<16x1xf32>
    %97 = vector.broadcast %96 : vector<16x1xf32> to vector<16x128xf32>
    %98 = arith.mulf %93, %97 : vector<16x128xf32>
    %99 = vector.broadcast %78 : vector<1x128xf32> to vector<16x128xf32>
    %100 = arith.mulf %98, %99 : vector<16x128xf32>
    %101 = vector.broadcast %80 : vector<1x128xf32> to vector<16x128xf32>
    %102 = arith.addf %100, %101 : vector<16x128xf32>
    %103 = arith.truncf %102 : vector<16x128xf32> to vector<16x128xbf16>
    %c0_43 = arith.constant 0 : index
    %c0_44 = arith.constant 0 : index
    %c0_45 = arith.constant 0 : index
    %104 = vector.load %arg10[%c0_43, %c0_44, %c0_45] : memref<2x128x512xbf16, #tpu.memory_space<vmem>>, vector<1x128x512xbf16>
    %105 = vector.shape_cast %104 : vector<1x128x512xbf16> to vector<128x512xbf16>
    %cst_46 = arith.constant dense<0.000000e+00> : vector<16x512xf32>
    %106 = tpu.matmul %103, %105, %cst_46 {dimension_numbers = #tpu.dot_dimension_numbers<[1], [0], [0], [1], [0, 0, 1, 1], [], []>} : vector<16x128xbf16>, vector<128x512xbf16>, vector<16x512xf32> -> vector<16x512xf32>
    %c0_47 = arith.constant 0 : index
    %c0_48 = arith.constant 0 : index
    %c0_49 = arith.constant 0 : index
    %107 = vector.load %arg11[%c0_47, %c0_48, %c0_49] : memref<2x1x512xf32, #tpu.memory_space<vmem>>, vector<1x1x512xf32>
    %108 = vector.shape_cast %107 : vector<1x1x512xf32> to vector<1x512xf32>
    %109 = vector.broadcast %108 : vector<1x512xf32> to vector<16x512xf32>
    %110 = arith.addf %106, %109 : vector<16x512xf32>
    %cst_50 = arith.constant 5.000000e-01 : f32
    %111 = vector.broadcast %cst_50 : f32 to vector<16x512xf32>
    %112 = arith.mulf %111, %110 : vector<16x512xf32>
    %cst_51 = arith.constant 0.636619746 : f32
    %113 = math.sqrt %cst_51 : f32
    %cst_52 = arith.constant 4.471500e-02 : f32
    %114 = vector.broadcast %cst_52 : f32 to vector<16x512xf32>
    %115 = arith.mulf %114, %110 : vector<16x512xf32>
    %116 = arith.mulf %115, %110 : vector<16x512xf32>
    %117 = arith.mulf %116, %110 : vector<16x512xf32>
    %118 = arith.addf %110, %117 : vector<16x512xf32>
    %119 = vector.broadcast %113 : f32 to vector<16x512xf32>
    %120 = arith.mulf %119, %118 : vector<16x512xf32>
    %121 = math.tanh %120 : vector<16x512xf32>
    %cst_53 = arith.constant 1.000000e+00 : f32
    %122 = vector.broadcast %cst_53 : f32 to vector<16x512xf32>
    %123 = arith.addf %122, %121 : vector<16x512xf32>
    %124 = arith.mulf %112, %123 : vector<16x512xf32>
    %125 = arith.truncf %124 : vector<16x512xf32> to vector<16x512xbf16>
    %c0_54 = arith.constant 0 : index
    %c0_55 = arith.constant 0 : index
    %c0_56 = arith.constant 0 : index
    %126 = vector.load %arg12[%c0_54, %c0_55, %c0_56] : memref<2x512x128xbf16, #tpu.memory_space<vmem>>, vector<1x512x128xbf16>
    %127 = vector.shape_cast %126 : vector<1x512x128xbf16> to vector<512x128xbf16>
    %cst_57 = arith.constant dense<0.000000e+00> : vector<16x128xf32>
    %128 = tpu.matmul %125, %127, %cst_57 {dimension_numbers = #tpu.dot_dimension_numbers<[1], [0], [0], [1], [0, 0, 1, 1], [], []>} : vector<16x512xbf16>, vector<512x128xbf16>, vector<16x128xf32> -> vector<16x128xf32>
    %c0_58 = arith.constant 0 : index
    %c0_59 = arith.constant 0 : index
    %c0_60 = arith.constant 0 : index
    %129 = vector.load %arg13[%c0_58, %c0_59, %c0_60] : memref<2x1x128xf32, #tpu.memory_space<vmem>>, vector<1x1x128xf32>
    %130 = vector.shape_cast %129 : vector<1x1x128xf32> to vector<1x128xf32>
    %131 = vector.broadcast %130 : vector<1x128xf32> to vector<16x128xf32>
    %132 = arith.addf %128, %131 : vector<16x128xf32>
    %133 = arith.addf %76, %132 : vector<16x128xf32>
    %c1 = arith.constant 1 : index
    %c0_61 = arith.constant 0 : index
    %c0_62 = arith.constant 0 : index
    %134 = vector.load %arg2[%c1, %c0_61, %c0_62] : memref<2x1x128xf32, #tpu.memory_space<vmem>>, vector<1x1x128xf32>
    %135 = vector.shape_cast %134 : vector<1x1x128xf32> to vector<1x128xf32>
    %c1_63 = arith.constant 1 : index
    %c0_64 = arith.constant 0 : index
    %c0_65 = arith.constant 0 : index
    %136 = vector.load %arg3[%c1_63, %c0_64, %c0_65] : memref<2x1x128xf32, #tpu.memory_space<vmem>>, vector<1x1x128xf32>
    %137 = vector.shape_cast %136 : vector<1x1x128xf32> to vector<1x128xf32>
    %cst_66 = arith.constant dense<0.000000e+00> : vector<16xf32>
    %138 = vector.multi_reduction <add>, %133, %cst_66 [1] : vector<16x128xf32> to vector<16xf32>
    %139 = vector.shape_cast %138 : vector<16xf32> to vector<16x1xf32>
    %cst_67 = arith.constant 1.280000e+02 : f32
    %140 = vector.broadcast %cst_67 : f32 to vector<16x1xf32>
    %141 = arith.divf %139, %140 : vector<16x1xf32>
    %142 = vector.broadcast %141 : vector<16x1xf32> to vector<16x128xf32>
    %143 = arith.subf %133, %142 : vector<16x128xf32>
    %144 = arith.mulf %143, %143 : vector<16x128xf32>
    %cst_68 = arith.constant dense<0.000000e+00> : vector<16xf32>
    %145 = vector.multi_reduction <add>, %144, %cst_68 [1] : vector<16x128xf32> to vector<16xf32>
    %146 = vector.shape_cast %145 : vector<16xf32> to vector<16x1xf32>
    %cst_69 = arith.constant 1.280000e+02 : f32
    %147 = vector.broadcast %cst_69 : f32 to vector<16x1xf32>
    %148 = arith.divf %146, %147 : vector<16x1xf32>
    %149 = vector.broadcast %141 : vector<16x1xf32> to vector<16x128xf32>
    %150 = arith.subf %133, %149 : vector<16x128xf32>
    %cst_70 = arith.constant 9.99999974E-6 : f32
    %151 = vector.broadcast %cst_70 : f32 to vector<16x1xf32>
    %152 = arith.addf %148, %151 : vector<16x1xf32>
    %153 = math.rsqrt %152 : vector<16x1xf32>
    %154 = vector.broadcast %153 : vector<16x1xf32> to vector<16x128xf32>
    %155 = arith.mulf %150, %154 : vector<16x128xf32>
    %156 = vector.broadcast %135 : vector<1x128xf32> to vector<16x128xf32>
    %157 = arith.mulf %155, %156 : vector<16x128xf32>
    %158 = vector.broadcast %137 : vector<1x128xf32> to vector<16x128xf32>
    %159 = arith.addf %157, %158 : vector<16x128xf32>
    %160 = arith.truncf %159 : vector<16x128xf32> to vector<16x128xbf16>
    %c1_71 = arith.constant 1 : index
    %c0_72 = arith.constant 0 : index
    %c0_73 = arith.constant 0 : index
    %161 = vector.load %arg4[%c1_71, %c0_72, %c0_73] : memref<2x128x384xbf16, #tpu.memory_space<vmem>>, vector<1x128x384xbf16>
    %162 = vector.shape_cast %161 : vector<1x128x384xbf16> to vector<128x384xbf16>
    %cst_74 = arith.constant dense<0.000000e+00> : vector<16x384xf32>
    %163 = tpu.matmul %160, %162, %cst_74 {dimension_numbers = #tpu.dot_dimension_numbers<[1], [0], [0], [1], [0, 0, 1, 1], [], []>} : vector<16x128xbf16>, vector<128x384xbf16>, vector<16x384xf32> -> vector<16x384xf32>
    %c1_75 = arith.constant 1 : index
    %c0_76 = arith.constant 0 : index
    %c0_77 = arith.constant 0 : index
    %164 = vector.load %arg5[%c1_75, %c0_76, %c0_77] : memref<2x1x384xf32, #tpu.memory_space<vmem>>, vector<1x1x384xf32>
    %165 = vector.shape_cast %164 : vector<1x1x384xf32> to vector<1x384xf32>
    %166 = vector.broadcast %165 : vector<1x384xf32> to vector<16x384xf32>
    %167 = arith.addf %163, %166 : vector<16x384xf32>
    %168 = vector.extract_strided_slice %167 {offsets = [0, 0], sizes = [16, 128], strides = [1, 1]} : vector<16x384xf32> to vector<16x128xf32>
    %169 = vector.shape_cast %168 : vector<16x128xf32> to vector<16x2x64xf32>
    %170 = tpu.transpose %169, [1, 0, 2] : vector<16x2x64xf32> -> vector<2x16x64xf32>
    %171 = vector.extract_strided_slice %167 {offsets = [0, 128], sizes = [16, 128], strides = [1, 1]} : vector<16x384xf32> to vector<16x128xf32>
    %172 = vector.shape_cast %171 : vector<16x128xf32> to vector<16x2x64xf32>
    %173 = tpu.transpose %172, [1, 0, 2] : vector<16x2x64xf32> -> vector<2x16x64xf32>
    %174 = vector.extract_strided_slice %167 {offsets = [0, 256], sizes = [16, 128], strides = [1, 1]} : vector<16x384xf32> to vector<16x128xf32>
    %175 = vector.shape_cast %174 : vector<16x128xf32> to vector<16x2x64xf32>
    %176 = tpu.transpose %175, [1, 0, 2] : vector<16x2x64xf32> -> vector<2x16x64xf32>
    %177 = arith.truncf %170 : vector<2x16x64xf32> to vector<2x16x64xbf16>
    %178 = arith.truncf %173 : vector<2x16x64xf32> to vector<2x16x64xbf16>
    "tpu.trace_start"() <{level = 10 : i32, message = "hqd,hkd->hqk"}> : () -> ()
    %cst_78 = arith.constant dense<0.000000e+00> : vector<2x16x16xf32>
    %179 = tpu.matmul %177, %178, %cst_78 {dimension_numbers = #tpu.dot_dimension_numbers<[2], [2], [1], [1], [0, 0, 0, 1, 1, 1], [0], [0]>} : vector<2x16x64xbf16>, vector<2x16x64xbf16>, vector<2x16x16xf32> -> vector<2x16x16xf32>
    "tpu.trace_stop"() : () -> ()
    %cst_79 = arith.constant 1.250000e-01 : f32
    %180 = vector.broadcast %cst_79 : f32 to vector<2x16x16xf32>
    %181 = arith.mulf %179, %180 : vector<2x16x16xf32>
    %182 = vector.broadcast %2 : vector<1x16x16xf32> to vector<2x16x16xf32>
    %183 = arith.addf %181, %182 : vector<2x16x16xf32>
    %cst_80 = arith.constant dense<0xFF800000> : vector<2x16xf32>
    %184 = vector.multi_reduction <maximumf>, %183, %cst_80 [2] : vector<2x16x16xf32> to vector<2x16xf32>
    %185 = vector.shape_cast %184 : vector<2x16xf32> to vector<2x16x1xf32>
    %186 = vector.broadcast %185 : vector<2x16x1xf32> to vector<2x16x16xf32>
    %187 = arith.subf %183, %186 : vector<2x16x16xf32>
    %188 = math.exp %187 : vector<2x16x16xf32>
    %cst_81 = arith.constant dense<0.000000e+00> : vector<2x16xf32>
    %189 = vector.multi_reduction <add>, %188, %cst_81 [2] : vector<2x16x16xf32> to vector<2x16xf32>
    %190 = vector.shape_cast %189 : vector<2x16xf32> to vector<2x16x1xf32>
    %191 = tpu.reciprocal %190 {approx = true} : vector<2x16x1xf32> -> vector<2x16x1xf32>
    %192 = vector.broadcast %191 : vector<2x16x1xf32> to vector<2x16x16xf32>
    %193 = arith.mulf %188, %192 : vector<2x16x16xf32>
    %194 = arith.truncf %193 : vector<2x16x16xf32> to vector<2x16x16xbf16>
    %195 = arith.truncf %176 : vector<2x16x64xf32> to vector<2x16x64xbf16>
    "tpu.trace_start"() <{level = 10 : i32, message = "hqk,hkd->hqd"}> : () -> ()
    %cst_82 = arith.constant dense<0.000000e+00> : vector<2x16x64xf32>
    %196 = tpu.matmul %194, %195, %cst_82 {dimension_numbers = #tpu.dot_dimension_numbers<[2], [1], [1], [2], [0, 0, 0, 1, 1, 2], [0], [0]>} : vector<2x16x16xbf16>, vector<2x16x64xbf16>, vector<2x16x64xf32> -> vector<2x16x64xf32>
    "tpu.trace_stop"() : () -> ()
    %197 = tpu.transpose %196, [1, 0, 2] : vector<2x16x64xf32> -> vector<16x2x64xf32>
    %198 = vector.shape_cast %197 : vector<16x2x64xf32> to vector<16x128xf32>
    %199 = arith.truncf %198 : vector<16x128xf32> to vector<16x128xbf16>
    %c1_83 = arith.constant 1 : index
    %c0_84 = arith.constant 0 : index
    %c0_85 = arith.constant 0 : index
    %200 = vector.load %arg6[%c1_83, %c0_84, %c0_85] : memref<2x128x128xbf16, #tpu.memory_space<vmem>>, vector<1x128x128xbf16>
    %201 = vector.shape_cast %200 : vector<1x128x128xbf16> to vector<128x128xbf16>
    %cst_86 = arith.constant dense<0.000000e+00> : vector<16x128xf32>
    %202 = tpu.matmul %199, %201, %cst_86 {dimension_numbers = #tpu.dot_dimension_numbers<[1], [0], [0], [1], [0, 0, 1, 1], [], []>} : vector<16x128xbf16>, vector<128x128xbf16>, vector<16x128xf32> -> vector<16x128xf32>
    %c1_87 = arith.constant 1 : index
    %c0_88 = arith.constant 0 : index
    %c0_89 = arith.constant 0 : index
    %203 = vector.load %arg7[%c1_87, %c0_88, %c0_89] : memref<2x1x128xf32, #tpu.memory_space<vmem>>, vector<1x1x128xf32>
    %204 = vector.shape_cast %203 : vector<1x1x128xf32> to vector<1x128xf32>
    %205 = vector.broadcast %204 : vector<1x128xf32> to vector<16x128xf32>
    %206 = arith.addf %202, %205 : vector<16x128xf32>
    %207 = arith.addf %133, %206 : vector<16x128xf32>
    %c1_90 = arith.constant 1 : index
    %c0_91 = arith.constant 0 : index
    %c0_92 = arith.constant 0 : index
    %208 = vector.load %arg8[%c1_90, %c0_91, %c0_92] : memref<2x1x128xf32, #tpu.memory_space<vmem>>, vector<1x1x128xf32>
    %209 = vector.shape_cast %208 : vector<1x1x128xf32> to vector<1x128xf32>
    %c1_93 = arith.constant 1 : index
    %c0_94 = arith.constant 0 : index
    %c0_95 = arith.constant 0 : index
    %210 = vector.load %arg9[%c1_93, %c0_94, %c0_95] : memref<2x1x128xf32, #tpu.memory_space<vmem>>, vector<1x1x128xf32>
    %211 = vector.shape_cast %210 : vector<1x1x128xf32> to vector<1x128xf32>
    %cst_96 = arith.constant dense<0.000000e+00> : vector<16xf32>
    %212 = vector.multi_reduction <add>, %207, %cst_96 [1] : vector<16x128xf32> to vector<16xf32>
    %213 = vector.shape_cast %212 : vector<16xf32> to vector<16x1xf32>
    %cst_97 = arith.constant 1.280000e+02 : f32
    %214 = vector.broadcast %cst_97 : f32 to vector<16x1xf32>
    %215 = arith.divf %213, %214 : vector<16x1xf32>
    %216 = vector.broadcast %215 : vector<16x1xf32> to vector<16x128xf32>
    %217 = arith.subf %207, %216 : vector<16x128xf32>
    %218 = arith.mulf %217, %217 : vector<16x128xf32>
    %cst_98 = arith.constant dense<0.000000e+00> : vector<16xf32>
    %219 = vector.multi_reduction <add>, %218, %cst_98 [1] : vector<16x128xf32> to vector<16xf32>
    %220 = vector.shape_cast %219 : vector<16xf32> to vector<16x1xf32>
    %cst_99 = arith.constant 1.280000e+02 : f32
    %221 = vector.broadcast %cst_99 : f32 to vector<16x1xf32>
    %222 = arith.divf %220, %221 : vector<16x1xf32>
    %223 = vector.broadcast %215 : vector<16x1xf32> to vector<16x128xf32>
    %224 = arith.subf %207, %223 : vector<16x128xf32>
    %cst_100 = arith.constant 9.99999974E-6 : f32
    %225 = vector.broadcast %cst_100 : f32 to vector<16x1xf32>
    %226 = arith.addf %222, %225 : vector<16x1xf32>
    %227 = math.rsqrt %226 : vector<16x1xf32>
    %228 = vector.broadcast %227 : vector<16x1xf32> to vector<16x128xf32>
    %229 = arith.mulf %224, %228 : vector<16x128xf32>
    %230 = vector.broadcast %209 : vector<1x128xf32> to vector<16x128xf32>
    %231 = arith.mulf %229, %230 : vector<16x128xf32>
    %232 = vector.broadcast %211 : vector<1x128xf32> to vector<16x128xf32>
    %233 = arith.addf %231, %232 : vector<16x128xf32>
    %234 = arith.truncf %233 : vector<16x128xf32> to vector<16x128xbf16>
    %c1_101 = arith.constant 1 : index
    %c0_102 = arith.constant 0 : index
    %c0_103 = arith.constant 0 : index
    %235 = vector.load %arg10[%c1_101, %c0_102, %c0_103] : memref<2x128x512xbf16, #tpu.memory_space<vmem>>, vector<1x128x512xbf16>
    %236 = vector.shape_cast %235 : vector<1x128x512xbf16> to vector<128x512xbf16>
    %cst_104 = arith.constant dense<0.000000e+00> : vector<16x512xf32>
    %237 = tpu.matmul %234, %236, %cst_104 {dimension_numbers = #tpu.dot_dimension_numbers<[1], [0], [0], [1], [0, 0, 1, 1], [], []>} : vector<16x128xbf16>, vector<128x512xbf16>, vector<16x512xf32> -> vector<16x512xf32>
    %c1_105 = arith.constant 1 : index
    %c0_106 = arith.constant 0 : index
    %c0_107 = arith.constant 0 : index
    %238 = vector.load %arg11[%c1_105, %c0_106, %c0_107] : memref<2x1x512xf32, #tpu.memory_space<vmem>>, vector<1x1x512xf32>
    %239 = vector.shape_cast %238 : vector<1x1x512xf32> to vector<1x512xf32>
    %240 = vector.broadcast %239 : vector<1x512xf32> to vector<16x512xf32>
    %241 = arith.addf %237, %240 : vector<16x512xf32>
    %cst_108 = arith.constant 5.000000e-01 : f32
    %242 = vector.broadcast %cst_108 : f32 to vector<16x512xf32>
    %243 = arith.mulf %242, %241 : vector<16x512xf32>
    %cst_109 = arith.constant 0.636619746 : f32
    %244 = math.sqrt %cst_109 : f32
    %cst_110 = arith.constant 4.471500e-02 : f32
    %245 = vector.broadcast %cst_110 : f32 to vector<16x512xf32>
    %246 = arith.mulf %245, %241 : vector<16x512xf32>
    %247 = arith.mulf %246, %241 : vector<16x512xf32>
    %248 = arith.mulf %247, %241 : vector<16x512xf32>
    %249 = arith.addf %241, %248 : vector<16x512xf32>
    %250 = vector.broadcast %244 : f32 to vector<16x512xf32>
    %251 = arith.mulf %250, %249 : vector<16x512xf32>
    %252 = math.tanh %251 : vector<16x512xf32>
    %cst_111 = arith.constant 1.000000e+00 : f32
    %253 = vector.broadcast %cst_111 : f32 to vector<16x512xf32>
    %254 = arith.addf %253, %252 : vector<16x512xf32>
    %255 = arith.mulf %243, %254 : vector<16x512xf32>
    %256 = arith.truncf %255 : vector<16x512xf32> to vector<16x512xbf16>
    %c1_112 = arith.constant 1 : index
    %c0_113 = arith.constant 0 : index
    %c0_114 = arith.constant 0 : index
    %257 = vector.load %arg12[%c1_112, %c0_113, %c0_114] : memref<2x512x128xbf16, #tpu.memory_space<vmem>>, vector<1x512x128xbf16>
    %258 = vector.shape_cast %257 : vector<1x512x128xbf16> to vector<512x128xbf16>
    %cst_115 = arith.constant dense<0.000000e+00> : vector<16x128xf32>
    %259 = tpu.matmul %256, %258, %cst_115 {dimension_numbers = #tpu.dot_dimension_numbers<[1], [0], [0], [1], [0, 0, 1, 1], [], []>} : vector<16x512xbf16>, vector<512x128xbf16>, vector<16x128xf32> -> vector<16x128xf32>
    %c1_116 = arith.constant 1 : index
    %c0_117 = arith.constant 0 : index
    %c0_118 = arith.constant 0 : index
    %260 = vector.load %arg13[%c1_116, %c0_117, %c0_118] : memref<2x1x128xf32, #tpu.memory_space<vmem>>, vector<1x1x128xf32>
    %261 = vector.shape_cast %260 : vector<1x1x128xf32> to vector<1x128xf32>
    %262 = vector.broadcast %261 : vector<1x128xf32> to vector<16x128xf32>
    %263 = arith.addf %259, %262 : vector<16x128xf32>
    %264 = arith.addf %207, %263 : vector<16x128xf32>
    %265 = vector.extract_strided_slice %264 {offsets = [7, 0], sizes = [1, 128], strides = [1, 1]} : vector<16x128xf32> to vector<1x128xf32>
    %266 = vector.extract_strided_slice %264 {offsets = [15, 0], sizes = [1, 128], strides = [1, 1]} : vector<16x128xf32> to vector<1x128xf32>
    %267 = tpu.concatenate %265, %266 in 0 : vector<1x128xf32>, vector<1x128xf32> -> vector<2x128xf32>
    %c0_119 = arith.constant 0 : index
    %c0_120 = arith.constant 0 : index
    %268 = vector.load %arg14[%c0_119, %c0_120] : memref<1x128xf32, #tpu.memory_space<vmem>>, vector<1x128xf32>
    %c0_121 = arith.constant 0 : index
    %c0_122 = arith.constant 0 : index
    %269 = vector.load %arg15[%c0_121, %c0_122] : memref<1x128xf32, #tpu.memory_space<vmem>>, vector<1x128xf32>
    %cst_123 = arith.constant dense<0.000000e+00> : vector<2xf32>
    %270 = vector.multi_reduction <add>, %267, %cst_123 [1] : vector<2x128xf32> to vector<2xf32>
    %271 = vector.shape_cast %270 : vector<2xf32> to vector<2x1xf32>
    %cst_124 = arith.constant 1.280000e+02 : f32
    %272 = vector.broadcast %cst_124 : f32 to vector<2x1xf32>
    %273 = arith.divf %271, %272 : vector<2x1xf32>
    %274 = vector.broadcast %273 : vector<2x1xf32> to vector<2x128xf32>
    %275 = arith.subf %267, %274 : vector<2x128xf32>
    %276 = arith.mulf %275, %275 : vector<2x128xf32>
    %cst_125 = arith.constant dense<0.000000e+00> : vector<2xf32>
    %277 = vector.multi_reduction <add>, %276, %cst_125 [1] : vector<2x128xf32> to vector<2xf32>
    %278 = vector.shape_cast %277 : vector<2xf32> to vector<2x1xf32>
    %cst_126 = arith.constant 1.280000e+02 : f32
    %279 = vector.broadcast %cst_126 : f32 to vector<2x1xf32>
    %280 = arith.divf %278, %279 : vector<2x1xf32>
    %281 = vector.broadcast %273 : vector<2x1xf32> to vector<2x128xf32>
    %282 = arith.subf %267, %281 : vector<2x128xf32>
    %cst_127 = arith.constant 9.99999974E-6 : f32
    %283 = vector.broadcast %cst_127 : f32 to vector<2x1xf32>
    %284 = arith.addf %280, %283 : vector<2x1xf32>
    %285 = math.rsqrt %284 : vector<2x1xf32>
    %286 = vector.broadcast %285 : vector<2x1xf32> to vector<2x128xf32>
    %287 = arith.mulf %282, %286 : vector<2x128xf32>
    %288 = vector.broadcast %268 : vector<1x128xf32> to vector<2x128xf32>
    %289 = arith.mulf %287, %288 : vector<2x128xf32>
    %290 = vector.broadcast %269 : vector<1x128xf32> to vector<2x128xf32>
    %291 = arith.addf %289, %290 : vector<2x128xf32>
    %292 = arith.truncf %291 : vector<2x128xf32> to vector<2x128xbf16>
    %c0_128 = arith.constant 0 : index
    %c0_129 = arith.constant 0 : index
    %293 = vector.load %arg16[%c0_128, %c0_129] : memref<128x128xbf16, #tpu.memory_space<vmem>>, vector<128x128xbf16>
    %cst_130 = arith.constant dense<0.000000e+00> : vector<2x128xf32>
    %294 = tpu.matmul %292, %293, %cst_130 {dimension_numbers = #tpu.dot_dimension_numbers<[1], [0], [0], [1], [0, 0, 1, 1], [], []>} : vector<2x128xbf16>, vector<128x128xbf16>, vector<2x128xf32> -> vector<2x128xf32>
    %c0_131 = arith.constant 0 : index
    %c0_132 = arith.constant 0 : index
    %295 = vector.load %arg17[%c0_131, %c0_132] : memref<1x128xf32, #tpu.memory_space<vmem>>, vector<1x128xf32>
    %296 = vector.broadcast %295 : vector<1x128xf32> to vector<2x128xf32>
    %297 = arith.addf %294, %296 : vector<2x128xf32>
    %c0_133 = arith.constant 0 : index
    %c0_134 = arith.constant 0 : index
    %298 = vector.load %arg18[%c0_133, %c0_134] : memref<2x128xf32, #tpu.memory_space<vmem>>, vector<2x128xf32>
    tpu.vector_store %arg18[%c0_133, %c0_134], %297 {strides = array<i32>} : memref<2x128xf32, #tpu.memory_space<vmem>>, vector<2x128xf32>,
    return
  }
}

</mosaic_0001>

<llo_original>
// kernel: tpu_custom_call.1
$region0: #{tpu_custom_call.1}
  #allocation0 [shape = 'u32[]', space=smem, size = 0x4, offset = 0x4, fixed_abs, tag = 'smem constant byte address 0x4 - core index']
  #allocation1 [shape = 'u32[144,128]{1,0:T(1,128)}', space=vmem, size = 0x12000, scoped, tag = 'internal scratch']
  %s0 = inlined_call_operand.hbm [shape: f32[16,128], index: 0, kind: input, shape index: {}]
  %s1 = inlined_call_operand.hbm [shape: f32[16,16], index: 1, kind: input, shape index: {}]
  %s2 = inlined_call_operand.vmem [shape: f32[2,1,128], index: 2, kind: input, shape index: {}]
  %s3 = inlined_call_operand.hbm [shape: f32[2,1,128], index: 3, kind: input, shape index: {}]
  %s4 = inlined_call_operand.hbm [shape: bf16[2,128,384], index: 4, kind: input, shape index: {}]
  %s5 = inlined_call_operand.vmem [shape: f32[2,1,384], index: 5, kind: input, shape index: {}]
  %s6 = inlined_call_operand.hbm [shape: bf16[2,128,128], index: 6, kind: input, shape index: {}]
  %s7 = inlined_call_operand.hbm [shape: f32[2,1,128], index: 7, kind: input, shape index: {}]
  %s8 = inlined_call_operand.hbm [shape: f32[2,1,128], index: 8, kind: input, shape index: {}]
  %s9 = inlined_call_operand.hbm [shape: f32[2,1,128], index: 9, kind: input, shape index: {}]
  %s10 = inlined_call_operand.hbm [shape: bf16[2,128,512], index: 10, kind: input, shape index: {}]
  %s11 = inlined_call_operand.vmem [shape: f32[2,1,512], index: 11, kind: input, shape index: {}]
  %s12 = inlined_call_operand.hbm [shape: bf16[2,512,128], index: 12, kind: input, shape index: {}]
  %s13 = inlined_call_operand.vmem [shape: f32[2,1,128], index: 13, kind: input, shape index: {}]
  %s14 = inlined_call_operand.vmem [shape: f32[1,128], index: 14, kind: input, shape index: {}]
  %s15 = inlined_call_operand.vmem [shape: f32[1,128], index: 15, kind: input, shape index: {}]
  %s16 = inlined_call_operand.hbm [shape: bf16[128,128], index: 16, kind: input, shape index: {}]
  %s17 = inlined_call_operand.vmem [shape: f32[1,128], index: 17, kind: input, shape index: {}]
  %s18 = inlined_call_operand.hbm [shape: f32[2,128], index: 18, kind: output, shape index: {}]
  %s19 = sld [smem:[#allocation0]]
  $region126: #{tpu_custom_call.1} parent=0
    _
  %s21 = ssub.s32 1, %s19
  %s22 = scalar_select 0, %s21, %s19
  $region1: #{tpu_custom_call.1} parent=0
    #allocation2 [shape = 'u8[8192]{0}', space=vmem, size = 0x2000, scoped, tag = 'input window, operand 0, single buffered']
    #allocation3 [shape = 's32[1]{0}', space=sflag, size = 0x4, scoped, tag = 'scoped memory for tpu_custom_call.1']
    #allocation4 [shape = 's32[1]{0}', space=sflag, size = 0x4, scoped, tag = 'scoped memory for tpu_custom_call.1']
    #allocation5 [shape = 'u8[8192]{0}', space=vmem, size = 0x2000, scoped, tag = 'input window, operand 1, single buffered']
    #allocation6 [shape = 's32[1]{0}', space=sflag, size = 0x4, scoped, tag = 'scoped memory for tpu_custom_call.1']
    #allocation7 [shape = 'u8[1024]{0}', space=vmem, size = 0x400, scoped, tag = 'input window, operand 3, single buffered']
    #allocation8 [shape = 'u8[196608]{0}', space=vmem, size = 0x30000, scoped, tag = 'input window, operand 4, single buffered']
    #allocation9 [shape = 's32[1]{0}', space=sflag, size = 0x4, scoped, tag = 'scoped memory for tpu_custom_call.1']
    #allocation10 [shape = 'u8[65536]{0}', space=vmem, size = 0x10000, scoped, tag = 'input window, operand 6, single buffered']
    #allocation11 [shape = 'u8[1024]{0}', space=vmem, size = 0x400, scoped, tag = 'input window, operand 7, single buffered']
    #allocation12 [shape = 's32[1]{0}', space=sflag, size = 0x4, scoped, tag = 'scoped memory for tpu_custom_call.1']
    #allocation13 [shape = 'u8[1024]{0}', space=vmem, size = 0x400, scoped, tag = 'input window, operand 8, single buffered']
    #allocation14 [shape = 'u8[1024]{0}', space=vmem, size = 0x400, scoped, tag = 'input window, operand 9, single buffered']
    #allocation15 [shape = 's32[1]{0}', space=sflag, size = 0x4, scoped, tag = 'scoped memory for tpu_custom_call.1']
    #allocation16 [shape = 'u8[262144]{0}', space=vmem, size = 0x40000, scoped, tag = 'input window, operand 10, single buffered']
    #allocation17 [shape = 'u8[262144]{0}', space=vmem, size = 0x40000, scoped, tag = 'input window, operand 12, single buffered']
    #allocation18 [shape = 's32[1]{0}', space=sflag, size = 0x4, scoped, tag = 'scoped memory for tpu_custom_call.1']
    #allocation19 [shape = 'u8[32768]{0}', space=vmem, size = 0x8000, scoped, tag = 'input window, operand 16, single buffered']
    #allocation20 [shape = 'u8[1024]{0}', space=vmem, size = 0x400, scoped, tag = 'output window, operand 0, single buffered']
    %23 = vsyncpa [#allocation3], 0
    %24 = vsyncpa [#allocation6], 0
    %25 = vsyncpa [#allocation9], 0
    %26 = vsyncpa [#allocation12], 0
    %27 = vsyncpa [#allocation15], 0
    %28 = vsyncpa [#allocation18], 0
    %29 = vsyncpa [#allocation4], 0
    // Predicated region
    $region2: #{tpu_custom_call.1} parent=1 // pred_check
      _
    $region3: #{tpu_custom_call.1} parent=1 // pred_check_branch
      %31 = sbr.rel (0) target = $region5
    $region4: #{tpu_custom_call.1} parent=1 // pred_region
      %s33 = ssub.s32 256, 256
      %34 = vsyncadd [#allocation3], %s33
      %s35 = sshll.u32 [#allocation2], 4
      %s36 = int_to_ptr.vmem [resolvable:$true] %s35
      %41 = dma.hbm_to_vmem [thread:$0]  %s0, 256, %s36, [#allocation3], 128, 128, 8
    $region5: #{tpu_custom_call.1} parent=1 // pred_fallthru
      _
    // Predicated region
    $region6: #{tpu_custom_call.1} parent=1 // pred_check
      _
    $region7: #{tpu_custom_call.1} parent=1 // pred_check_branch
      %43 = sbr.rel (0) target = $region9
    $region8: #{tpu_custom_call.1} parent=1 // pred_region
      %s45 = ssub.s32 256, 256
      %46 = vsyncadd [#allocation6], %s45
      %s47 = sshll.u32 [#allocation5], 4
      %s48 = int_to_ptr.vmem [resolvable:$true] %s47
      %53 = dma.hbm_to_vmem [thread:$0]  %s1, 256, %s48, [#allocation6], 128, 128, 8
    $region9: #{tpu_custom_call.1} parent=1 // pred_fallthru
      _
    // Predicated region
    $region10: #{tpu_custom_call.1} parent=1 // pred_check
      _
    $region11: #{tpu_custom_call.1} parent=1 // pred_check_branch
      %55 = sbr.rel (0) target = $region13
    $region12: #{tpu_custom_call.1} parent=1 // pred_region
      _
    $region13: #{tpu_custom_call.1} parent=1 // pred_fallthru
      _
    // Predicated region
    $region14: #{tpu_custom_call.1} parent=1 // pred_check
      _
    $region15: #{tpu_custom_call.1} parent=1 // pred_check_branch
      %57 = sbr.rel (0) target = $region17
    $region16: #{tpu_custom_call.1} parent=1 // pred_region
      %s59 = ssub.s32 32, 32
      %60 = vsyncadd [#allocation6], %s59
      %s61 = sshll.u32 [#allocation7], 4
      %s62 = int_to_ptr.vmem [resolvable:$true] %s61
      %67 = dma.hbm_to_vmem [thread:$0]  %s3, 32, %s62, [#allocation6], 16, 16, 1
    $region17: #{tpu_custom_call.1} parent=1 // pred_fallthru
      _
    // Predicated region
    $region18: #{tpu_custom_call.1} parent=1 // pred_check
      _
    $region19: #{tpu_custom_call.1} parent=1 // pred_check_branch
      %69 = sbr.rel (0) target = $region21
    $region20: #{tpu_custom_call.1} parent=1 // pred_region
      %s71 = ssub.s32 6144, 6144
      %72 = vsyncadd [#allocation9], %s71
      %s73 = sshll.u32 [#allocation8], 4
      %s74 = int_to_ptr.vmem [resolvable:$true] %s73
      %79 = dma.hbm_to_vmem [thread:$0]  %s4, 6144, %s74, [#allocation9], 192, 192, 12
    $region21: #{tpu_custom_call.1} parent=1 // pred_fallthru
      _
    // Predicated region
    $region22: #{tpu_custom_call.1} parent=1 // pred_check
      _
    $region23: #{tpu_custom_call.1} parent=1 // pred_check_branch
      %81 = sbr.rel (0) target = $region25
    $region24: #{tpu_custom_call.1} parent=1 // pred_region
      _
    $region25: #{tpu_custom_call.1} parent=1 // pred_fallthru
      _
    // Predicated region
    $region26: #{tpu_custom_call.1} parent=1 // pred_check
      _
    $region27: #{tpu_custom_call.1} parent=1 // pred_check_branch
      %83 = sbr.rel (0) target = $region29
    $region28: #{tpu_custom_call.1} parent=1 // pred_region
      %s85 = ssub.s32 2048, 2048
      %86 = vsyncadd [#allocation9], %s85
      %s87 = sshll.u32 [#allocation10], 4
      %s88 = int_to_ptr.vmem [resolvable:$true] %s87
      %93 = dma.hbm_to_vmem [thread:$0]  %s6, 2048, %s88, [#allocation9], 64, 64, 4
    $region29: #{tpu_custom_call.1} parent=1 // pred_fallthru
      _
    // Predicated region
    $region30: #{tpu_custom_call.1} parent=1 // pred_check
      _
    $region31: #{tpu_custom_call.1} parent=1 // pred_check_branch
      %95 = sbr.rel (0) target = $region33
    $region32: #{tpu_custom_call.1} parent=1 // pred_region
      %s97 = ssub.s32 32, 32
      %98 = vsyncadd [#allocation12], %s97
      %s99 = sshll.u32 [#allocation11], 4
      %s100 = int_to_ptr.vmem [resolvable:$true] %s99
      %105 = dma.hbm_to_vmem [thread:$0]  %s7, 32, %s100, [#allocation12], 16, 16, 1
    $region33: #{tpu_custom_call.1} parent=1 // pred_fallthru
      _
    // Predicated region
    $region34: #{tpu_custom_call.1} parent=1 // pred_check
      _
    $region35: #{tpu_custom_call.1} parent=1 // pred_check_branch
      %107 = sbr.rel (0) target = $region37
    $region36: #{tpu_custom_call.1} parent=1 // pred_region
      %s109 = ssub.s32 32, 32
      %110 = vsyncadd [#allocation12], %s109
      %s111 = sshll.u32 [#allocation13], 4
      %s112 = int_to_ptr.vmem [resolvable:$true] %s111
      %117 = dma.hbm_to_vmem [thread:$0]  %s8, 32, %s112, [#allocation12], 16, 16, 1
    $region37: #{tpu_custom_call.1} parent=1 // pred_fallthru
      _
    // Predicated region
    $region38: #{tpu_custom_call.1} parent=1 // pred_check
      _
    $region39: #{tpu_custom_call.1} parent=1 // pred_check_branch
      %119 = sbr.rel (0) target = $region41
    $region40: #{tpu_custom_call.1} parent=1 // pred_region
      %s121 = ssub.s32 32, 32
      %122 = vsyncadd [#allocation15], %s121
      %s123 = sshll.u32 [#allocation14], 4
      %s124 = int_to_ptr.vmem [resolvable:$true] %s123
      %129 = dma.hbm_to_vmem [thread:$0]  %s9, 32, %s124, [#allocation15], 16, 16, 1
    $region41: #{tpu_custom_call.1} parent=1 // pred_fallthru
      _
    // Predicated region
    $region42: #{tpu_custom_call.1} parent=1 // pred_check
      _
    $region43: #{tpu_custom_call.1} parent=1 // pred_check_branch
      %131 = sbr.rel (0) target = $region45
    $region44: #{tpu_custom_call.1} parent=1 // pred_region
      %s133 = ssub.s32 8192, 8192
      %134 = vsyncadd [#allocation15], %s133
      %s135 = sshll.u32 [#allocation16], 4
      %s136 = int_to_ptr.vmem [resolvable:$true] %s135
      %141 = dma.hbm_to_vmem [thread:$0]  %s10, 8192, %s136, [#allocation15], 256, 256, 16
    $region45: #{tpu_custom_call.1} parent=1 // pred_fallthru
      _
    // Predicated region
    $region46: #{tpu_custom_call.1} parent=1 // pred_check
      _
    $region47: #{tpu_custom_call.1} parent=1 // pred_check_branch
      %143 = sbr.rel (0) target = $region49
    $region48: #{tpu_custom_call.1} parent=1 // pred_region
      _
    $region49: #{tpu_custom_call.1} parent=1 // pred_fallthru
      _
    // Predicated region
    $region50: #{tpu_custom_call.1} parent=1 // pred_check
      _
    $region51: #{tpu_custom_call.1} parent=1 // pred_check_branch
      %145 = sbr.rel (0) target = $region53
    $region52: #{tpu_custom_call.1} parent=1 // pred_region
      %s147 = ssub.s32 8192, 8192
      %148 = vsyncadd [#allocation18], %s147
      %s149 = sshll.u32 [#allocation17], 4
      %s150 = int_to_ptr.vmem [resolvable:$true] %s149
      %155 = dma.hbm_to_vmem [thread:$0]  %s12, 8192, %s150, [#allocation18], 64, 64, 4
    $region53: #{tpu_custom_call.1} parent=1 // pred_fallthru
      _
    // Predicated region
    $region54: #{tpu_custom_call.1} parent=1 // pred_check
      _
    $region55: #{tpu_custom_call.1} parent=1 // pred_check_branch
      %157 = sbr.rel (0) target = $region57
    $region56: #{tpu_custom_call.1} parent=1 // pred_region
      _
    $region57: #{tpu_custom_call.1} parent=1 // pred_fallthru
      _
    // Predicated region
    $region58: #{tpu_custom_call.1} parent=1 // pred_check
      _
    $region59: #{tpu_custom_call.1} parent=1 // pred_check_branch
      %159 = sbr.rel (0) target = $region61
    $region60: #{tpu_custom_call.1} parent=1 // pred_region
      _
    $region61: #{tpu_custom_call.1} parent=1 // pred_fallthru
      _
    // Predicated region
    $region62: #{tpu_custom_call.1} parent=1 // pred_check
      _
    $region63: #{tpu_custom_call.1} parent=1 // pred_check_branch
      %161 = sbr.rel (0) target = $region65
    $region64: #{tpu_custom_call.1} parent=1 // pred_region
      _
    $region65: #{tpu_custom_call.1} parent=1 // pred_fallthru
      _
    // Predicated region
    $region66: #{tpu_custom_call.1} parent=1 // pred_check
      _
    $region67: #{tpu_custom_call.1} parent=1 // pred_check_branch
      %163 = sbr.rel (0) target = $region69
    $region68: #{tpu_custom_call.1} parent=1 // pred_region
      %s165 = ssub.s32 1024, 1024
      %166 = vsyncadd [#allocation18], %s165
      %s167 = sshll.u32 [#allocation19], 4
      %s168 = int_to_ptr.vmem [resolvable:$true] %s167
      %173 = dma.hbm_to_vmem [thread:$0]  %s16, 1024, %s168, [#allocation18], 64, 64, 4
    $region69: #{tpu_custom_call.1} parent=1 // pred_fallthru
      _
    // Predicated region
    $region70: #{tpu_custom_call.1} parent=1 // pred_check
      _
    $region71: #{tpu_custom_call.1} parent=1 // pred_check_branch
      %175 = sbr.rel (0) target = $region73
    $region72: #{tpu_custom_call.1} parent=1 // pred_region
      _
    $region73: #{tpu_custom_call.1} parent=1 // pred_fallthru
      _
    // Predicated region
    $region74: #{tpu_custom_call.1} parent=1 // pred_check
      _
    $region75: #{tpu_custom_call.1} parent=1 // pred_check_branch
      %177 = sbr.rel (0) target = $region77
    $region76: #{tpu_custom_call.1} parent=1 // pred_region
      %178 = dma.done [#allocation3], 256
    $region77: #{tpu_custom_call.1} parent=1 // pred_fallthru
      _
    // Predicated region
    $region78: #{tpu_custom_call.1} parent=1 // pred_check
      _
    $region79: #{tpu_custom_call.1} parent=1 // pred_check_branch
      %180 = sbr.rel (0) target = $region81
    $region80: #{tpu_custom_call.1} parent=1 // pred_region
      %181 = dma.done [#allocation6], 256
    $region81: #{tpu_custom_call.1} parent=1 // pred_fallthru
      _
    // Predicated region
    $region82: #{tpu_custom_call.1} parent=1 // pred_check
      _
    $region83: #{tpu_custom_call.1} parent=1 // pred_check_branch
      %183 = sbr.rel (0) target = $region85
    $region84: #{tpu_custom_call.1} parent=1 // pred_region
      %184 = dma.done [#allocation6], 32
    $region85: #{tpu_custom_call.1} parent=1 // pred_fallthru
      _
    // Predicated region
    $region86: #{tpu_custom_call.1} parent=1 // pred_check
      _
    $region87: #{tpu_custom_call.1} parent=1 // pred_check_branch
      %186 = sbr.rel (0) target = $region89
    $region88: #{tpu_custom_call.1} parent=1 // pred_region
      %187 = dma.done [#allocation9], 6144
    $region89: #{tpu_custom_call.1} parent=1 // pred_fallthru
      _
    // Predicated region
    $region90: #{tpu_custom_call.1} parent=1 // pred_check
      _
    $region91: #{tpu_custom_call.1} parent=1 // pred_check_branch
      %189 = sbr.rel (0) target = $region93
    $region92: #{tpu_custom_call.1} parent=1 // pred_region
      %190 = dma.done [#allocation9], 2048
    $region93: #{tpu_custom_call.1} parent=1 // pred_fallthru
      _
    // Predicated region
    $region94: #{tpu_custom_call.1} parent=1 // pred_check
      _
    $region95: #{tpu_custom_call.1} parent=1 // pred_check_branch
      %192 = sbr.rel (0) target = $region97
    $region96: #{tpu_custom_call.1} parent=1 // pred_region
      %193 = dma.done [#allocation12], 32
    $region97: #{tpu_custom_call.1} parent=1 // pred_fallthru
      _
    // Predicated region
    $region98: #{tpu_custom_call.1} parent=1 // pred_check
      _
    $region99: #{tpu_custom_call.1} parent=1 // pred_check_branch
      %195 = sbr.rel (0) target = $region101
    $region100: #{tpu_custom_call.1} parent=1 // pred_region
      %196 = dma.done [#allocation12], 32
    $region101: #{tpu_custom_call.1} parent=1 // pred_fallthru
      _
    // Predicated region
    $region102: #{tpu_custom_call.1} parent=1 // pred_check
      _
    $region103: #{tpu_custom_call.1} parent=1 // pred_check_branch
      %198 = sbr.rel (0) target = $region105
    $region104: #{tpu_custom_call.1} parent=1 // pred_region
      %199 = dma.done [#allocation15], 32
    $region105: #{tpu_custom_call.1} parent=1 // pred_fallthru
      _
    // Predicated region
    $region106: #{tpu_custom_call.1} parent=1 // pred_check
      _
    $region107: #{tpu_custom_call.1} parent=1 // pred_check_branch
      %201 = sbr.rel (0) target = $region109
    $region108: #{tpu_custom_call.1} parent=1 // pred_region
      %202 = dma.done [#allocation15], 8192
    $region109: #{tpu_custom_call.1} parent=1 // pred_fallthru
      _
    // Predicated region
    $region110: #{tpu_custom_call.1} parent=1 // pred_check
      _
    $region111: #{tpu_custom_call.1} parent=1 // pred_check_branch
      %204 = sbr.rel (0) target = $region113
    $region112: #{tpu_custom_call.1} parent=1 // pred_region
      %205 = dma.done [#allocation18], 8192
    $region113: #{tpu_custom_call.1} parent=1 // pred_fallthru
      _
    // Predicated region
    $region114: #{tpu_custom_call.1} parent=1 // pred_check
      _
    $region115: #{tpu_custom_call.1} parent=1 // pred_check_branch
      %207 = sbr.rel (0) target = $region117
    $region116: #{tpu_custom_call.1} parent=1 // pred_region
      %208 = dma.done [#allocation18], 1024
    $region117: #{tpu_custom_call.1} parent=1 // pred_fallthru
      _
    %v210 = vld [vmem:[#allocation2] sm:$0xff]
    %v211 = vld [vmem:[#allocation2 + $0x8] sm:$0xff]
    %v212 = vld [vmem:[#allocation5] sm:$0xff]
    %v213 = vld [vmem:[#allocation5 + $0x8] sm:$0xff]
    %v214 = vld [vmem:[%s2] sm:$0x1]
    %v215 = vld [vmem:[#allocation7] sm:$0x1]
    %216 = vadd.xlane.f32.xlu0 %v210
    %v217 = vpop.xlane.xlu0 %216
    %218 = vadd.xlane.f32.xlu0 %v211
    %v219 = vpop.xlane.xlu0 %218
    %v220 = vrcp.pop 128.0
    %v221 = vmul.f32 %v217, %v220
    %v222 = vmul.f32 %v219, %v220
    %v223 = vsub.f32 %v210, %v221
    %v224 = vsub.f32 %v211, %v222
    %v225 = vmul.f32 %v223, %v223
    %v226 = vmul.f32 %v224, %v224
    %227 = vadd.xlane.f32.xlu0 %v225
    %v228 = vpop.xlane.xlu0 %227
    %229 = vadd.xlane.f32.xlu0 %v226
    %v230 = vpop.xlane.xlu0 %229
    %v231 = vmul.f32 %v228, %v220
    %v232 = vmul.f32 %v230, %v220
    %v233 = vadd.f32 %v231, 1e-05
    %v234 = vadd.f32 %v232, 1e-05
    %v235 = vrsqrt.pop %v233
    %v236 = vrsqrt.pop %v234
    %v237 = vmul.f32 %v223, %v235
    %v238 = vmul.f32 %v224, %v236
    %v240 = vlaneseq
    %v241 = vshrl.u32 %v240, 7
    %v242 = vsub.s32 0, %v241
    %v243 = vrot.slane %v214, %v242
    %v245 = vmul.f32 %v237, %v243
    %v246 = vmul.f32 %v238, %v243
    %v248 = vlaneseq
    %v249 = vshrl.u32 %v248, 7
    %v250 = vsub.s32 0, %v249
    %v251 = vrot.slane %v215, %v250
    %v253 = vadd.f32 %v245, %v251
    %v254 = vadd.f32 %v246, %v251
    %v255 = vpack.c.bf16 %v254, %v253
    %v256 = vld [vmem:[#allocation8] sm:$0xff]
    %v257 = vld [vmem:[#allocation8 + $0x8] sm:$0xf]
    %v258 = vld [vmem:[#allocation8 + $0xc] sm:$0xff]
    %v259 = vld [vmem:[#allocation8 + $0x14] sm:$0xf]
    %v260 = vld [vmem:[#allocation8 + $0x18] sm:$0xff]
    %v261 = vld [vmem:[#allocation8 + $0x20] sm:$0xf]
    %v262 = vld [vmem:[#allocation8 + $0x24] sm:$0xff]
    %v263 = vld [vmem:[#allocation8 + $0x2c] sm:$0xf]
    %v264 = vld [vmem:[#allocation8 + $0x30] sm:$0xff]
    %v265 = vld [vmem:[#allocation8 + $0x38] sm:$0xf]
    %v266 = vld [vmem:[#allocation8 + $0x3c] sm:$0xff]
    %v267 = vld [vmem:[#allocation8 + $0x44] sm:$0xf]
    %v268 = vld [vmem:[#allocation8 + $0x48] sm:$0xff]
    %v269 = vld [vmem:[#allocation8 + $0x50] sm:$0xf]
    %v270 = vld [vmem:[#allocation8 + $0x54] sm:$0xff]
    %v271 = vld [vmem:[#allocation8 + $0x5c] sm:$0xf]
    %v272 = vld [vmem:[#allocation8 + $0x60] sm:$0xff]
    %v273 = vld [vmem:[#allocation8 + $0x68] sm:$0xf]
    %v274 = vld [vmem:[#allocation8 + $0x6c] sm:$0xff]
    %v275 = vld [vmem:[#allocation8 + $0x74] sm:$0xf]
    %v276 = vld [vmem:[#allocation8 + $0x78] sm:$0xff]
    %v277 = vld [vmem:[#allocation8 + $0x80] sm:$0xf]
    %v278 = vld [vmem:[#allocation8 + $0x84] sm:$0xff]
    %v279 = vld [vmem:[#allocation8 + $0x8c] sm:$0xf]
    %v280 = vld [vmem:[#allocation8 + $0x90] sm:$0xff]
    %v281 = vld [vmem:[#allocation8 + $0x98] sm:$0xf]
    %v282 = vld [vmem:[#allocation8 + $0x9c] sm:$0xff]
    %v283 = vld [vmem:[#allocation8 + $0xa4] sm:$0xf]
    %v284 = vld [vmem:[#allocation8 + $0xa8] sm:$0xff]
    %v285 = vld [vmem:[#allocation8 + $0xb0] sm:$0xf]
    %v286 = vld [vmem:[#allocation8 + $0xb4] sm:$0xff]
    %v287 = vld [vmem:[#allocation8 + $0xbc] sm:$0xf]
    %v288 = vld [vmem:[%s5] sm:$0x7]
    %v290 = vlaneseq
    %v291 = vshrl.u32 %v290, 7
    %v292 = vsub.s32 0, %v291
    %v293 = vrot.slane %v288, %v292
    %v294 = vlaneseq
    %v295 = vshrl.u32 %v294, 7
    %v296 = vsub.s32 1, %v295
    %v297 = vrot.slane %v288, %v296
    %v298 = vlaneseq
    %v299 = vshrl.u32 %v298, 7
    %v300 = vsub.s32 2, %v299
    %v301 = vrot.slane %v288, %v300
    %v337 = vunpack.c.l.b16 %v256
    %v338 = vunpack.c.h.b16 %v256
    %v339 = vunpack.c.l.b16 %v257
    %v340 = vunpack.c.l.b16 %v258
    %v341 = vunpack.c.h.b16 %v258
    %v342 = vunpack.c.l.b16 %v259
    %v343 = vunpack.c.l.b16 %v260
    %v344 = vunpack.c.h.b16 %v260
    %v345 = vunpack.c.l.b16 %v261
    %v346 = vunpack.c.l.b16 %v262
    %v347 = vunpack.c.h.b16 %v262
    %v348 = vunpack.c.l.b16 %v263
    %v349 = vunpack.c.l.b16 %v264
    %v350 = vunpack.c.h.b16 %v264
    %v351 = vunpack.c.l.b16 %v265
    %v352 = vunpack.c.l.b16 %v266
    %v353 = vunpack.c.h.b16 %v266
    %v354 = vunpack.c.l.b16 %v267
    %v355 = vunpack.c.l.b16 %v268
    %v356 = vunpack.c.h.b16 %v268
    %v357 = vunpack.c.l.b16 %v269
    %v358 = vunpack.c.l.b16 %v270
    %v359 = vunpack.c.h.b16 %v270
    %v360 = vunpack.c.l.b16 %v271
    %v361 = vunpack.c.l.b16 %v272
    %v362 = vunpack.c.h.b16 %v272
    %v363 = vunpack.c.l.b16 %v273
    %v364 = vunpack.c.l.b16 %v274
    %v365 = vunpack.c.h.b16 %v274
    %v366 = vunpack.c.l.b16 %v275
    %v367 = vunpack.c.l.b16 %v276
    %v368 = vunpack.c.h.b16 %v276
    %v369 = vunpack.c.l.b16 %v277
    %v370 = vunpack.c.l.b16 %v278
    %v371 = vunpack.c.h.b16 %v278
    %v372 = vunpack.c.l.b16 %v279
    %v373 = vunpack.c.l.b16 %v280
    %v374 = vunpack.c.h.b16 %v280
    %v375 = vunpack.c.l.b16 %v281
    %v376 = vunpack.c.l.b16 %v282
    %v377 = vunpack.c.h.b16 %v282
    %v378 = vunpack.c.l.b16 %v283
    %v379 = vunpack.c.l.b16 %v284
    %v380 = vunpack.c.h.b16 %v284
    %v381 = vunpack.c.l.b16 %v285
    %v382 = vunpack.c.l.b16 %v286
    %v383 = vunpack.c.h.b16 %v286
    %v384 = vunpack.c.l.b16 %v287
    %v385 = vpack.c.b16 %v340, %v337
    %v386 = vpack.c.b16 %v341, %v338
    %v387 = vpack.c.b16 %v342, %v339
    %v388 = vpack.c.b16 %v346, %v343
    %v389 = vpack.c.b16 %v347, %v344
    %v390 = vpack.c.b16 %v348, %v345
    %v391 = vpack.c.b16 %v352, %v349
    %v392 = vpack.c.b16 %v353, %v350
    %v393 = vpack.c.b16 %v354, %v351
    %v394 = vpack.c.b16 %v358, %v355
    %v395 = vpack.c.b16 %v359, %v356
    %v396 = vpack.c.b16 %v360, %v357
    %v397 = vpack.c.b16 %v364, %v361
    %v398 = vpack.c.b16 %v365, %v362
    %v399 = vpack.c.b16 %v366, %v363
    %v400 = vpack.c.b16 %v370, %v367
    %v401 = vpack.c.b16 %v371, %v368
    %v402 = vpack.c.b16 %v372, %v369
    %v403 = vpack.c.b16 %v376, %v373
    %v404 = vpack.c.b16 %v377, %v374
    %v405 = vpack.c.b16 %v378, %v375
    %v406 = vpack.c.b16 %v382, %v379
    %v407 = vpack.c.b16 %v383, %v380
    %v408 = vpack.c.b16 %v384, %v381
    %433 = vmatprep.subr.bf16.mxu0 %v407
    %434 = vmatpush1.bf16.msra.mxu0 %v406
    %435 = vmatprep.subr.bf16.mxu0 %v404
    %436 = vmatpush1.bf16.msra.mxu0 %v403
    %437 = vmatprep.subr.bf16.mxu0 %v401
    %438 = vmatpush1.bf16.msra.mxu0 %v400
    %439 = vmatprep.subr.bf16.mxu0 %v398
    %440 = vmatpush1.bf16.msra.mxu0 %v397
    %441 = vmatprep.subr.bf16.mxu0 %v395
    %442 = vmatpush1.bf16.msra.mxu0 %v394
    %443 = vmatprep.subr.bf16.mxu0 %v392
    %444 = vmatpush1.bf16.msra.mxu0 %v391
    %445 = vmatprep.subr.bf16.mxu0 %v389
    %446 = vmatpush1.bf16.msra.mxu0 %v388
    %447 = vmatprep.subr.bf16.mxu0 %v386
    %448 = vmatpush1.bf16.msra.mxu0 %v385
    %449 = vmatprep.subr.bf16.mxu0 0
    %450 = vmatpush2.bf16.msra.mxu0 0
    %451 = vmatprep.subr.bf16.mxu0 0
    %452 = vmatpush2.bf16.msra.mxu0 0
    %453 = vmatprep.subr.bf16.mxu0 0
    %454 = vmatpush2.bf16.msra.mxu0 0
    %455 = vmatprep.subr.bf16.mxu0 0
    %456 = vmatpush2.bf16.msra.mxu0 0
    %457 = vmatprep.subr.bf16.mxu0 0
    %458 = vmatpush2.bf16.msra.mxu0 0
    %459 = vmatprep.subr.bf16.mxu0 0
    %460 = vmatpush2.bf16.msra.mxu0 0
    %461 = vmatprep.subr.bf16.mxu0 0
    %462 = vmatpush2.bf16.msra.mxu0 0
    %463 = vmatprep.subr.bf16.mxu0 0
    %464 = vmatpush2.bf16.msra.mxu0 0
    %465 = vmatprep.mubr.bf16.mxu0 0
    %466 = vmatmul.mubr.bf16.gmra.mxu0 %v255
    %v467 = vpop.f32.mrf.mxu0
    %v468 = vadd.f32 %v293, %v467
    %v469 = vpop.f32.mrf.mxu0
    %v470 = vadd.f32 %v297, %v469
    %v471 = vpop.f32.mrf.mxu0
    %v472 = vadd.f32 %v293, %v471
    %v473 = vpop.f32.mrf.mxu0
    %v474 = vadd.f32 %v297, %v473
    %475 = vdwg.mxu0
    %476 = vmatprep.subr.bf16.mxu0 0
    %477 = vmatpush1.bf16.msra.mxu0 %v408
    %478 = vmatprep.subr.bf16.mxu0 0
    %479 = vmatpush1.bf16.msra.mxu0 %v405
    %480 = vmatprep.subr.bf16.mxu0 0
    %481 = vmatpush1.bf16.msra.mxu0 %v402
    %482 = vmatprep.subr.bf16.mxu0 0
    %483 = vmatpush1.bf16.msra.mxu0 %v399
    %484 = vmatprep.subr.bf16.mxu0 0
    %485 = vmatpush1.bf16.msra.mxu0 %v396
    %486 = vmatprep.subr.bf16.mxu0 0
    %487 = vmatpush1.bf16.msra.mxu0 %v393
    %488 = vmatprep.subr.bf16.mxu0 0
    %489 = vmatpush1.bf16.msra.mxu0 %v390
    %490 = vmatprep.subr.bf16.mxu0 0
    %491 = vmatpush1.bf16.msra.mxu0 %v387
    %492 = vmatprep.subr.bf16.mxu0 0
    %493 = vmatpush2.bf16.msra.mxu0 0
    %494 = vmatprep.subr.bf16.mxu0 0
    %495 = vmatpush2.bf16.msra.mxu0 0
    %496 = vmatprep.subr.bf16.mxu0 0
    %497 = vmatpush2.bf16.msra.mxu0 0
    %498 = vmatprep.subr.bf16.mxu0 0
    %499 = vmatpush2.bf16.msra.mxu0 0
    %500 = vmatprep.subr.bf16.mxu0 0
    %501 = vmatpush2.bf16.msra.mxu0 0
    %502 = vmatprep.subr.bf16.mxu0 0
    %503 = vmatpush2.bf16.msra.mxu0 0
    %504 = vmatprep.subr.bf16.mxu0 0
    %505 = vmatpush2.bf16.msra.mxu0 0
    %506 = vmatprep.subr.bf16.mxu0 0
    %507 = vmatpush2.bf16.msra.mxu0 0
    %508 = vmatprep.mubr.bf16.mxu0 0
    %509 = vmatmul.mubr.bf16.gmra.mxu0 %v255
    %v510 = vpop.f32.mrf.mxu0
    %v511 = vadd.f32 %v301, %v510
    %v512 = vpop.f32.mrf.mxu0
    %v513 = vpop.f32.mrf.mxu0
    %v514 = vadd.f32 %v301, %v513
    %v515 = vpop.f32.mrf.mxu0
    %516 = vdwg.mxu0
    %519 = vrot.lane.b32.xlu0 %v468, 64
    %v520 = vpop.permute.xlu0 %519
    %521 = vrot.lane.b32.xlu0 %v472, 64
    %v522 = vpop.permute.xlu0 %521
    %v525 = vcombine.high %v468, 0.0
    %v527 = vunpack.c.l.s4 1983009808
    %v528 = vunpack.c.0.s8 %v527
    %v529 = vlaneseq
    %v530 = vshrl.u32 %v529, 7
    %v531 = vsub.s32 %v528, %v530
    %v532 = vrot.slane %v468, %v531
    %v534 = vunpack.c.l.s4 1983009808
    %v535 = vunpack.c.0.s8 %v534
    %v536 = vlaneseq
    %v537 = vshrl.u32 %v536, 7
    %v538 = vsub.s32 %v535, %v537
    %v539 = vrot.slane %v525, %v538
    %v540 = vcombine.high %v520, 0.0
    %v542 = vunpack.c.l.s4 1983009808
    %v543 = vunpack.c.0.s8 %v542
    %v544 = vlaneseq
    %v545 = vshrl.u32 %v544, 7
    %v546 = vsub.s32 %v543, %v545
    %v547 = vrot.slane %v520, %v546
    %v549 = vunpack.c.l.s4 1983009808
    %v550 = vunpack.c.0.s8 %v549
    %v551 = vlaneseq
    %v552 = vshrl.u32 %v551, 7
    %v553 = vsub.s32 %v550, %v552
    %v554 = vrot.slane %v540, %v553
    %v555 = vcombine.low %v532, %v547
    %v556 = vcombine.high %v532, %v547
    %v558 = vunpack.c.l.s4 1934713408
    %v559 = vunpack.c.0.s8 %v558
    %v560 = vlaneseq
    %v561 = vshrl.u32 %v560, 7
    %v562 = vsub.s32 %v559, %v561
    %v563 = vrot.slane %v555, %v562
    %v565 = vunpack.c.l.s4 1934713408
    %v566 = vunpack.c.0.s8 %v565
    %v567 = vlaneseq
    %v568 = vshrl.u32 %v567, 7
    %v569 = vsub.s32 %v566, %v568
    %v570 = vrot.slane %v556, %v569
    %v571 = vcombine.low %v539, %v554
    %v572 = vcombine.high %v539, %v554
    %v574 = vunpack.c.l.s4 1934713408
    %v575 = vunpack.c.0.s8 %v574
    %v576 = vlaneseq
    %v577 = vshrl.u32 %v576, 7
    %v578 = vsub.s32 %v575, %v577
    %v579 = vrot.slane %v571, %v578
    %v581 = vunpack.c.l.s4 1934713408
    %v582 = vunpack.c.0.s8 %v581
    %v583 = vlaneseq
    %v584 = vshrl.u32 %v583, 7
    %v585 = vsub.s32 %v582, %v584
    %v586 = vrot.slane %v572, %v585
    %v587 = vcombine.high %v563, 0.0
    %v588 = vcombine.high %v570, 0.0
    %v589 = vcombine.high %v579, 0.0
    %v590 = vcombine.high %v586, 0.0
    %v591 = vcombine.high %v472, 0.0
    %v593 = vunpack.c.l.s4 1983009808
    %v594 = vunpack.c.0.s8 %v593
    %v595 = vlaneseq
    %v596 = vshrl.u32 %v595, 7
    %v597 = vsub.s32 %v594, %v596
    %v598 = vrot.slane %v472, %v597
    %v600 = vunpack.c.l.s4 1983009808
    %v601 = vunpack.c.0.s8 %v600
    %v602 = vlaneseq
    %v603 = vshrl.u32 %v602, 7
    %v604 = vsub.s32 %v601, %v603
    %v605 = vrot.slane %v591, %v604
    %v606 = vcombine.high %v522, 0.0
    %v608 = vunpack.c.l.s4 1983009808
    %v609 = vunpack.c.0.s8 %v608
    %v610 = vlaneseq
    %v611 = vshrl.u32 %v610, 7
    %v612 = vsub.s32 %v609, %v611
    %v613 = vrot.slane %v522, %v612
    %v615 = vunpack.c.l.s4 1983009808
    %v616 = vunpack.c.0.s8 %v615
    %v617 = vlaneseq
    %v618 = vshrl.u32 %v617, 7
    %v619 = vsub.s32 %v616, %v618
    %v620 = vrot.slane %v606, %v619
    %v621 = vcombine.low %v598, %v613
    %v622 = vcombine.high %v598, %v613
    %v624 = vunpack.c.l.s4 1934713408
    %v625 = vunpack.c.0.s8 %v624
    %v626 = vlaneseq
    %v627 = vshrl.u32 %v626, 7
    %v628 = vsub.s32 %v625, %v627
    %v629 = vrot.slane %v621, %v628
    %v631 = vunpack.c.l.s4 1934713408
    %v632 = vunpack.c.0.s8 %v631
    %v633 = vlaneseq
    %v634 = vshrl.u32 %v633, 7
    %v635 = vsub.s32 %v632, %v634
    %v636 = vrot.slane %v622, %v635
    %v637 = vcombine.low %v605, %v620
    %v638 = vcombine.high %v605, %v620
    %v640 = vunpack.c.l.s4 1934713408
    %v641 = vunpack.c.0.s8 %v640
    %v642 = vlaneseq
    %v643 = vshrl.u32 %v642, 7
    %v644 = vsub.s32 %v641, %v643
    %v645 = vrot.slane %v637, %v644
    %v647 = vunpack.c.l.s4 1934713408
    %v648 = vunpack.c.0.s8 %v647
    %v649 = vlaneseq
    %v650 = vshrl.u32 %v649, 7
    %v651 = vsub.s32 %v648, %v650
    %v652 = vrot.slane %v638, %v651
    %v653 = vcombine.high %v629, 0.0
    %v654 = vcombine.high %v636, 0.0
    %v655 = vcombine.high %v645, 0.0
    %v656 = vcombine.high %v652, 0.0
    %v657 = vcombine.low %v563, %v570
    %v659 = vunpack.c.l.s4 1983009808
    %v660 = vunpack.c.0.s8 %v659
    %v661 = vlaneseq
    %v662 = vshrl.u32 %v661, 7
    %v663 = vsub.s32 %v660, %v662
    %v664 = vrot.slane %v657, %v663
    %v665 = vcombine.low %v587, %v588
    %v667 = vunpack.c.l.s4 1983009808
    %v668 = vunpack.c.0.s8 %v667
    %v669 = vlaneseq
    %v670 = vshrl.u32 %v669, 7
    %v671 = vsub.s32 %v668, %v670
    %v672 = vrot.slane %v665, %v671
    %v673 = vcombine.low %v579, %v586
    %v675 = vunpack.c.l.s4 1983009808
    %v676 = vunpack.c.0.s8 %v675
    %v677 = vlaneseq
    %v678 = vshrl.u32 %v677, 7
    %v679 = vsub.s32 %v676, %v678
    %v680 = vrot.slane %v673, %v679
    %v681 = vcombine.low %v589, %v590
    %v683 = vunpack.c.l.s4 1983009808
    %v684 = vunpack.c.0.s8 %v683
    %v685 = vlaneseq
    %v686 = vshrl.u32 %v685, 7
    %v687 = vsub.s32 %v684, %v686
    %v688 = vrot.slane %v681, %v687
    %v689 = vcombine.low %v664, %v672
    %v691 = vunpack.c.l.s4 1934713408
    %v692 = vunpack.c.0.s8 %v691
    %v693 = vlaneseq
    %v694 = vshrl.u32 %v693, 7
    %v695 = vsub.s32 %v692, %v694
    %v696 = vrot.slane %v689, %v695
    %v697 = vcombine.low %v680, %v688
    %v699 = vunpack.c.l.s4 1934713408
    %v700 = vunpack.c.0.s8 %v699
    %v701 = vlaneseq
    %v702 = vshrl.u32 %v701, 7
    %v703 = vsub.s32 %v700, %v702
    %v704 = vrot.slane %v697, %v703
    %v705 = vcombine.low %v696, %v704
    %v706 = vcombine.high %v696, %v704
    %v707 = vcombine.low %v629, %v636
    %v709 = vunpack.c.l.s4 1983009808
    %v710 = vunpack.c.0.s8 %v709
    %v711 = vlaneseq
    %v712 = vshrl.u32 %v711, 7
    %v713 = vsub.s32 %v710, %v712
    %v714 = vrot.slane %v707, %v713
    %v715 = vcombine.low %v653, %v654
    %v717 = vunpack.c.l.s4 1983009808
    %v718 = vunpack.c.0.s8 %v717
    %v719 = vlaneseq
    %v720 = vshrl.u32 %v719, 7
    %v721 = vsub.s32 %v718, %v720
    %v722 = vrot.slane %v715, %v721
    %v723 = vcombine.low %v645, %v652
    %v725 = vunpack.c.l.s4 1983009808
    %v726 = vunpack.c.0.s8 %v725
    %v727 = vlaneseq
    %v728 = vshrl.u32 %v727, 7
    %v729 = vsub.s32 %v726, %v728
    %v730 = vrot.slane %v723, %v729
    %v731 = vcombine.low %v655, %v656
    %v733 = vunpack.c.l.s4 1983009808
    %v734 = vunpack.c.0.s8 %v733
    %v735 = vlaneseq
    %v736 = vshrl.u32 %v735, 7
    %v737 = vsub.s32 %v734, %v736
    %v738 = vrot.slane %v731, %v737
    %v739 = vcombine.low %v714, %v722
    %v741 = vunpack.c.l.s4 1934713408
    %v742 = vunpack.c.0.s8 %v741
    %v743 = vlaneseq
    %v744 = vshrl.u32 %v743, 7
    %v745 = vsub.s32 %v742, %v744
    %v746 = vrot.slane %v739, %v745
    %v747 = vcombine.low %v730, %v738
    %v749 = vunpack.c.l.s4 1934713408
    %v750 = vunpack.c.0.s8 %v749
    %v751 = vlaneseq
    %v752 = vshrl.u32 %v751, 7
    %v753 = vsub.s32 %v750, %v752
    %v754 = vrot.slane %v747, %v753
    %v755 = vcombine.low %v746, %v754
    %v756 = vcombine.high %v746, %v754
    %759 = vrot.lane.b32.xlu0 %v470, 64
    %v760 = vpop.permute.xlu0 %759
    %761 = vrot.lane.b32.xlu0 %v474, 64
    %v762 = vpop.permute.xlu0 %761
    %v765 = vcombine.high %v470, 0.0
    %v767 = vunpack.c.l.s4 1983009808
    %v768 = vunpack.c.0.s8 %v767
    %v769 = vlaneseq
    %v770 = vshrl.u32 %v769, 7
    %v771 = vsub.s32 %v768, %v770
    %v772 = vrot.slane %v470, %v771
    %v774 = vunpack.c.l.s4 1983009808
    %v775 = vunpack.c.0.s8 %v774
    %v776 = vlaneseq
    %v777 = vshrl.u32 %v776, 7
    %v778 = vsub.s32 %v775, %v777
    %v779 = vrot.slane %v765, %v778
    %v780 = vcombine.high %v760, 0.0
    %v782 = vunpack.c.l.s4 1983009808
    %v783 = vunpack.c.0.s8 %v782
    %v784 = vlaneseq
    %v785 = vshrl.u32 %v784, 7
    %v786 = vsub.s32 %v783, %v785
    %v787 = vrot.slane %v760, %v786
    %v789 = vunpack.c.l.s4 1983009808
    %v790 = vunpack.c.0.s8 %v789
    %v791 = vlaneseq
    %v792 = vshrl.u32 %v791, 7
    %v793 = vsub.s32 %v790, %v792
    %v794 = vrot.slane %v780, %v793
    %v795 = vcombine.low %v772, %v787
    %v796 = vcombine.high %v772, %v787
    %v798 = vunpack.c.l.s4 1934713408
    %v799 = vunpack.c.0.s8 %v798
    %v800 = vlaneseq
    %v801 = vshrl.u32 %v800, 7
    %v802 = vsub.s32 %v799, %v801
    %v803 = vrot.slane %v795, %v802
    %v805 = vunpack.c.l.s4 1934713408
    %v806 = vunpack.c.0.s8 %v805
    %v807 = vlaneseq
    %v808 = vshrl.u32 %v807, 7
    %v809 = vsub.s32 %v806, %v808
    %v810 = vrot.slane %v796, %v809
    %v811 = vcombine.low %v779, %v794
    %v812 = vcombine.high %v779, %v794
    %v814 = vunpack.c.l.s4 1934713408
    %v815 = vunpack.c.0.s8 %v814
    %v816 = vlaneseq
    %v817 = vshrl.u32 %v816, 7
    %v818 = vsub.s32 %v815, %v817
    %v819 = vrot.slane %v811, %v818
    %v821 = vunpack.c.l.s4 1934713408
    %v822 = vunpack.c.0.s8 %v821
    %v823 = vlaneseq
    %v824 = vshrl.u32 %v823, 7
    %v825 = vsub.s32 %v822, %v824
    %v826 = vrot.slane %v812, %v825
    %v827 = vcombine.high %v803, 0.0
    %v828 = vcombine.high %v810, 0.0
    %v829 = vcombine.high %v819, 0.0
    %v830 = vcombine.high %v826, 0.0
    %v831 = vcombine.high %v474, 0.0
    %v833 = vunpack.c.l.s4 1983009808
    %v834 = vunpack.c.0.s8 %v833
    %v835 = vlaneseq
    %v836 = vshrl.u32 %v835, 7
    %v837 = vsub.s32 %v834, %v836
    %v838 = vrot.slane %v474, %v837
    %v840 = vunpack.c.l.s4 1983009808
    %v841 = vunpack.c.0.s8 %v840
    %v842 = vlaneseq
    %v843 = vshrl.u32 %v842, 7
    %v844 = vsub.s32 %v841, %v843
    %v845 = vrot.slane %v831, %v844
    %v846 = vcombine.high %v762, 0.0
    %v848 = vunpack.c.l.s4 1983009808
    %v849 = vunpack.c.0.s8 %v848
    %v850 = vlaneseq
    %v851 = vshrl.u32 %v850, 7
    %v852 = vsub.s32 %v849, %v851
    %v853 = vrot.slane %v762, %v852
    %v855 = vunpack.c.l.s4 1983009808
    %v856 = vunpack.c.0.s8 %v855
    %v857 = vlaneseq
    %v858 = vshrl.u32 %v857, 7
    %v859 = vsub.s32 %v856, %v858
    %v860 = vrot.slane %v846, %v859
    %v861 = vcombine.low %v838, %v853
    %v862 = vcombine.high %v838, %v853
    %v864 = vunpack.c.l.s4 1934713408
    %v865 = vunpack.c.0.s8 %v864
    %v866 = vlaneseq
    %v867 = vshrl.u32 %v866, 7
    %v868 = vsub.s32 %v865, %v867
    %v869 = vrot.slane %v861, %v868
    %v871 = vunpack.c.l.s4 1934713408
    %v872 = vunpack.c.0.s8 %v871
    %v873 = vlaneseq
    %v874 = vshrl.u32 %v873, 7
    %v875 = vsub.s32 %v872, %v874
    %v876 = vrot.slane %v862, %v875
    %v877 = vcombine.low %v845, %v860
    %v878 = vcombine.high %v845, %v860
    %v880 = vunpack.c.l.s4 1934713408
    %v881 = vunpack.c.0.s8 %v880
    %v882 = vlaneseq
    %v883 = vshrl.u32 %v882, 7
    %v884 = vsub.s32 %v881, %v883
    %v885 = vrot.slane %v877, %v884
    %v887 = vunpack.c.l.s4 1934713408
    %v888 = vunpack.c.0.s8 %v887
    %v889 = vlaneseq
    %v890 = vshrl.u32 %v889, 7
    %v891 = vsub.s32 %v888, %v890
    %v892 = vrot.slane %v878, %v891
    %v893 = vcombine.high %v869, 0.0
    %v894 = vcombine.high %v876, 0.0
    %v895 = vcombine.high %v885, 0.0
    %v896 = vcombine.high %v892, 0.0
    %v897 = vcombine.low %v803, %v810
    %v899 = vunpack.c.l.s4 1983009808
    %v900 = vunpack.c.0.s8 %v899
    %v901 = vlaneseq
    %v902 = vshrl.u32 %v901, 7
    %v903 = vsub.s32 %v900, %v902
    %v904 = vrot.slane %v897, %v903
    %v905 = vcombine.low %v827, %v828
    %v907 = vunpack.c.l.s4 1983009808
    %v908 = vunpack.c.0.s8 %v907
    %v909 = vlaneseq
    %v910 = vshrl.u32 %v909, 7
    %v911 = vsub.s32 %v908, %v910
    %v912 = vrot.slane %v905, %v911
    %v913 = vcombine.low %v819, %v826
    %v915 = vunpack.c.l.s4 1983009808
    %v916 = vunpack.c.0.s8 %v915
    %v917 = vlaneseq
    %v918 = vshrl.u32 %v917, 7
    %v919 = vsub.s32 %v916, %v918
    %v920 = vrot.slane %v913, %v919
    %v921 = vcombine.low %v829, %v830
    %v923 = vunpack.c.l.s4 1983009808
    %v924 = vunpack.c.0.s8 %v923
    %v925 = vlaneseq
    %v926 = vshrl.u32 %v925, 7
    %v927 = vsub.s32 %v924, %v926
    %v928 = vrot.slane %v921, %v927
    %v929 = vcombine.low %v904, %v912
    %v931 = vunpack.c.l.s4 1934713408
    %v932 = vunpack.c.0.s8 %v931
    %v933 = vlaneseq
    %v934 = vshrl.u32 %v933, 7
    %v935 = vsub.s32 %v932, %v934
    %v936 = vrot.slane %v929, %v935
    %v937 = vcombine.low %v920, %v928
    %v939 = vunpack.c.l.s4 1934713408
    %v940 = vunpack.c.0.s8 %v939
    %v941 = vlaneseq
    %v942 = vshrl.u32 %v941, 7
    %v943 = vsub.s32 %v940, %v942
    %v944 = vrot.slane %v937, %v943
    %v945 = vcombine.low %v936, %v944
    %v946 = vcombine.high %v936, %v944
    %v947 = vcombine.low %v869, %v876
    %v949 = vunpack.c.l.s4 1983009808
    %v950 = vunpack.c.0.s8 %v949
    %v951 = vlaneseq
    %v952 = vshrl.u32 %v951, 7
    %v953 = vsub.s32 %v950, %v952
    %v954 = vrot.slane %v947, %v953
    %v955 = vcombine.low %v893, %v894
    %v957 = vunpack.c.l.s4 1983009808
    %v958 = vunpack.c.0.s8 %v957
    %v959 = vlaneseq
    %v960 = vshrl.u32 %v959, 7
    %v961 = vsub.s32 %v958, %v960
    %v962 = vrot.slane %v955, %v961
    %v963 = vcombine.low %v885, %v892
    %v965 = vunpack.c.l.s4 1983009808
    %v966 = vunpack.c.0.s8 %v965
    %v967 = vlaneseq
    %v968 = vshrl.u32 %v967, 7
    %v969 = vsub.s32 %v966, %v968
    %v970 = vrot.slane %v963, %v969
    %v971 = vcombine.low %v895, %v896
    %v973 = vunpack.c.l.s4 1983009808
    %v974 = vunpack.c.0.s8 %v973
    %v975 = vlaneseq
    %v976 = vshrl.u32 %v975, 7
    %v977 = vsub.s32 %v974, %v976
    %v978 = vrot.slane %v971, %v977
    %v979 = vcombine.low %v954, %v962
    %v981 = vunpack.c.l.s4 1934713408
    %v982 = vunpack.c.0.s8 %v981
    %v983 = vlaneseq
    %v984 = vshrl.u32 %v983, 7
    %v985 = vsub.s32 %v982, %v984
    %v986 = vrot.slane %v979, %v985
    %v987 = vcombine.low %v970, %v978
    %v989 = vunpack.c.l.s4 1934713408
    %v990 = vunpack.c.0.s8 %v989
    %v991 = vlaneseq
    %v992 = vshrl.u32 %v991, 7
    %v993 = vsub.s32 %v990, %v992
    %v994 = vrot.slane %v987, %v993
    %v995 = vcombine.low %v986, %v994
    %v996 = vcombine.high %v986, %v994
    %999 = vrot.lane.b32.xlu0 %v511, 64
    %v1000 = vpop.permute.xlu0 %999
    %1001 = vrot.lane.b32.xlu0 %v514, 64
    %v1002 = vpop.permute.xlu0 %1001
    %v1005 = vcombine.high %v511, 0.0
    %v1007 = vunpack.c.l.s4 1983009808
    %v1008 = vunpack.c.0.s8 %v1007
    %v1009 = vlaneseq
    %v1010 = vshrl.u32 %v1009, 7
    %v1011 = vsub.s32 %v1008, %v1010
    %v1012 = vrot.slane %v511, %v1011
    %v1014 = vunpack.c.l.s4 1983009808
    %v1015 = vunpack.c.0.s8 %v1014
    %v1016 = vlaneseq
    %v1017 = vshrl.u32 %v1016, 7
    %v1018 = vsub.s32 %v1015, %v1017
    %v1019 = vrot.slane %v1005, %v1018
    %v1020 = vcombine.high %v1000, 0.0
    %v1022 = vunpack.c.l.s4 1983009808
    %v1023 = vunpack.c.0.s8 %v1022
    %v1024 = vlaneseq
    %v1025 = vshrl.u32 %v1024, 7
    %v1026 = vsub.s32 %v1023, %v1025
    %v1027 = vrot.slane %v1000, %v1026
    %v1029 = vunpack.c.l.s4 1983009808
    %v1030 = vunpack.c.0.s8 %v1029
    %v1031 = vlaneseq
    %v1032 = vshrl.u32 %v1031, 7
    %v1033 = vsub.s32 %v1030, %v1032
    %v1034 = vrot.slane %v1020, %v1033
    %v1035 = vcombine.low %v1012, %v1027
    %v1036 = vcombine.high %v1012, %v1027
    %v1038 = vunpack.c.l.s4 1934713408
    %v1039 = vunpack.c.0.s8 %v1038
    %v1040 = vlaneseq
    %v1041 = vshrl.u32 %v1040, 7
    %v1042 = vsub.s32 %v1039, %v1041
    %v1043 = vrot.slane %v1035, %v1042
    %v1045 = vunpack.c.l.s4 1934713408
    %v1046 = vunpack.c.0.s8 %v1045
    %v1047 = vlaneseq
    %v1048 = vshrl.u32 %v1047, 7
    %v1049 = vsub.s32 %v1046, %v1048
    %v1050 = vrot.slane %v1036, %v1049
    %v1051 = vcombine.low %v1019, %v1034
    %v1052 = vcombine.high %v1019, %v1034
    %v1054 = vunpack.c.l.s4 1934713408
    %v1055 = vunpack.c.0.s8 %v1054
    %v1056 = vlaneseq
    %v1057 = vshrl.u32 %v1056, 7
    %v1058 = vsub.s32 %v1055, %v1057
    %v1059 = vrot.slane %v1051, %v1058
    %v1061 = vunpack.c.l.s4 1934713408
    %v1062 = vunpack.c.0.s8 %v1061
    %v1063 = vlaneseq
    %v1064 = vshrl.u32 %v1063, 7
    %v1065 = vsub.s32 %v1062, %v1064
    %v1066 = vrot.slane %v1052, %v1065
    %v1067 = vcombine.high %v1043, 0.0
    %v1068 = vcombine.high %v1050, 0.0
    %v1069 = vcombine.high %v1059, 0.0
    %v1070 = vcombine.high %v1066, 0.0
    %v1071 = vcombine.high %v514, 0.0
    %v1073 = vunpack.c.l.s4 1983009808
    %v1074 = vunpack.c.0.s8 %v1073
    %v1075 = vlaneseq
    %v1076 = vshrl.u32 %v1075, 7
    %v1077 = vsub.s32 %v1074, %v1076
    %v1078 = vrot.slane %v514, %v1077
    %v1080 = vunpack.c.l.s4 1983009808
    %v1081 = vunpack.c.0.s8 %v1080
    %v1082 = vlaneseq
    %v1083 = vshrl.u32 %v1082, 7
    %v1084 = vsub.s32 %v1081, %v1083
    %v1085 = vrot.slane %v1071, %v1084
    %v1086 = vcombine.high %v1002, 0.0
    %v1088 = vunpack.c.l.s4 1983009808
    %v1089 = vunpack.c.0.s8 %v1088
    %v1090 = vlaneseq
    %v1091 = vshrl.u32 %v1090, 7
    %v1092 = vsub.s32 %v1089, %v1091
    %v1093 = vrot.slane %v1002, %v1092
    %v1095 = vunpack.c.l.s4 1983009808
    %v1096 = vunpack.c.0.s8 %v1095
    %v1097 = vlaneseq
    %v1098 = vshrl.u32 %v1097, 7
    %v1099 = vsub.s32 %v1096, %v1098
    %v1100 = vrot.slane %v1086, %v1099
    %v1101 = vcombine.low %v1078, %v1093
    %v1102 = vcombine.high %v1078, %v1093
    %v1104 = vunpack.c.l.s4 1934713408
    %v1105 = vunpack.c.0.s8 %v1104
    %v1106 = vlaneseq
    %v1107 = vshrl.u32 %v1106, 7
    %v1108 = vsub.s32 %v1105, %v1107
    %v1109 = vrot.slane %v1101, %v1108
    %v1111 = vunpack.c.l.s4 1934713408
    %v1112 = vunpack.c.0.s8 %v1111
    %v1113 = vlaneseq
    %v1114 = vshrl.u32 %v1113, 7
    %v1115 = vsub.s32 %v1112, %v1114
    %v1116 = vrot.slane %v1102, %v1115
    %v1117 = vcombine.low %v1085, %v1100
    %v1118 = vcombine.high %v1085, %v1100
    %v1120 = vunpack.c.l.s4 1934713408
    %v1121 = vunpack.c.0.s8 %v1120
    %v1122 = vlaneseq
    %v1123 = vshrl.u32 %v1122, 7
    %v1124 = vsub.s32 %v1121, %v1123
    %v1125 = vrot.slane %v1117, %v1124
    %v1127 = vunpack.c.l.s4 1934713408
    %v1128 = vunpack.c.0.s8 %v1127
    %v1129 = vlaneseq
    %v1130 = vshrl.u32 %v1129, 7
    %v1131 = vsub.s32 %v1128, %v1130
    %v1132 = vrot.slane %v1118, %v1131
    %v1133 = vcombine.high %v1109, 0.0
    %v1134 = vcombine.high %v1116, 0.0
    %v1135 = vcombine.high %v1125, 0.0
    %v1136 = vcombine.high %v1132, 0.0
    %v1137 = vcombine.low %v1043, %v1050
    %v1139 = vunpack.c.l.s4 1983009808
    %v1140 = vunpack.c.0.s8 %v1139
    %v1141 = vlaneseq
    %v1142 = vshrl.u32 %v1141, 7
    %v1143 = vsub.s32 %v1140, %v1142
    %v1144 = vrot.slane %v1137, %v1143
    %v1145 = vcombine.low %v1067, %v1068
    %v1147 = vunpack.c.l.s4 1983009808
    %v1148 = vunpack.c.0.s8 %v1147
    %v1149 = vlaneseq
    %v1150 = vshrl.u32 %v1149, 7
    %v1151 = vsub.s32 %v1148, %v1150
    %v1152 = vrot.slane %v1145, %v1151
    %v1153 = vcombine.low %v1059, %v1066
    %v1155 = vunpack.c.l.s4 1983009808
    %v1156 = vunpack.c.0.s8 %v1155
    %v1157 = vlaneseq
    %v1158 = vshrl.u32 %v1157, 7
    %v1159 = vsub.s32 %v1156, %v1158
    %v1160 = vrot.slane %v1153, %v1159
    %v1161 = vcombine.low %v1069, %v1070
    %v1163 = vunpack.c.l.s4 1983009808
    %v1164 = vunpack.c.0.s8 %v1163
    %v1165 = vlaneseq
    %v1166 = vshrl.u32 %v1165, 7
    %v1167 = vsub.s32 %v1164, %v1166
    %v1168 = vrot.slane %v1161, %v1167
    %v1169 = vcombine.low %v1144, %v1152
    %v1171 = vunpack.c.l.s4 1934713408
    %v1172 = vunpack.c.0.s8 %v1171
    %v1173 = vlaneseq
    %v1174 = vshrl.u32 %v1173, 7
    %v1175 = vsub.s32 %v1172, %v1174
    %v1176 = vrot.slane %v1169, %v1175
    %v1177 = vcombine.low %v1160, %v1168
    %v1179 = vunpack.c.l.s4 1934713408
    %v1180 = vunpack.c.0.s8 %v1179
    %v1181 = vlaneseq
    %v1182 = vshrl.u32 %v1181, 7
    %v1183 = vsub.s32 %v1180, %v1182
    %v1184 = vrot.slane %v1177, %v1183
    %v1185 = vcombine.low %v1176, %v1184
    %v1186 = vcombine.high %v1176, %v1184
    %v1187 = vcombine.low %v1109, %v1116
    %v1189 = vunpack.c.l.s4 1983009808
    %v1190 = vunpack.c.0.s8 %v1189
    %v1191 = vlaneseq
    %v1192 = vshrl.u32 %v1191, 7
    %v1193 = vsub.s32 %v1190, %v1192
    %v1194 = vrot.slane %v1187, %v1193
    %v1195 = vcombine.low %v1133, %v1134
    %v1197 = vunpack.c.l.s4 1983009808
    %v1198 = vunpack.c.0.s8 %v1197
    %v1199 = vlaneseq
    %v1200 = vshrl.u32 %v1199, 7
    %v1201 = vsub.s32 %v1198, %v1200
    %v1202 = vrot.slane %v1195, %v1201
    %v1203 = vcombine.low %v1125, %v1132
    %v1205 = vunpack.c.l.s4 1983009808
    %v1206 = vunpack.c.0.s8 %v1205
    %v1207 = vlaneseq
    %v1208 = vshrl.u32 %v1207, 7
    %v1209 = vsub.s32 %v1206, %v1208
    %v1210 = vrot.slane %v1203, %v1209
    %v1211 = vcombine.low %v1135, %v1136
    %v1213 = vunpack.c.l.s4 1983009808
    %v1214 = vunpack.c.0.s8 %v1213
    %v1215 = vlaneseq
    %v1216 = vshrl.u32 %v1215, 7
    %v1217 = vsub.s32 %v1214, %v1216
    %v1218 = vrot.slane %v1211, %v1217
    %v1219 = vcombine.low %v1194, %v1202
    %v1221 = vunpack.c.l.s4 1934713408
    %v1222 = vunpack.c.0.s8 %v1221
    %v1223 = vlaneseq
    %v1224 = vshrl.u32 %v1223, 7
    %v1225 = vsub.s32 %v1222, %v1224
    %v1226 = vrot.slane %v1219, %v1225
    %v1227 = vcombine.low %v1210, %v1218
    %v1229 = vunpack.c.l.s4 1934713408
    %v1230 = vunpack.c.0.s8 %v1229
    %v1231 = vlaneseq
    %v1232 = vshrl.u32 %v1231, 7
    %v1233 = vsub.s32 %v1230, %v1232
    %v1234 = vrot.slane %v1227, %v1233
    %v1235 = vcombine.low %v1226, %v1234
    %v1236 = vcombine.high %v1226, %v1234
    %v1237 = vpack.c.bf16 %v755, %v705
    %v1238 = vpack.c.bf16 %v756, %v706
    %v1239 = vpack.c.bf16 %v995, %v945
    %v1240 = vpack.c.bf16 %v996, %v946
    %vm1241 = vcmask 523264
    %v1243 = vsel %vm1241, %v1237, 0
    %v1246 = vsel %vm1241, %v1239, 0
    %1248 = vmatprep.subr.bf16.mxu0 0
    %1249 = vmatpush1.bf16.xpose.msra.mxu0 0
    %1250 = vmatprep.subr.bf16.mxu0 0
    %1251 = vmatpush1.bf16.xpose.msra.mxu0 0
    %1252 = vmatprep.subr.bf16.mxu0 0
    %1253 = vmatpush1.bf16.xpose.msra.mxu0 0
    %1254 = vmatprep.subr.bf16.mxu0 0
    %1255 = vmatpush1.bf16.xpose.msra.mxu0 0
    %1256 = vmatprep.subr.bf16.mxu0 0
    %1257 = vmatpush1.bf16.xpose.msra.mxu0 0
    %1258 = vmatprep.subr.bf16.mxu0 0
    %1259 = vmatpush1.bf16.xpose.msra.mxu0 0
    %1260 = vmatprep.subr.bf16.mxu0 0
    %1261 = vmatpush1.bf16.xpose.msra.mxu0 0
    %1262 = vmatprep.subr.bf16.mxu0 0
    %1263 = vmatpush1.bf16.xpose.msra.mxu0 %v1246
    %1264 = vmatprep.subr.bf16.mxu0 0
    %1265 = vmatpush2.bf16.xpose.msra.mxu0 0
    %1266 = vmatprep.subr.bf16.mxu0 0
    %1267 = vmatpush2.bf16.xpose.msra.mxu0 0
    %1268 = vmatprep.subr.bf16.mxu0 0
    %1269 = vmatpush2.bf16.xpose.msra.mxu0 0
    %1270 = vmatprep.subr.bf16.mxu0 0
    %1271 = vmatpush2.bf16.xpose.msra.mxu0 0
    %1272 = vmatprep.subr.bf16.mxu0 0
    %1273 = vmatpush2.bf16.xpose.msra.mxu0 0
    %1274 = vmatprep.subr.bf16.mxu0 0
    %1275 = vmatpush2.bf16.xpose.msra.mxu0 0
    %1276 = vmatprep.subr.bf16.mxu0 0
    %1277 = vmatpush2.bf16.xpose.msra.mxu0 0
    %1278 = vmatprep.subr.bf16.mxu0 0
    %1279 = vmatpush2.bf16.xpose.msra.mxu0 0
    %1280 = vmatprep.mubr.bf16.mxu0 0
    %1281 = vmatmul.mubr.bf16.gmra.mxu0 %v1243
    %v1282 = vpop.f32.mrf.mxu0
    %v1283 = vadd.f32 0.0, %v1282
    %v1284 = vpop.f32.mrf.mxu0
    %v1285 = vpop.f32.mrf.mxu0
    %v1286 = vadd.f32 0.0, %v1285
    %v1287 = vpop.f32.mrf.mxu0
    %1288 = vdwg.mxu0
    %v1290 = vsel %vm1241, %v1238, 0
    %v1293 = vsel %vm1241, %v1240, 0
    %1295 = vmatprep.subr.bf16.mxu0 0
    %1296 = vmatpush1.bf16.xpose.msra.mxu0 0
    %1297 = vmatprep.subr.bf16.mxu0 0
    %1298 = vmatpush1.bf16.xpose.msra.mxu0 0
    %1299 = vmatprep.subr.bf16.mxu0 0
    %1300 = vmatpush1.bf16.xpose.msra.mxu0 0
    %1301 = vmatprep.subr.bf16.mxu0 0
    %1302 = vmatpush1.bf16.xpose.msra.mxu0 0
    %1303 = vmatprep.subr.bf16.mxu0 0
    %1304 = vmatpush1.bf16.xpose.msra.mxu0 0
    %1305 = vmatprep.subr.bf16.mxu0 0
    %1306 = vmatpush1.bf16.xpose.msra.mxu0 0
    %1307 = vmatprep.subr.bf16.mxu0 0
    %1308 = vmatpush1.bf16.xpose.msra.mxu0 0
    %1309 = vmatprep.subr.bf16.mxu0 0
    %1310 = vmatpush1.bf16.xpose.msra.mxu0 %v1293
    %1311 = vmatprep.subr.bf16.mxu0 0
    %1312 = vmatpush2.bf16.xpose.msra.mxu0 0
    %1313 = vmatprep.subr.bf16.mxu0 0
    %1314 = vmatpush2.bf16.xpose.msra.mxu0 0
    %1315 = vmatprep.subr.bf16.mxu0 0
    %1316 = vmatpush2.bf16.xpose.msra.mxu0 0
    %1317 = vmatprep.subr.bf16.mxu0 0
    %1318 = vmatpush2.bf16.xpose.msra.mxu0 0
    %1319 = vmatprep.subr.bf16.mxu0 0
    %1320 = vmatpush2.bf16.xpose.msra.mxu0 0
    %1321 = vmatprep.subr.bf16.mxu0 0
    %1322 = vmatpush2.bf16.xpose.msra.mxu0 0
    %1323 = vmatprep.subr.bf16.mxu0 0
    %1324 = vmatpush2.bf16.xpose.msra.mxu0 0
    %1325 = vmatprep.subr.bf16.mxu0 0
    %1326 = vmatpush2.bf16.xpose.msra.mxu0 0
    %1327 = vmatprep.mubr.bf16.mxu0 0
    %1328 = vmatmul.mubr.bf16.gmra.mxu0 %v1290
    %v1329 = vpop.f32.mrf.mxu0
    %v1330 = vadd.f32 0.0, %v1329
    %v1331 = vpop.f32.mrf.mxu0
    %v1332 = vpop.f32.mrf.mxu0
    %v1333 = vadd.f32 0.0, %v1332
    %v1334 = vpop.f32.mrf.mxu0
    %1335 = vdwg.mxu0
    %v1336 = vmul.f32 %v1283, 0.125
    %v1337 = vmul.f32 %v1286, 0.125
    %v1338 = vmul.f32 %v1330, 0.125
    %v1339 = vmul.f32 %v1333, 0.125
    %v1340 = vadd.f32 %v1336, %v212
    %v1341 = vadd.f32 %v1337, %v213
    %v1342 = vadd.f32 %v1338, %v212
    %v1343 = vadd.f32 %v1339, %v213
    %vm1344 = vcmask 130048
    %v1345 = vsel %vm1344, %v1340, -inf
    %1346 = vmax.xlane.f32.xlu0 %v1345
    %v1347 = vpop.xlane.xlu0 %1346
    %v1348 = vsel %vm1344, %v1341, -inf
    %1349 = vmax.xlane.f32.xlu0 %v1348
    %v1350 = vpop.xlane.xlu0 %1349
    %v1351 = vsel %vm1344, %v1342, -inf
    %1352 = vmax.xlane.f32.xlu0 %v1351
    %v1353 = vpop.xlane.xlu0 %1352
    %v1354 = vsel %vm1344, %v1343, -inf
    %1355 = vmax.xlane.f32.xlu0 %v1354
    %v1356 = vpop.xlane.xlu0 %1355
    %v1357 = vsub.f32 %v1340, %v1347
    %v1358 = vsub.f32 %v1341, %v1350
    %v1359 = vsub.f32 %v1342, %v1353
    %v1360 = vsub.f32 %v1343, %v1356
    %v1361 = vmul.f32 %v1357, 1.442695
    %v1362 = vpow.pop %v1361
    %v1363 = vmul.f32 %v1358, 1.442695
    %v1364 = vpow.pop %v1363
    %v1365 = vmul.f32 %v1359, 1.442695
    %v1366 = vpow.pop %v1365
    %v1367 = vmul.f32 %v1360, 1.442695
    %v1368 = vpow.pop %v1367
    %v1369 = vsel %vm1344, %v1362, 0.0
    %1370 = vadd.xlane.f32.xlu0 %v1369
    %v1371 = vpop.xlane.xlu0 %1370
    %v1372 = vsel %vm1344, %v1364, 0.0
    %1373 = vadd.xlane.f32.xlu0 %v1372
    %v1374 = vpop.xlane.xlu0 %1373
    %v1375 = vsel %vm1344, %v1366, 0.0
    %1376 = vadd.xlane.f32.xlu0 %v1375
    %v1377 = vpop.xlane.xlu0 %1376
    %v1378 = vsel %vm1344, %v1368, 0.0
    %1379 = vadd.xlane.f32.xlu0 %v1378
    %v1380 = vpop.xlane.xlu0 %1379
    %v1381 = vrcp.pop %v1371
    %v1382 = vrcp.pop %v1374
    %v1383 = vrcp.pop %v1377
    %v1384 = vrcp.pop %v1380
    %v1385 = vmul.f32 %v1362, %v1381
    %v1386 = vmul.f32 %v1364, %v1382
    %v1387 = vmul.f32 %v1366, %v1383
    %v1388 = vmul.f32 %v1368, %v1384
    %v1389 = vpack.c.bf16 %v1386, %v1385
    %v1390 = vpack.c.bf16 %v1388, %v1387
    %v1391 = vpack.c.bf16 %v1235, %v1185
    %v1392 = vpack.c.bf16 %v1236, %v1186
    %v1394 = vsel %vm1344, %v1389, 0
    %1396 = vmatprep.subr.bf16.mxu0 0
    %1397 = vmatpush1.bf16.msra.mxu0 0
    %1398 = vmatprep.subr.bf16.mxu0 0
    %1399 = vmatpush1.bf16.msra.mxu0 0
    %1400 = vmatprep.subr.bf16.mxu0 0
    %1401 = vmatpush1.bf16.msra.mxu0 0
    %1402 = vmatprep.subr.bf16.mxu0 0
    %1403 = vmatpush1.bf16.msra.mxu0 0
    %1404 = vmatprep.subr.bf16.mxu0 0
    %1405 = vmatpush1.bf16.msra.mxu0 0
    %1406 = vmatprep.subr.bf16.mxu0 0
    %1407 = vmatpush1.bf16.msra.mxu0 0
    %1408 = vmatprep.subr.bf16.mxu0 0
    %1409 = vmatpush1.bf16.msra.mxu0 0
    %1410 = vmatprep.subr.bf16.mxu0 0
    %1411 = vmatpush1.bf16.msra.mxu0 %v1391
    %1412 = vmatprep.subr.bf16.mxu0 0
    %1413 = vmatpush2.bf16.msra.mxu0 0
    %1414 = vmatprep.subr.bf16.mxu0 0
    %1415 = vmatpush2.bf16.msra.mxu0 0
    %1416 = vmatprep.subr.bf16.mxu0 0
    %1417 = vmatpush2.bf16.msra.mxu0 0
    %1418 = vmatprep.subr.bf16.mxu0 0
    %1419 = vmatpush2.bf16.msra.mxu0 0
    %1420 = vmatprep.subr.bf16.mxu0 0
    %1421 = vmatpush2.bf16.msra.mxu0 0
    %1422 = vmatprep.subr.bf16.mxu0 0
    %1423 = vmatpush2.bf16.msra.mxu0 0
    %1424 = vmatprep.subr.bf16.mxu0 0
    %1425 = vmatpush2.bf16.msra.mxu0 0
    %1426 = vmatprep.subr.bf16.mxu0 0
    %1427 = vmatpush2.bf16.msra.mxu0 0
    %1428 = vmatprep.mubr.bf16.mxu0 0
    %1429 = vmatmul.mubr.bf16.gmra.mxu0 %v1394
    %v1430 = vpop.f32.mrf.mxu0
    %v1431 = vadd.f32 0.0, %v1430
    %v1432 = vpop.f32.mrf.mxu0
    %v1433 = vpop.f32.mrf.mxu0
    %v1434 = vadd.f32 0.0, %v1433
    %v1435 = vpop.f32.mrf.mxu0
    %1436 = vdwg.mxu0
    %v1438 = vsel %vm1344, %v1390, 0
    %1440 = vmatprep.subr.bf16.mxu0 0
    %1441 = vmatpush1.bf16.msra.mxu0 0
    %1442 = vmatprep.subr.bf16.mxu0 0
    %1443 = vmatpush1.bf16.msra.mxu0 0
    %1444 = vmatprep.subr.bf16.mxu0 0
    %1445 = vmatpush1.bf16.msra.mxu0 0
    %1446 = vmatprep.subr.bf16.mxu0 0
    %1447 = vmatpush1.bf16.msra.mxu0 0
    %1448 = vmatprep.subr.bf16.mxu0 0
    %1449 = vmatpush1.bf16.msra.mxu0 0
    %1450 = vmatprep.subr.bf16.mxu0 0
    %1451 = vmatpush1.bf16.msra.mxu0 0
    %1452 = vmatprep.subr.bf16.mxu0 0
    %1453 = vmatpush1.bf16.msra.mxu0 0
    %1454 = vmatprep.subr.bf16.mxu0 0
    %1455 = vmatpush1.bf16.msra.mxu0 %v1392
    %1456 = vmatprep.subr.bf16.mxu0 0
    %1457 = vmatpush2.bf16.msra.mxu0 0
    %1458 = vmatprep.subr.bf16.mxu0 0
    %1459 = vmatpush2.bf16.msra.mxu0 0
    %1460 = vmatprep.subr.bf16.mxu0 0
    %1461 = vmatpush2.bf16.msra.mxu0 0
    %1462 = vmatprep.subr.bf16.mxu0 0
    %1463 = vmatpush2.bf16.msra.mxu0 0
    %1464 = vmatprep.subr.bf16.mxu0 0
    %1465 = vmatpush2.bf16.msra.mxu0 0
    %1466 = vmatprep.subr.bf16.mxu0 0
    %1467 = vmatpush2.bf16.msra.mxu0 0
    %1468 = vmatprep.subr.bf16.mxu0 0
    %1469 = vmatpush2.bf16.msra.mxu0 0
    %1470 = vmatprep.subr.bf16.mxu0 0
    %1471 = vmatpush2.bf16.msra.mxu0 0
    %1472 = vmatprep.mubr.bf16.mxu0 0
    %1473 = vmatmul.mubr.bf16.gmra.mxu0 %v1438
    %v1474 = vpop.f32.mrf.mxu0
    %v1475 = vadd.f32 0.0, %v1474
    %v1476 = vpop.f32.mrf.mxu0
    %v1477 = vpop.f32.mrf.mxu0
    %v1478 = vadd.f32 0.0, %v1477
    %v1479 = vpop.f32.mrf.mxu0
    %1480 = vdwg.mxu0
    %v1481 = vcombine.high %v1431, 0.0
    %v1483 = vunpack.c.l.s4 1983009808
    %v1484 = vunpack.c.0.s8 %v1483
    %v1485 = vlaneseq
    %v1486 = vshrl.u32 %v1485, 7
    %v1487 = vsub.s32 %v1484, %v1486
    %v1488 = vrot.slane %v1431, %v1487
    %v1490 = vunpack.c.l.s4 1983009808
    %v1491 = vunpack.c.0.s8 %v1490
    %v1492 = vlaneseq
    %v1493 = vshrl.u32 %v1492, 7
    %v1494 = vsub.s32 %v1491, %v1493
    %v1495 = vrot.slane %v1481, %v1494
    %v1496 = vcombine.high %v1475, 0.0
    %v1498 = vunpack.c.l.s4 1983009808
    %v1499 = vunpack.c.0.s8 %v1498
    %v1500 = vlaneseq
    %v1501 = vshrl.u32 %v1500, 7
    %v1502 = vsub.s32 %v1499, %v1501
    %v1503 = vrot.slane %v1475, %v1502
    %v1505 = vunpack.c.l.s4 1983009808
    %v1506 = vunpack.c.0.s8 %v1505
    %v1507 = vlaneseq
    %v1508 = vshrl.u32 %v1507, 7
    %v1509 = vsub.s32 %v1506, %v1508
    %v1510 = vrot.slane %v1496, %v1509
    %v1511 = vcombine.low %v1488, %v1503
    %v1512 = vcombine.high %v1488, %v1503
    %v1514 = vunpack.c.l.s4 1934713408
    %v1515 = vunpack.c.0.s8 %v1514
    %v1516 = vlaneseq
    %v1517 = vshrl.u32 %v1516, 7
    %v1518 = vsub.s32 %v1515, %v1517
    %v1519 = vrot.slane %v1511, %v1518
    %v1521 = vunpack.c.l.s4 1934713408
    %v1522 = vunpack.c.0.s8 %v1521
    %v1523 = vlaneseq
    %v1524 = vshrl.u32 %v1523, 7
    %v1525 = vsub.s32 %v1522, %v1524
    %v1526 = vrot.slane %v1512, %v1525
    %v1527 = vcombine.low %v1495, %v1510
    %v1528 = vcombine.high %v1495, %v1510
    %v1530 = vunpack.c.l.s4 1934713408
    %v1531 = vunpack.c.0.s8 %v1530
    %v1532 = vlaneseq
    %v1533 = vshrl.u32 %v1532, 7
    %v1534 = vsub.s32 %v1531, %v1533
    %v1535 = vrot.slane %v1527, %v1534
    %v1537 = vunpack.c.l.s4 1934713408
    %v1538 = vunpack.c.0.s8 %v1537
    %v1539 = vlaneseq
    %v1540 = vshrl.u32 %v1539, 7
    %v1541 = vsub.s32 %v1538, %v1540
    %v1542 = vrot.slane %v1528, %v1541
    %v1543 = vcombine.high %v1519, 0.0
    %v1544 = vcombine.high %v1526, 0.0
    %v1545 = vcombine.high %v1535, 0.0
    %v1546 = vcombine.high %v1542, 0.0
    %v1547 = vcombine.high %v1434, 0.0
    %v1549 = vunpack.c.l.s4 1983009808
    %v1550 = vunpack.c.0.s8 %v1549
    %v1551 = vlaneseq
    %v1552 = vshrl.u32 %v1551, 7
    %v1553 = vsub.s32 %v1550, %v1552
    %v1554 = vrot.slane %v1434, %v1553
    %v1556 = vunpack.c.l.s4 1983009808
    %v1557 = vunpack.c.0.s8 %v1556
    %v1558 = vlaneseq
    %v1559 = vshrl.u32 %v1558, 7
    %v1560 = vsub.s32 %v1557, %v1559
    %v1561 = vrot.slane %v1547, %v1560
    %v1562 = vcombine.high %v1478, 0.0
    %v1564 = vunpack.c.l.s4 1983009808
    %v1565 = vunpack.c.0.s8 %v1564
    %v1566 = vlaneseq
    %v1567 = vshrl.u32 %v1566, 7
    %v1568 = vsub.s32 %v1565, %v1567
    %v1569 = vrot.slane %v1478, %v1568
    %v1571 = vunpack.c.l.s4 1983009808
    %v1572 = vunpack.c.0.s8 %v1571
    %v1573 = vlaneseq
    %v1574 = vshrl.u32 %v1573, 7
    %v1575 = vsub.s32 %v1572, %v1574
    %v1576 = vrot.slane %v1562, %v1575
    %v1577 = vcombine.low %v1554, %v1569
    %v1578 = vcombine.high %v1554, %v1569
    %v1580 = vunpack.c.l.s4 1934713408
    %v1581 = vunpack.c.0.s8 %v1580
    %v1582 = vlaneseq
    %v1583 = vshrl.u32 %v1582, 7
    %v1584 = vsub.s32 %v1581, %v1583
    %v1585 = vrot.slane %v1577, %v1584
    %v1587 = vunpack.c.l.s4 1934713408
    %v1588 = vunpack.c.0.s8 %v1587
    %v1589 = vlaneseq
    %v1590 = vshrl.u32 %v1589, 7
    %v1591 = vsub.s32 %v1588, %v1590
    %v1592 = vrot.slane %v1578, %v1591
    %v1593 = vcombine.low %v1561, %v1576
    %v1594 = vcombine.high %v1561, %v1576
    %v1596 = vunpack.c.l.s4 1934713408
    %v1597 = vunpack.c.0.s8 %v1596
    %v1598 = vlaneseq
    %v1599 = vshrl.u32 %v1598, 7
    %v1600 = vsub.s32 %v1597, %v1599
    %v1601 = vrot.slane %v1593, %v1600
    %v1603 = vunpack.c.l.s4 1934713408
    %v1604 = vunpack.c.0.s8 %v1603
    %v1605 = vlaneseq
    %v1606 = vshrl.u32 %v1605, 7
    %v1607 = vsub.s32 %v1604, %v1606
    %v1608 = vrot.slane %v1594, %v1607
    %v1609 = vcombine.high %v1585, 0.0
    %v1610 = vcombine.high %v1592, 0.0
    %v1611 = vcombine.high %v1601, 0.0
    %v1612 = vcombine.high %v1608, 0.0
    %v1613 = vcombine.low %v1519, %v1526
    %v1615 = vunpack.c.l.s4 1983009808
    %v1616 = vunpack.c.0.s8 %v1615
    %v1617 = vlaneseq
    %v1618 = vshrl.u32 %v1617, 7
    %v1619 = vsub.s32 %v1616, %v1618
    %v1620 = vrot.slane %v1613, %v1619
    %v1621 = vcombine.low %v1543, %v1544
    %v1623 = vunpack.c.l.s4 1983009808
    %v1624 = vunpack.c.0.s8 %v1623
    %v1625 = vlaneseq
    %v1626 = vshrl.u32 %v1625, 7
    %v1627 = vsub.s32 %v1624, %v1626
    %v1628 = vrot.slane %v1621, %v1627
    %v1629 = vcombine.low %v1535, %v1542
    %v1631 = vunpack.c.l.s4 1983009808
    %v1632 = vunpack.c.0.s8 %v1631
    %v1633 = vlaneseq
    %v1634 = vshrl.u32 %v1633, 7
    %v1635 = vsub.s32 %v1632, %v1634
    %v1636 = vrot.slane %v1629, %v1635
    %v1637 = vcombine.low %v1545, %v1546
    %v1639 = vunpack.c.l.s4 1983009808
    %v1640 = vunpack.c.0.s8 %v1639
    %v1641 = vlaneseq
    %v1642 = vshrl.u32 %v1641, 7
    %v1643 = vsub.s32 %v1640, %v1642
    %v1644 = vrot.slane %v1637, %v1643
    %v1645 = vcombine.low %v1620, %v1628
    %v1647 = vunpack.c.l.s4 1934713408
    %v1648 = vunpack.c.0.s8 %v1647
    %v1649 = vlaneseq
    %v1650 = vshrl.u32 %v1649, 7
    %v1651 = vsub.s32 %v1648, %v1650
    %v1652 = vrot.slane %v1645, %v1651
    %v1653 = vcombine.low %v1636, %v1644
    %v1655 = vunpack.c.l.s4 1934713408
    %v1656 = vunpack.c.0.s8 %v1655
    %v1657 = vlaneseq
    %v1658 = vshrl.u32 %v1657, 7
    %v1659 = vsub.s32 %v1656, %v1658
    %v1660 = vrot.slane %v1653, %v1659
    %v1661 = vcombine.low %v1652, %v1660
    %v1662 = vcombine.high %v1652, %v1660
    %v1663 = vcombine.low %v1585, %v1592
    %v1665 = vunpack.c.l.s4 1983009808
    %v1666 = vunpack.c.0.s8 %v1665
    %v1667 = vlaneseq
    %v1668 = vshrl.u32 %v1667, 7
    %v1669 = vsub.s32 %v1666, %v1668
    %v1670 = vrot.slane %v1663, %v1669
    %v1671 = vcombine.low %v1609, %v1610
    %v1673 = vunpack.c.l.s4 1983009808
    %v1674 = vunpack.c.0.s8 %v1673
    %v1675 = vlaneseq
    %v1676 = vshrl.u32 %v1675, 7
    %v1677 = vsub.s32 %v1674, %v1676
    %v1678 = vrot.slane %v1671, %v1677
    %v1679 = vcombine.low %v1601, %v1608
    %v1681 = vunpack.c.l.s4 1983009808
    %v1682 = vunpack.c.0.s8 %v1681
    %v1683 = vlaneseq
    %v1684 = vshrl.u32 %v1683, 7
    %v1685 = vsub.s32 %v1682, %v1684
    %v1686 = vrot.slane %v1679, %v1685
    %v1687 = vcombine.low %v1611, %v1612
    %v1689 = vunpack.c.l.s4 1983009808
    %v1690 = vunpack.c.0.s8 %v1689
    %v1691 = vlaneseq
    %v1692 = vshrl.u32 %v1691, 7
    %v1693 = vsub.s32 %v1690, %v1692
    %v1694 = vrot.slane %v1687, %v1693
    %v1695 = vcombine.low %v1670, %v1678
    %v1697 = vunpack.c.l.s4 1934713408
    %v1698 = vunpack.c.0.s8 %v1697
    %v1699 = vlaneseq
    %v1700 = vshrl.u32 %v1699, 7
    %v1701 = vsub.s32 %v1698, %v1700
    %v1702 = vrot.slane %v1695, %v1701
    %v1703 = vcombine.low %v1686, %v1694
    %v1705 = vunpack.c.l.s4 1934713408
    %v1706 = vunpack.c.0.s8 %v1705
    %v1707 = vlaneseq
    %v1708 = vshrl.u32 %v1707, 7
    %v1709 = vsub.s32 %v1706, %v1708
    %v1710 = vrot.slane %v1703, %v1709
    %v1711 = vcombine.low %v1702, %v1710
    %v1712 = vcombine.high %v1702, %v1710
    %1715 = vrot.lane.b32.xlu0 %v1662, 64
    %v1716 = vpop.permute.xlu0 %1715
    %1717 = vrot.lane.b32.xlu0 %v1712, 64
    %v1718 = vpop.permute.xlu0 %1717
    %v1721 = vsel %vm1241, %v1661, %v1716
    %v1722 = vsel %vm1241, %v1711, %v1718
    %v1723 = vpack.c.bf16 %v1722, %v1721
    %v1724 = vld [vmem:[#allocation10] sm:$0xf]
    %v1725 = vld [vmem:[#allocation10 + $0x4] sm:$0xf]
    %v1726 = vld [vmem:[#allocation10 + $0x8] sm:$0xf]
    %v1727 = vld [vmem:[#allocation10 + $0xc] sm:$0xf]
    %v1728 = vld [vmem:[#allocation10 + $0x10] sm:$0xf]
    %v1729 = vld [vmem:[#allocation10 + $0x14] sm:$0xf]
    %v1730 = vld [vmem:[#allocation10 + $0x18] sm:$0xf]
    %v1731 = vld [vmem:[#allocation10 + $0x1c] sm:$0xf]
    %v1732 = vld [vmem:[#allocation10 + $0x20] sm:$0xf]
    %v1733 = vld [vmem:[#allocation10 + $0x24] sm:$0xf]
    %v1734 = vld [vmem:[#allocation10 + $0x28] sm:$0xf]
    %v1735 = vld [vmem:[#allocation10 + $0x2c] sm:$0xf]
    %v1736 = vld [vmem:[#allocation10 + $0x30] sm:$0xf]
    %v1737 = vld [vmem:[#allocation10 + $0x34] sm:$0xf]
    %v1738 = vld [vmem:[#allocation10 + $0x38] sm:$0xf]
    %v1739 = vld [vmem:[#allocation10 + $0x3c] sm:$0xf]
    %v1740 = vld [vmem:[#allocation11] sm:$0x1]
    %v1742 = vlaneseq
    %v1743 = vshrl.u32 %v1742, 7
    %v1744 = vsub.s32 0, %v1743
    %v1745 = vrot.slane %v1740, %v1744
    %v1763 = vunpack.c.l.b16 %v1724
    %v1764 = vunpack.c.l.b16 %v1725
    %v1765 = vunpack.c.l.b16 %v1726
    %v1766 = vunpack.c.l.b16 %v1727
    %v1767 = vunpack.c.l.b16 %v1728
    %v1768 = vunpack.c.l.b16 %v1729
    %v1769 = vunpack.c.l.b16 %v1730
    %v1770 = vunpack.c.l.b16 %v1731
    %v1771 = vunpack.c.l.b16 %v1732
    %v1772 = vunpack.c.l.b16 %v1733
    %v1773 = vunpack.c.l.b16 %v1734
    %v1774 = vunpack.c.l.b16 %v1735
    %v1775 = vunpack.c.l.b16 %v1736
    %v1776 = vunpack.c.l.b16 %v1737
    %v1777 = vunpack.c.l.b16 %v1738
    %v1778 = vunpack.c.l.b16 %v1739
    %v1779 = vpack.c.b16 %v1764, %v1763
    %v1780 = vpack.c.b16 %v1766, %v1765
    %v1781 = vpack.c.b16 %v1768, %v1767
    %v1782 = vpack.c.b16 %v1770, %v1769
    %v1783 = vpack.c.b16 %v1772, %v1771
    %v1784 = vpack.c.b16 %v1774, %v1773
    %v1785 = vpack.c.b16 %v1776, %v1775
    %v1786 = vpack.c.b16 %v1778, %v1777
    %1795 = vmatprep.subr.bf16.mxu0 0
    %1796 = vmatpush1.bf16.msra.mxu0 %v1786
    %1797 = vmatprep.subr.bf16.mxu0 0
    %1798 = vmatpush1.bf16.msra.mxu0 %v1785
    %1799 = vmatprep.subr.bf16.mxu0 0
    %1800 = vmatpush1.bf16.msra.mxu0 %v1784
    %1801 = vmatprep.subr.bf16.mxu0 0
    %1802 = vmatpush1.bf16.msra.mxu0 %v1783
    %1803 = vmatprep.subr.bf16.mxu0 0
    %1804 = vmatpush1.bf16.msra.mxu0 %v1782
    %1805 = vmatprep.subr.bf16.mxu0 0
    %1806 = vmatpush1.bf16.msra.mxu0 %v1781
    %1807 = vmatprep.subr.bf16.mxu0 0
    %1808 = vmatpush1.bf16.msra.mxu0 %v1780
    %1809 = vmatprep.subr.bf16.mxu0 0
    %1810 = vmatpush1.bf16.msra.mxu0 %v1779
    %1811 = vmatprep.subr.bf16.mxu0 0
    %1812 = vmatpush2.bf16.msra.mxu0 0
    %1813 = vmatprep.subr.bf16.mxu0 0
    %1814 = vmatpush2.bf16.msra.mxu0 0
    %1815 = vmatprep.subr.bf16.mxu0 0
    %1816 = vmatpush2.bf16.msra.mxu0 0
    %1817 = vmatprep.subr.bf16.mxu0 0
    %1818 = vmatpush2.bf16.msra.mxu0 0
    %1819 = vmatprep.subr.bf16.mxu0 0
    %1820 = vmatpush2.bf16.msra.mxu0 0
    %1821 = vmatprep.subr.bf16.mxu0 0
    %1822 = vmatpush2.bf16.msra.mxu0 0
    %1823 = vmatprep.subr.bf16.mxu0 0
    %1824 = vmatpush2.bf16.msra.mxu0 0
    %1825 = vmatprep.subr.bf16.mxu0 0
    %1826 = vmatpush2.bf16.msra.mxu0 0
    %1827 = vmatprep.mubr.bf16.mxu0 0
    %1828 = vmatmul.mubr.bf16.gmra.mxu0 %v1723
    %v1829 = vpop.f32.mrf.mxu0
    %v1830 = vadd.f32 %v1745, %v1829
    %v1831 = vpop.f32.mrf.mxu0
    %v1832 = vpop.f32.mrf.mxu0
    %v1833 = vadd.f32 %v1745, %v1832
    %v1834 = vpop.f32.mrf.mxu0
    %1835 = vdwg.mxu0
    %v1836 = vadd.f32 %v210, %v1830
    %v1837 = vadd.f32 %v211, %v1833
    %v1838 = vld [vmem:[#allocation13] sm:$0x1]
    %v1839 = vld [vmem:[#allocation14] sm:$0x1]
    %1840 = vadd.xlane.f32.xlu0 %v1836
    %v1841 = vpop.xlane.xlu0 %1840
    %1842 = vadd.xlane.f32.xlu0 %v1837
    %v1843 = vpop.xlane.xlu0 %1842
    %v1844 = vmul.f32 %v1841, %v220
    %v1845 = vmul.f32 %v1843, %v220
    %v1846 = vsub.f32 %v1836, %v1844
    %v1847 = vsub.f32 %v1837, %v1845
    %v1848 = vmul.f32 %v1846, %v1846
    %v1849 = vmul.f32 %v1847, %v1847
    %1850 = vadd.xlane.f32.xlu0 %v1848
    %v1851 = vpop.xlane.xlu0 %1850
    %1852 = vadd.xlane.f32.xlu0 %v1849
    %v1853 = vpop.xlane.xlu0 %1852
    %v1854 = vmul.f32 %v1851, %v220
    %v1855 = vmul.f32 %v1853, %v220
    %v1856 = vadd.f32 %v1854, 1e-05
    %v1857 = vadd.f32 %v1855, 1e-05
    %v1858 = vrsqrt.pop %v1856
    %v1859 = vrsqrt.pop %v1857
    %v1860 = vmul.f32 %v1846, %v1858
    %v1861 = vmul.f32 %v1847, %v1859
    %v1863 = vlaneseq
    %v1864 = vshrl.u32 %v1863, 7
    %v1865 = vsub.s32 0, %v1864
    %v1866 = vrot.slane %v1838, %v1865
    %v1868 = vmul.f32 %v1860, %v1866
    %v1869 = vmul.f32 %v1861, %v1866
    %v1871 = vlaneseq
    %v1872 = vshrl.u32 %v1871, 7
    %v1873 = vsub.s32 0, %v1872
    %v1874 = vrot.slane %v1839, %v1873
    %v1876 = vadd.f32 %v1868, %v1874
    %v1877 = vadd.f32 %v1869, %v1874
    %v1878 = vpack.c.bf16 %v1877, %v1876
    %v1879 = vld [vmem:[#allocation16] sm:$0xff]
    %v1880 = vld [vmem:[#allocation16 + $0x8] sm:$0xff]
    %v1881 = vld [vmem:[#allocation16 + $0x10] sm:$0xff]
    %v1882 = vld [vmem:[#allocation16 + $0x18] sm:$0xff]
    %v1883 = vld [vmem:[#allocation16 + $0x20] sm:$0xff]
    %v1884 = vld [vmem:[#allocation16 + $0x28] sm:$0xff]
    %v1885 = vld [vmem:[#allocation16 + $0x30] sm:$0xff]
    %v1886 = vld [vmem:[#allocation16 + $0x38] sm:$0xff]
    %v1887 = vld [vmem:[#allocation16 + $0x40] sm:$0xff]
    %v1888 = vld [vmem:[#allocation16 + $0x48] sm:$0xff]
    %v1889 = vld [vmem:[#allocation16 + $0x50] sm:$0xff]
    %v1890 = vld [vmem:[#allocation16 + $0x58] sm:$0xff]
    %v1891 = vld [vmem:[#allocation16 + $0x60] sm:$0xff]
    %v1892 = vld [vmem:[#allocation16 + $0x68] sm:$0xff]
    %v1893 = vld [vmem:[#allocation16 + $0x70] sm:$0xff]
    %v1894 = vld [vmem:[#allocation16 + $0x78] sm:$0xff]
    %v1895 = vld [vmem:[#allocation16 + $0x80] sm:$0xff]
    %v1896 = vld [vmem:[#allocation16 + $0x88] sm:$0xff]
    %v1897 = vld [vmem:[#allocation16 + $0x90] sm:$0xff]
    %v1898 = vld [vmem:[#allocation16 + $0x98] sm:$0xff]
    %v1899 = vld [vmem:[#allocation16 + $0xa0] sm:$0xff]
    %v1900 = vld [vmem:[#allocation16 + $0xa8] sm:$0xff]
    %v1901 = vld [vmem:[#allocation16 + $0xb0] sm:$0xff]
    %v1902 = vld [vmem:[#allocation16 + $0xb8] sm:$0xff]
    %v1903 = vld [vmem:[#allocation16 + $0xc0] sm:$0xff]
    %v1904 = vld [vmem:[#allocation16 + $0xc8] sm:$0xff]
    %v1905 = vld [vmem:[#allocation16 + $0xd0] sm:$0xff]
    %v1906 = vld [vmem:[#allocation16 + $0xd8] sm:$0xff]
    %v1907 = vld [vmem:[#allocation16 + $0xe0] sm:$0xff]
    %v1908 = vld [vmem:[#allocation16 + $0xe8] sm:$0xff]
    %v1909 = vld [vmem:[#allocation16 + $0xf0] sm:$0xff]
    %v1910 = vld [vmem:[#allocation16 + $0xf8] sm:$0xff]
    %v1911 = vld [vmem:[%s11] sm:$0xf]
    %v1913 = vlaneseq
    %v1914 = vshrl.u32 %v1913, 7
    %v1915 = vsub.s32 0, %v1914
    %v1916 = vrot.slane %v1911, %v1915
    %v1917 = vlaneseq
    %v1918 = vshrl.u32 %v1917, 7
    %v1919 = vsub.s32 1, %v1918
    %v1920 = vrot.slane %v1911, %v1919
    %v1921 = vlaneseq
    %v1922 = vshrl.u32 %v1921, 7
    %v1923 = vsub.s32 2, %v1922
    %v1924 = vrot.slane %v1911, %v1923
    %v1925 = vlaneseq
    %v1926 = vshrl.u32 %v1925, 7
    %v1927 = vsub.s32 3, %v1926
    %v1928 = vrot.slane %v1911, %v1927
    %v1965 = vunpack.c.l.b16 %v1879
    %v1966 = vunpack.c.h.b16 %v1879
    %v1967 = vunpack.c.l.b16 %v1880
    %v1968 = vunpack.c.h.b16 %v1880
    %v1969 = vunpack.c.l.b16 %v1881
    %v1970 = vunpack.c.h.b16 %v1881
    %v1971 = vunpack.c.l.b16 %v1882
    %v1972 = vunpack.c.h.b16 %v1882
    %v1973 = vunpack.c.l.b16 %v1883
    %v1974 = vunpack.c.h.b16 %v1883
    %v1975 = vunpack.c.l.b16 %v1884
    %v1976 = vunpack.c.h.b16 %v1884
    %v1977 = vunpack.c.l.b16 %v1885
    %v1978 = vunpack.c.h.b16 %v1885
    %v1979 = vunpack.c.l.b16 %v1886
    %v1980 = vunpack.c.h.b16 %v1886
    %v1981 = vunpack.c.l.b16 %v1887
    %v1982 = vunpack.c.h.b16 %v1887
    %v1983 = vunpack.c.l.b16 %v1888
    %v1984 = vunpack.c.h.b16 %v1888
    %v1985 = vunpack.c.l.b16 %v1889
    %v1986 = vunpack.c.h.b16 %v1889
    %v1987 = vunpack.c.l.b16 %v1890
    %v1988 = vunpack.c.h.b16 %v1890
    %v1989 = vunpack.c.l.b16 %v1891
    %v1990 = vunpack.c.h.b16 %v1891
    %v1991 = vunpack.c.l.b16 %v1892
    %v1992 = vunpack.c.h.b16 %v1892
    %v1993 = vunpack.c.l.b16 %v1893
    %v1994 = vunpack.c.h.b16 %v1893
    %v1995 = vunpack.c.l.b16 %v1894
    %v1996 = vunpack.c.h.b16 %v1894
    %v1997 = vunpack.c.l.b16 %v1895
    %v1998 = vunpack.c.h.b16 %v1895
    %v1999 = vunpack.c.l.b16 %v1896
    %v2000 = vunpack.c.h.b16 %v1896
    %v2001 = vunpack.c.l.b16 %v1897
    %v2002 = vunpack.c.h.b16 %v1897
    %v2003 = vunpack.c.l.b16 %v1898
    %v2004 = vunpack.c.h.b16 %v1898
    %v2005 = vunpack.c.l.b16 %v1899
    %v2006 = vunpack.c.h.b16 %v1899
    %v2007 = vunpack.c.l.b16 %v1900
    %v2008 = vunpack.c.h.b16 %v1900
    %v2009 = vunpack.c.l.b16 %v1901
    %v2010 = vunpack.c.h.b16 %v1901
    %v2011 = vunpack.c.l.b16 %v1902
    %v2012 = vunpack.c.h.b16 %v1902
    %v2013 = vunpack.c.l.b16 %v1903
    %v2014 = vunpack.c.h.b16 %v1903
    %v2015 = vunpack.c.l.b16 %v1904
    %v2016 = vunpack.c.h.b16 %v1904
    %v2017 = vunpack.c.l.b16 %v1905
    %v2018 = vunpack.c.h.b16 %v1905
    %v2019 = vunpack.c.l.b16 %v1906
    %v2020 = vunpack.c.h.b16 %v1906
    %v2021 = vunpack.c.l.b16 %v1907
    %v2022 = vunpack.c.h.b16 %v1907
    %v2023 = vunpack.c.l.b16 %v1908
    %v2024 = vunpack.c.h.b16 %v1908
    %v2025 = vunpack.c.l.b16 %v1909
    %v2026 = vunpack.c.h.b16 %v1909
    %v2027 = vunpack.c.l.b16 %v1910
    %v2028 = vunpack.c.h.b16 %v1910
    %v2029 = vpack.c.b16 %v1969, %v1965
    %v2030 = vpack.c.b16 %v1970, %v1966
    %v2031 = vpack.c.b16 %v1971, %v1967
    %v2032 = vpack.c.b16 %v1972, %v1968
    %v2033 = vpack.c.b16 %v1977, %v1973
    %v2034 = vpack.c.b16 %v1978, %v1974
    %v2035 = vpack.c.b16 %v1979, %v1975
    %v2036 = vpack.c.b16 %v1980, %v1976
    %v2037 = vpack.c.b16 %v1985, %v1981
    %v2038 = vpack.c.b16 %v1986, %v1982
    %v2039 = vpack.c.b16 %v1987, %v1983
    %v2040 = vpack.c.b16 %v1988, %v1984
    %v2041 = vpack.c.b16 %v1993, %v1989
    %v2042 = vpack.c.b16 %v1994, %v1990
    %v2043 = vpack.c.b16 %v1995, %v1991
    %v2044 = vpack.c.b16 %v1996, %v1992
    %v2045 = vpack.c.b16 %v2001, %v1997
    %v2046 = vpack.c.b16 %v2002, %v1998
    %v2047 = vpack.c.b16 %v2003, %v1999
    %v2048 = vpack.c.b16 %v2004, %v2000
    %v2049 = vpack.c.b16 %v2009, %v2005
    %v2050 = vpack.c.b16 %v2010, %v2006
    %v2051 = vpack.c.b16 %v2011, %v2007
    %v2052 = vpack.c.b16 %v2012, %v2008
    %v2053 = vpack.c.b16 %v2017, %v2013
    %v2054 = vpack.c.b16 %v2018, %v2014
    %v2055 = vpack.c.b16 %v2019, %v2015
    %v2056 = vpack.c.b16 %v2020, %v2016
    %v2057 = vpack.c.b16 %v2025, %v2021
    %v2058 = vpack.c.b16 %v2026, %v2022
    %v2059 = vpack.c.b16 %v2027, %v2023
    %v2060 = vpack.c.b16 %v2028, %v2024
    %2093 = vmatprep.subr.bf16.mxu0 %v2058
    %2094 = vmatpush1.bf16.msra.mxu0 %v2057
    %2095 = vmatprep.subr.bf16.mxu0 %v2054
    %2096 = vmatpush1.bf16.msra.mxu0 %v2053
    %2097 = vmatprep.subr.bf16.mxu0 %v2050
    %2098 = vmatpush1.bf16.msra.mxu0 %v2049
    %2099 = vmatprep.subr.bf16.mxu0 %v2046
    %2100 = vmatpush1.bf16.msra.mxu0 %v2045
    %2101 = vmatprep.subr.bf16.mxu0 %v2042
    %2102 = vmatpush1.bf16.msra.mxu0 %v2041
    %2103 = vmatprep.subr.bf16.mxu0 %v2038
    %2104 = vmatpush1.bf16.msra.mxu0 %v2037
    %2105 = vmatprep.subr.bf16.mxu0 %v2034
    %2106 = vmatpush1.bf16.msra.mxu0 %v2033
    %2107 = vmatprep.subr.bf16.mxu0 %v2030
    %2108 = vmatpush1.bf16.msra.mxu0 %v2029
    %2109 = vmatprep.subr.bf16.mxu0 0
    %2110 = vmatpush2.bf16.msra.mxu0 0
    %2111 = vmatprep.subr.bf16.mxu0 0
    %2112 = vmatpush2.bf16.msra.mxu0 0
    %2113 = vmatprep.subr.bf16.mxu0 0
    %2114 = vmatpush2.bf16.msra.mxu0 0
    %2115 = vmatprep.subr.bf16.mxu0 0
    %2116 = vmatpush2.bf16.msra.mxu0 0
    %2117 = vmatprep.subr.bf16.mxu0 0
    %2118 = vmatpush2.bf16.msra.mxu0 0
    %2119 = vmatprep.subr.bf16.mxu0 0
    %2120 = vmatpush2.bf16.msra.mxu0 0
    %2121 = vmatprep.subr.bf16.mxu0 0
    %2122 = vmatpush2.bf16.msra.mxu0 0
    %2123 = vmatprep.subr.bf16.mxu0 0
    %2124 = vmatpush2.bf16.msra.mxu0 0
    %2125 = vmatprep.mubr.bf16.mxu0 0
    %2126 = vmatmul.mubr.bf16.gmra.mxu0 %v1878
    %v2127 = vpop.f32.mrf.mxu0
    %v2128 = vadd.f32 %v1916, %v2127
    %v2129 = vpop.f32.mrf.mxu0
    %v2130 = vadd.f32 %v1920, %v2129
    %v2131 = vpop.f32.mrf.mxu0
    %v2132 = vadd.f32 %v1916, %v2131
    %v2133 = vpop.f32.mrf.mxu0
    %v2134 = vadd.f32 %v1920, %v2133
    %2135 = vdwg.mxu0
    %2136 = vmatprep.subr.bf16.mxu0 %v2060
    %2137 = vmatpush1.bf16.msra.mxu0 %v2059
    %2138 = vmatprep.subr.bf16.mxu0 %v2056
    %2139 = vmatpush1.bf16.msra.mxu0 %v2055
    %2140 = vmatprep.subr.bf16.mxu0 %v2052
    %2141 = vmatpush1.bf16.msra.mxu0 %v2051
    %2142 = vmatprep.subr.bf16.mxu0 %v2048
    %2143 = vmatpush1.bf16.msra.mxu0 %v2047
    %2144 = vmatprep.subr.bf16.mxu0 %v2044
    %2145 = vmatpush1.bf16.msra.mxu0 %v2043
    %2146 = vmatprep.subr.bf16.mxu0 %v2040
    %2147 = vmatpush1.bf16.msra.mxu0 %v2039
    %2148 = vmatprep.subr.bf16.mxu0 %v2036
    %2149 = vmatpush1.bf16.msra.mxu0 %v2035
    %2150 = vmatprep.subr.bf16.mxu0 %v2032
    %2151 = vmatpush1.bf16.msra.mxu0 %v2031
    %2152 = vmatprep.subr.bf16.mxu0 0
    %2153 = vmatpush2.bf16.msra.mxu0 0
    %2154 = vmatprep.subr.bf16.mxu0 0
    %2155 = vmatpush2.bf16.msra.mxu0 0
    %2156 = vmatprep.subr.bf16.mxu0 0
    %2157 = vmatpush2.bf16.msra.mxu0 0
    %2158 = vmatprep.subr.bf16.mxu0 0
    %2159 = vmatpush2.bf16.msra.mxu0 0
    %2160 = vmatprep.subr.bf16.mxu0 0
    %2161 = vmatpush2.bf16.msra.mxu0 0
    %2162 = vmatprep.subr.bf16.mxu0 0
    %2163 = vmatpush2.bf16.msra.mxu0 0
    %2164 = vmatprep.subr.bf16.mxu0 0
    %2165 = vmatpush2.bf16.msra.mxu0 0
    %2166 = vmatprep.subr.bf16.mxu0 0
    %2167 = vmatpush2.bf16.msra.mxu0 0
    %2168 = vmatprep.mubr.bf16.mxu0 0
    %2169 = vmatmul.mubr.bf16.gmra.mxu0 %v1878
    %v2170 = vpop.f32.mrf.mxu0
    %v2171 = vadd.f32 %v1924, %v2170
    %v2172 = vpop.f32.mrf.mxu0
    %v2173 = vadd.f32 %v1928, %v2172
    %v2174 = vpop.f32.mrf.mxu0
    %v2175 = vadd.f32 %v1924, %v2174
    %v2176 = vpop.f32.mrf.mxu0
    %v2177 = vadd.f32 %v1928, %v2176
    %2178 = vdwg.mxu0
    %v2179 = vmul.f32 %v2128, 0.5
    %v2180 = vmul.f32 %v2130, 0.5
    %v2181 = vmul.f32 %v2171, 0.5
    %v2182 = vmul.f32 %v2173, 0.5
    %v2183 = vmul.f32 %v2132, 0.5
    %v2184 = vmul.f32 %v2134, 0.5
    %v2185 = vmul.f32 %v2175, 0.5
    %v2186 = vmul.f32 %v2177, 0.5
    %v2187 = vmul.f32 %v2128, 0.044715
    %v2188 = vmul.f32 %v2130, 0.044715
    %v2189 = vmul.f32 %v2171, 0.044715
    %v2190 = vmul.f32 %v2173, 0.044715
    %v2191 = vmul.f32 %v2132, 0.044715
    %v2192 = vmul.f32 %v2134, 0.044715
    %v2193 = vmul.f32 %v2175, 0.044715
    %v2194 = vmul.f32 %v2177, 0.044715
    %v2195 = vmul.f32 %v2187, %v2128
    %v2196 = vmul.f32 %v2188, %v2130
    %v2197 = vmul.f32 %v2189, %v2171
    %v2198 = vmul.f32 %v2190, %v2173
    %v2199 = vmul.f32 %v2191, %v2132
    %v2200 = vmul.f32 %v2192, %v2134
    %v2201 = vmul.f32 %v2193, %v2175
    %v2202 = vmul.f32 %v2194, %v2177
    %v2203 = vmul.f32 %v2195, %v2128
    %v2204 = vmul.f32 %v2196, %v2130
    %v2205 = vmul.f32 %v2197, %v2171
    %v2206 = vmul.f32 %v2198, %v2173
    %v2207 = vmul.f32 %v2199, %v2132
    %v2208 = vmul.f32 %v2200, %v2134
    %v2209 = vmul.f32 %v2201, %v2175
    %v2210 = vmul.f32 %v2202, %v2177
    %v2211 = vadd.f32 %v2128, %v2203
    %v2212 = vadd.f32 %v2130, %v2204
    %v2213 = vadd.f32 %v2171, %v2205
    %v2214 = vadd.f32 %v2173, %v2206
    %v2215 = vadd.f32 %v2132, %v2207
    %v2216 = vadd.f32 %v2134, %v2208
    %v2217 = vadd.f32 %v2175, %v2209
    %v2218 = vadd.f32 %v2177, %v2210
    %v2219 = vmul.f32 %v2211, 0.7978845
    %v2220 = vmul.f32 %v2212, 0.7978845
    %v2221 = vmul.f32 %v2213, 0.7978845
    %v2222 = vmul.f32 %v2214, 0.7978845
    %v2223 = vmul.f32 %v2215, 0.7978845
    %v2224 = vmul.f32 %v2216, 0.7978845
    %v2225 = vmul.f32 %v2217, 0.7978845
    %v2226 = vmul.f32 %v2218, 0.7978845
    %v2227 = vtanh.pop %v2219
    %v2228 = vtanh.pop %v2220
    %v2229 = vtanh.pop %v2221
    %v2230 = vtanh.pop %v2222
    %v2231 = vtanh.pop %v2223
    %v2232 = vtanh.pop %v2224
    %v2233 = vtanh.pop %v2225
    %v2234 = vtanh.pop %v2226
    %v2235 = vadd.f32 %v2227, 1.0
    %v2236 = vadd.f32 %v2228, 1.0
    %v2237 = vadd.f32 %v2229, 1.0
    %v2238 = vadd.f32 %v2230, 1.0
    %v2239 = vadd.f32 %v2231, 1.0
    %v2240 = vadd.f32 %v2232, 1.0
    %v2241 = vadd.f32 %v2233, 1.0
    %v2242 = vadd.f32 %v2234, 1.0
    %v2243 = vmul.f32 %v2179, %v2235
    %v2244 = vmul.f32 %v2180, %v2236
    %v2245 = vmul.f32 %v2181, %v2237
    %v2246 = vmul.f32 %v2182, %v2238
    %v2247 = vmul.f32 %v2183, %v2239
    %v2248 = vmul.f32 %v2184, %v2240
    %v2249 = vmul.f32 %v2185, %v2241
    %v2250 = vmul.f32 %v2186, %v2242
    %v2251 = vpack.c.bf16 %v2247, %v2243
    %v2252 = vpack.c.bf16 %v2248, %v2244
    %v2253 = vpack.c.bf16 %v2249, %v2245
    %v2254 = vpack.c.bf16 %v2250, %v2246
    %v2255 = vld [vmem:[#allocation17] sm:$0xf]
    %v2256 = vld [vmem:[#allocation17 + $0x4] sm:$0xf]
    %v2257 = vld [vmem:[#allocation17 + $0x8] sm:$0xf]
    %v2258 = vld [vmem:[#allocation17 + $0xc] sm:$0xf]
    %v2259 = vld [vmem:[#allocation17 + $0x10] sm:$0xf]
    %v2260 = vld [vmem:[#allocation17 + $0x14] sm:$0xf]
    %v2261 = vld [vmem:[#allocation17 + $0x18] sm:$0xf]
    %v2262 = vld [vmem:[#allocation17 + $0x1c] sm:$0xf]
    %v2263 = vld [vmem:[#allocation17 + $0x20] sm:$0xf]
    %v2264 = vld [vmem:[#allocation17 + $0x24] sm:$0xf]
    %v2265 = vld [vmem:[#allocation17 + $0x28] sm:$0xf]
    %v2266 = vld [vmem:[#allocation17 + $0x2c] sm:$0xf]
    %v2267 = vld [vmem:[#allocation17 + $0x30] sm:$0xf]
    %v2268 = vld [vmem:[#allocation17 + $0x34] sm:$0xf]
    %v2269 = vld [vmem:[#allocation17 + $0x38] sm:$0xf]
    %v2270 = vld [vmem:[#allocation17 + $0x3c] sm:$0xf]
    %v2271 = vld [vmem:[#allocation17 + $0x40] sm:$0xf]
    %v2272 = vld [vmem:[#allocation17 + $0x44] sm:$0xf]
    %v2273 = vld [vmem:[#allocation17 + $0x48] sm:$0xf]
    %v2274 = vld [vmem:[#allocation17 + $0x4c] sm:$0xf]
    %v2275 = vld [vmem:[#allocation17 + $0x50] sm:$0xf]
    %v2276 = vld [vmem:[#allocation17 + $0x54] sm:$0xf]
    %v2277 = vld [vmem:[#allocation17 + $0x58] sm:$0xf]
    %v2278 = vld [vmem:[#allocation17 + $0x5c] sm:$0xf]
    %v2279 = vld [vmem:[#allocation17 + $0x60] sm:$0xf]
    %v2280 = vld [vmem:[#allocation17 + $0x64] sm:$0xf]
    %v2281 = vld [vmem:[#allocation17 + $0x68] sm:$0xf]
    %v2282 = vld [vmem:[#allocation17 + $0x6c] sm:$0xf]
    %v2283 = vld [vmem:[#allocation17 + $0x70] sm:$0xf]
    %v2284 = vld [vmem:[#allocation17 + $0x74] sm:$0xf]
    %v2285 = vld [vmem:[#allocation17 + $0x78] sm:$0xf]
    %v2286 = vld [vmem:[#allocation17 + $0x7c] sm:$0xf]
    %v2287 = vld [vmem:[#allocation17 + $0x80] sm:$0xf]
    %v2288 = vld [vmem:[#allocation17 + $0x84] sm:$0xf]
    %v2289 = vld [vmem:[#allocation17 + $0x88] sm:$0xf]
    %v2290 = vld [vmem:[#allocation17 + $0x8c] sm:$0xf]
    %v2291 = vld [vmem:[#allocation17 + $0x90] sm:$0xf]
    %v2292 = vld [vmem:[#allocation17 + $0x94] sm:$0xf]
    %v2293 = vld [vmem:[#allocation17 + $0x98] sm:$0xf]
    %v2294 = vld [vmem:[#allocation17 + $0x9c] sm:$0xf]
    %v2295 = vld [vmem:[#allocation17 + $0xa0] sm:$0xf]
    %v2296 = vld [vmem:[#allocation17 + $0xa4] sm:$0xf]
    %v2297 = vld [vmem:[#allocation17 + $0xa8] sm:$0xf]
    %v2298 = vld [vmem:[#allocation17 + $0xac] sm:$0xf]
    %v2299 = vld [vmem:[#allocation17 + $0xb0] sm:$0xf]
    %v2300 = vld [vmem:[#allocation17 + $0xb4] sm:$0xf]
    %v2301 = vld [vmem:[#allocation17 + $0xb8] sm:$0xf]
    %v2302 = vld [vmem:[#allocation17 + $0xbc] sm:$0xf]
    %v2303 = vld [vmem:[#allocation17 + $0xc0] sm:$0xf]
    %v2304 = vld [vmem:[#allocation17 + $0xc4] sm:$0xf]
    %v2305 = vld [vmem:[#allocation17 + $0xc8] sm:$0xf]
    %v2306 = vld [vmem:[#allocation17 + $0xcc] sm:$0xf]
    %v2307 = vld [vmem:[#allocation17 + $0xd0] sm:$0xf]
    %v2308 = vld [vmem:[#allocation17 + $0xd4] sm:$0xf]
    %v2309 = vld [vmem:[#allocation17 + $0xd8] sm:$0xf]
    %v2310 = vld [vmem:[#allocation17 + $0xdc] sm:$0xf]
    %v2311 = vld [vmem:[#allocation17 + $0xe0] sm:$0xf]
    %v2312 = vld [vmem:[#allocation17 + $0xe4] sm:$0xf]
    %v2313 = vld [vmem:[#allocation17 + $0xe8] sm:$0xf]
    %v2314 = vld [vmem:[#allocation17 + $0xec] sm:$0xf]
    %v2315 = vld [vmem:[#allocation17 + $0xf0] sm:$0xf]
    %v2316 = vld [vmem:[#allocation17 + $0xf4] sm:$0xf]
    %v2317 = vld [vmem:[#allocation17 + $0xf8] sm:$0xf]
    %v2318 = vld [vmem:[#allocation17 + $0xfc] sm:$0xf]
    %v2319 = vld [vmem:[%s13] sm:$0x1]
    %v2321 = vlaneseq
    %v2322 = vshrl.u32 %v2321, 7
    %v2323 = vsub.s32 0, %v2322
    %v2324 = vrot.slane %v2319, %v2323
    %v2390 = vunpack.c.l.b16 %v2255
    %v2391 = vunpack.c.l.b16 %v2256
    %v2392 = vunpack.c.l.b16 %v2257
    %v2393 = vunpack.c.l.b16 %v2258
    %v2394 = vunpack.c.l.b16 %v2259
    %v2395 = vunpack.c.l.b16 %v2260
    %v2396 = vunpack.c.l.b16 %v2261
    %v2397 = vunpack.c.l.b16 %v2262
    %v2398 = vunpack.c.l.b16 %v2263
    %v2399 = vunpack.c.l.b16 %v2264
    %v2400 = vunpack.c.l.b16 %v2265
    %v2401 = vunpack.c.l.b16 %v2266
    %v2402 = vunpack.c.l.b16 %v2267
    %v2403 = vunpack.c.l.b16 %v2268
    %v2404 = vunpack.c.l.b16 %v2269
    %v2405 = vunpack.c.l.b16 %v2270
    %v2406 = vunpack.c.l.b16 %v2271
    %v2407 = vunpack.c.l.b16 %v2272
    %v2408 = vunpack.c.l.b16 %v2273
    %v2409 = vunpack.c.l.b16 %v2274
    %v2410 = vunpack.c.l.b16 %v2275
    %v2411 = vunpack.c.l.b16 %v2276
    %v2412 = vunpack.c.l.b16 %v2277
    %v2413 = vunpack.c.l.b16 %v2278
    %v2414 = vunpack.c.l.b16 %v2279
    %v2415 = vunpack.c.l.b16 %v2280
    %v2416 = vunpack.c.l.b16 %v2281
    %v2417 = vunpack.c.l.b16 %v2282
    %v2418 = vunpack.c.l.b16 %v2283
    %v2419 = vunpack.c.l.b16 %v2284
    %v2420 = vunpack.c.l.b16 %v2285
    %v2421 = vunpack.c.l.b16 %v2286
    %v2422 = vunpack.c.l.b16 %v2287
    %v2423 = vunpack.c.l.b16 %v2288
    %v2424 = vunpack.c.l.b16 %v2289
    %v2425 = vunpack.c.l.b16 %v2290
    %v2426 = vunpack.c.l.b16 %v2291
    %v2427 = vunpack.c.l.b16 %v2292
    %v2428 = vunpack.c.l.b16 %v2293
    %v2429 = vunpack.c.l.b16 %v2294
    %v2430 = vunpack.c.l.b16 %v2295
    %v2431 = vunpack.c.l.b16 %v2296
    %v2432 = vunpack.c.l.b16 %v2297
    %v2433 = vunpack.c.l.b16 %v2298
    %v2434 = vunpack.c.l.b16 %v2299
    %v2435 = vunpack.c.l.b16 %v2300
    %v2436 = vunpack.c.l.b16 %v2301
    %v2437 = vunpack.c.l.b16 %v2302
    %v2438 = vunpack.c.l.b16 %v2303
    %v2439 = vunpack.c.l.b16 %v2304
    %v2440 = vunpack.c.l.b16 %v2305
    %v2441 = vunpack.c.l.b16 %v2306
    %v2442 = vunpack.c.l.b16 %v2307
    %v2443 = vunpack.c.l.b16 %v2308
    %v2444 = vunpack.c.l.b16 %v2309
    %v2445 = vunpack.c.l.b16 %v2310
    %v2446 = vunpack.c.l.b16 %v2311
    %v2447 = vunpack.c.l.b16 %v2312
    %v2448 = vunpack.c.l.b16 %v2313
    %v2449 = vunpack.c.l.b16 %v2314
    %v2450 = vunpack.c.l.b16 %v2315
    %v2451 = vunpack.c.l.b16 %v2316
    %v2452 = vunpack.c.l.b16 %v2317
    %v2453 = vunpack.c.l.b16 %v2318
    %v2454 = vpack.c.b16 %v2391, %v2390
    %v2455 = vpack.c.b16 %v2393, %v2392
    %v2456 = vpack.c.b16 %v2395, %v2394
    %v2457 = vpack.c.b16 %v2397, %v2396
    %v2458 = vpack.c.b16 %v2399, %v2398
    %v2459 = vpack.c.b16 %v2401, %v2400
    %v2460 = vpack.c.b16 %v2403, %v2402
    %v2461 = vpack.c.b16 %v2405, %v2404
    %v2462 = vpack.c.b16 %v2407, %v2406
    %v2463 = vpack.c.b16 %v2409, %v2408
    %v2464 = vpack.c.b16 %v2411, %v2410
    %v2465 = vpack.c.b16 %v2413, %v2412
    %v2466 = vpack.c.b16 %v2415, %v2414
    %v2467 = vpack.c.b16 %v2417, %v2416
    %v2468 = vpack.c.b16 %v2419, %v2418
    %v2469 = vpack.c.b16 %v2421, %v2420
    %v2470 = vpack.c.b16 %v2423, %v2422
    %v2471 = vpack.c.b16 %v2425, %v2424
    %v2472 = vpack.c.b16 %v2427, %v2426
    %v2473 = vpack.c.b16 %v2429, %v2428
    %v2474 = vpack.c.b16 %v2431, %v2430
    %v2475 = vpack.c.b16 %v2433, %v2432
    %v2476 = vpack.c.b16 %v2435, %v2434
    %v2477 = vpack.c.b16 %v2437, %v2436
    %v2478 = vpack.c.b16 %v2439, %v2438
    %v2479 = vpack.c.b16 %v2441, %v2440
    %v2480 = vpack.c.b16 %v2443, %v2442
    %v2481 = vpack.c.b16 %v2445, %v2444
    %v2482 = vpack.c.b16 %v2447, %v2446
    %v2483 = vpack.c.b16 %v2449, %v2448
    %v2484 = vpack.c.b16 %v2451, %v2450
    %v2485 = vpack.c.b16 %v2453, %v2452
    %2518 = vmatprep.subr.bf16.mxu0 0
    %2519 = vmatpush1.bf16.msra.mxu0 %v2461
    %2520 = vmatprep.subr.bf16.mxu0 0
    %2521 = vmatpush1.bf16.msra.mxu0 %v2460
    %2522 = vmatprep.subr.bf16.mxu0 0
    %2523 = vmatpush1.bf16.msra.mxu0 %v2459
    %2524 = vmatprep.subr.bf16.mxu0 0
    %2525 = vmatpush1.bf16.msra.mxu0 %v2458
    %2526 = vmatprep.subr.bf16.mxu0 0
    %2527 = vmatpush1.bf16.msra.mxu0 %v2457
    %2528 = vmatprep.subr.bf16.mxu0 0
    %2529 = vmatpush1.bf16.msra.mxu0 %v2456
    %2530 = vmatprep.subr.bf16.mxu0 0
    %2531 = vmatpush1.bf16.msra.mxu0 %v2455
    %2532 = vmatprep.subr.bf16.mxu0 0
    %2533 = vmatpush1.bf16.msra.mxu0 %v2454
    %2534 = vmatprep.subr.bf16.mxu0 0
    %2535 = vmatpush2.bf16.msra.mxu0 %v2469
    %2536 = vmatprep.subr.bf16.mxu0 0
    %2537 = vmatpush2.bf16.msra.mxu0 %v2468
    %2538 = vmatprep.subr.bf16.mxu0 0
    %2539 = vmatpush2.bf16.msra.mxu0 %v2467
    %2540 = vmatprep.subr.bf16.mxu0 0
    %2541 = vmatpush2.bf16.msra.mxu0 %v2466
    %2542 = vmatprep.subr.bf16.mxu0 0
    %2543 = vmatpush2.bf16.msra.mxu0 %v2465
    %2544 = vmatprep.subr.bf16.mxu0 0
    %2545 = vmatpush2.bf16.msra.mxu0 %v2464
    %2546 = vmatprep.subr.bf16.mxu0 0
    %2547 = vmatpush2.bf16.msra.mxu0 %v2463
    %2548 = vmatprep.subr.bf16.mxu0 0
    %2549 = vmatpush2.bf16.msra.mxu0 %v2462
    %2550 = vmatprep.mubr.bf16.mxu0 %v2252
    %2551 = vmatmul.mubr.bf16.gmra.mxu0 %v2251
    %v2552 = vpop.f32.mrf.mxu0
    %v2553 = vadd.f32 %v2324, %v2552
    %v2554 = vpop.f32.mrf.mxu0
    %v2555 = vpop.f32.mrf.mxu0
    %v2556 = vadd.f32 %v2324, %v2555
    %v2557 = vpop.f32.mrf.mxu0
    %2558 = vdwg.mxu0
    %2559 = vmatprep.subr.bf16.mxu0 0
    %2560 = vmatpush1.bf16.msra.mxu0 %v2477
    %2561 = vmatprep.subr.bf16.mxu0 0
    %2562 = vmatpush1.bf16.msra.mxu0 %v2476
    %2563 = vmatprep.subr.bf16.mxu0 0
    %2564 = vmatpush1.bf16.msra.mxu0 %v2475
    %2565 = vmatprep.subr.bf16.mxu0 0
    %2566 = vmatpush1.bf16.msra.mxu0 %v2474
    %2567 = vmatprep.subr.bf16.mxu0 0
    %2568 = vmatpush1.bf16.msra.mxu0 %v2473
    %2569 = vmatprep.subr.bf16.mxu0 0
    %2570 = vmatpush1.bf16.msra.mxu0 %v2472
    %2571 = vmatprep.subr.bf16.mxu0 0
    %2572 = vmatpush1.bf16.msra.mxu0 %v2471
    %2573 = vmatprep.subr.bf16.mxu0 0
    %2574 = vmatpush1.bf16.msra.mxu0 %v2470
    %2575 = vmatprep.subr.bf16.mxu0 0
    %2576 = vmatpush2.bf16.msra.mxu0 %v2485
    %2577 = vmatprep.subr.bf16.mxu0 0
    %2578 = vmatpush2.bf16.msra.mxu0 %v2484
    %2579 = vmatprep.subr.bf16.mxu0 0
    %2580 = vmatpush2.bf16.msra.mxu0 %v2483
    %2581 = vmatprep.subr.bf16.mxu0 0
    %2582 = vmatpush2.bf16.msra.mxu0 %v2482
    %2583 = vmatprep.subr.bf16.mxu0 0
    %2584 = vmatpush2.bf16.msra.mxu0 %v2481
    %2585 = vmatprep.subr.bf16.mxu0 0
    %2586 = vmatpush2.bf16.msra.mxu0 %v2480
    %2587 = vmatprep.subr.bf16.mxu0 0
    %2588 = vmatpush2.bf16.msra.mxu0 %v2479
    %2589 = vmatprep.subr.bf16.mxu0 0
    %2590 = vmatpush2.bf16.msra.mxu0 %v2478
    %2591 = vmatprep.mubr.bf16.mxu0 %v2254
    %2592 = vmatmul.mubr.bf16.gmra.mxu0 %v2253
    %v2593 = vpop.f32.mrf.mxu0
    %v2594 = vadd.f32 %v2553, %v2593
    %v2595 = vpop.f32.mrf.mxu0
    %v2596 = vpop.f32.mrf.mxu0
    %v2597 = vadd.f32 %v2556, %v2596
    %v2598 = vpop.f32.mrf.mxu0
    %2599 = vdwg.mxu0
    %v2600 = vadd.f32 %v1836, %v2594
    %v2601 = vadd.f32 %v1837, %v2597
    %s2602 = scalar_lea.vmem %s2, 1
    %v2603 = vld [vmem:[%s2602] sm:$0x1]
    %s2604 = scalar_lea.vmem [#allocation7], 1
    %v2605 = vld [vmem:[%s2604] sm:$0x1]
    %2606 = vadd.xlane.f32.xlu0 %v2600
    %v2607 = vpop.xlane.xlu0 %2606
    %2608 = vadd.xlane.f32.xlu0 %v2601
    %v2609 = vpop.xlane.xlu0 %2608
    %v2610 = vmul.f32 %v2607, %v220
    %v2611 = vmul.f32 %v2609, %v220
    %v2612 = vsub.f32 %v2600, %v2610
    %v2613 = vsub.f32 %v2601, %v2611
    %v2614 = vmul.f32 %v2612, %v2612
    %v2615 = vmul.f32 %v2613, %v2613
    %2616 = vadd.xlane.f32.xlu0 %v2614
    %v2617 = vpop.xlane.xlu0 %2616
    %2618 = vadd.xlane.f32.xlu0 %v2615
    %v2619 = vpop.xlane.xlu0 %2618
    %v2620 = vmul.f32 %v2617, %v220
    %v2621 = vmul.f32 %v2619, %v220
    %v2622 = vadd.f32 %v2620, 1e-05
    %v2623 = vadd.f32 %v2621, 1e-05
    %v2624 = vrsqrt.pop %v2622
    %v2625 = vrsqrt.pop %v2623
    %v2626 = vmul.f32 %v2612, %v2624
    %v2627 = vmul.f32 %v2613, %v2625
    %v2629 = vlaneseq
    %v2630 = vshrl.u32 %v2629, 7
    %v2631 = vsub.s32 0, %v2630
    %v2632 = vrot.slane %v2603, %v2631
    %v2634 = vmul.f32 %v2626, %v2632
    %v2635 = vmul.f32 %v2627, %v2632
    %v2637 = vlaneseq
    %v2638 = vshrl.u32 %v2637, 7
    %v2639 = vsub.s32 0, %v2638
    %v2640 = vrot.slane %v2605, %v2639
    %v2642 = vadd.f32 %v2634, %v2640
    %v2643 = vadd.f32 %v2635, %v2640
    %v2644 = vpack.c.bf16 %v2643, %v2642
    %s2645 = scalar_lea.vmem [#allocation8], 192
    %v2646 = vld [vmem:[%s2645] sm:$0xff]
    %v2647 = vld [vmem:[%s2645 + $0x8] sm:$0xf]
    %v2648 = vld [vmem:[%s2645 + $0xc] sm:$0xff]
    %v2649 = vld [vmem:[%s2645 + $0x14] sm:$0xf]
    %v2650 = vld [vmem:[%s2645 + $0x18] sm:$0xff]
    %v2651 = vld [vmem:[%s2645 + $0x20] sm:$0xf]
    %v2652 = vld [vmem:[%s2645 + $0x24] sm:$0xff]
    %v2653 = vld [vmem:[%s2645 + $0x2c] sm:$0xf]
    %v2654 = vld [vmem:[%s2645 + $0x30] sm:$0xff]
    %v2655 = vld [vmem:[%s2645 + $0x38] sm:$0xf]
    %v2656 = vld [vmem:[%s2645 + $0x3c] sm:$0xff]
    %v2657 = vld [vmem:[%s2645 + $0x44] sm:$0xf]
    %v2658 = vld [vmem:[%s2645 + $0x48] sm:$0xff]
    %v2659 = vld [vmem:[%s2645 + $0x50] sm:$0xf]
    %v2660 = vld [vmem:[%s2645 + $0x54] sm:$0xff]
    %v2661 = vld [vmem:[%s2645 + $0x5c] sm:$0xf]
    %v2662 = vld [vmem:[%s2645 + $0x60] sm:$0xff]
    %v2663 = vld [vmem:[%s2645 + $0x68] sm:$0xf]
    %v2664 = vld [vmem:[%s2645 + $0x6c] sm:$0xff]
    %v2665 = vld [vmem:[%s2645 + $0x74] sm:$0xf]
    %v2666 = vld [vmem:[%s2645 + $0x78] sm:$0xff]
    %v2667 = vld [vmem:[%s2645 + $0x80] sm:$0xf]
    %v2668 = vld [vmem:[%s2645 + $0x84] sm:$0xff]
    %v2669 = vld [vmem:[%s2645 + $0x8c] sm:$0xf]
    %v2670 = vld [vmem:[%s2645 + $0x90] sm:$0xff]
    %v2671 = vld [vmem:[%s2645 + $0x98] sm:$0xf]
    %v2672 = vld [vmem:[%s2645 + $0x9c] sm:$0xff]
    %v2673 = vld [vmem:[%s2645 + $0xa4] sm:$0xf]
    %v2674 = vld [vmem:[%s2645 + $0xa8] sm:$0xff]
    %v2675 = vld [vmem:[%s2645 + $0xb0] sm:$0xf]
    %v2676 = vld [vmem:[%s2645 + $0xb4] sm:$0xff]
    %v2677 = vld [vmem:[%s2645 + $0xbc] sm:$0xf]
    %s2678 = scalar_lea.vmem %s5, 3
    %v2679 = vld [vmem:[%s2678] sm:$0x7]
    %v2681 = vlaneseq
    %v2682 = vshrl.u32 %v2681, 7
    %v2683 = vsub.s32 0, %v2682
    %v2684 = vrot.slane %v2679, %v2683
    %v2685 = vlaneseq
    %v2686 = vshrl.u32 %v2685, 7
    %v2687 = vsub.s32 1, %v2686
    %v2688 = vrot.slane %v2679, %v2687
    %v2689 = vlaneseq
    %v2690 = vshrl.u32 %v2689, 7
    %v2691 = vsub.s32 2, %v2690
    %v2692 = vrot.slane %v2679, %v2691
    %v2728 = vunpack.c.l.b16 %v2646
    %v2729 = vunpack.c.h.b16 %v2646
    %v2730 = vunpack.c.l.b16 %v2647
    %v2731 = vunpack.c.l.b16 %v2648
    %v2732 = vunpack.c.h.b16 %v2648
    %v2733 = vunpack.c.l.b16 %v2649
    %v2734 = vunpack.c.l.b16 %v2650
    %v2735 = vunpack.c.h.b16 %v2650
    %v2736 = vunpack.c.l.b16 %v2651
    %v2737 = vunpack.c.l.b16 %v2652
    %v2738 = vunpack.c.h.b16 %v2652
    %v2739 = vunpack.c.l.b16 %v2653
    %v2740 = vunpack.c.l.b16 %v2654
    %v2741 = vunpack.c.h.b16 %v2654
    %v2742 = vunpack.c.l.b16 %v2655
    %v2743 = vunpack.c.l.b16 %v2656
    %v2744 = vunpack.c.h.b16 %v2656
    %v2745 = vunpack.c.l.b16 %v2657
    %v2746 = vunpack.c.l.b16 %v2658
    %v2747 = vunpack.c.h.b16 %v2658
    %v2748 = vunpack.c.l.b16 %v2659
    %v2749 = vunpack.c.l.b16 %v2660
    %v2750 = vunpack.c.h.b16 %v2660
    %v2751 = vunpack.c.l.b16 %v2661
    %v2752 = vunpack.c.l.b16 %v2662
    %v2753 = vunpack.c.h.b16 %v2662
    %v2754 = vunpack.c.l.b16 %v2663
    %v2755 = vunpack.c.l.b16 %v2664
    %v2756 = vunpack.c.h.b16 %v2664
    %v2757 = vunpack.c.l.b16 %v2665
    %v2758 = vunpack.c.l.b16 %v2666
    %v2759 = vunpack.c.h.b16 %v2666
    %v2760 = vunpack.c.l.b16 %v2667
    %v2761 = vunpack.c.l.b16 %v2668
    %v2762 = vunpack.c.h.b16 %v2668
    %v2763 = vunpack.c.l.b16 %v2669
    %v2764 = vunpack.c.l.b16 %v2670
    %v2765 = vunpack.c.h.b16 %v2670
    %v2766 = vunpack.c.l.b16 %v2671
    %v2767 = vunpack.c.l.b16 %v2672
    %v2768 = vunpack.c.h.b16 %v2672
    %v2769 = vunpack.c.l.b16 %v2673
    %v2770 = vunpack.c.l.b16 %v2674
    %v2771 = vunpack.c.h.b16 %v2674
    %v2772 = vunpack.c.l.b16 %v2675
    %v2773 = vunpack.c.l.b16 %v2676
    %v2774 = vunpack.c.h.b16 %v2676
    %v2775 = vunpack.c.l.b16 %v2677
    %v2776 = vpack.c.b16 %v2731, %v2728
    %v2777 = vpack.c.b16 %v2732, %v2729
    %v2778 = vpack.c.b16 %v2733, %v2730
    %v2779 = vpack.c.b16 %v2737, %v2734
    %v2780 = vpack.c.b16 %v2738, %v2735
    %v2781 = vpack.c.b16 %v2739, %v2736
    %v2782 = vpack.c.b16 %v2743, %v2740
    %v2783 = vpack.c.b16 %v2744, %v2741
    %v2784 = vpack.c.b16 %v2745, %v2742
    %v2785 = vpack.c.b16 %v2749, %v2746
    %v2786 = vpack.c.b16 %v2750, %v2747
    %v2787 = vpack.c.b16 %v2751, %v2748
    %v2788 = vpack.c.b16 %v2755, %v2752
    %v2789 = vpack.c.b16 %v2756, %v2753
    %v2790 = vpack.c.b16 %v2757, %v2754
    %v2791 = vpack.c.b16 %v2761, %v2758
    %v2792 = vpack.c.b16 %v2762, %v2759
    %v2793 = vpack.c.b16 %v2763, %v2760
    %v2794 = vpack.c.b16 %v2767, %v2764
    %v2795 = vpack.c.b16 %v2768, %v2765
    %v2796 = vpack.c.b16 %v2769, %v2766
    %v2797 = vpack.c.b16 %v2773, %v2770
    %v2798 = vpack.c.b16 %v2774, %v2771
    %v2799 = vpack.c.b16 %v2775, %v2772
    %2824 = vmatprep.subr.bf16.mxu0 %v2798
    %2825 = vmatpush1.bf16.msra.mxu0 %v2797
    %2826 = vmatprep.subr.bf16.mxu0 %v2795
    %2827 = vmatpush1.bf16.msra.mxu0 %v2794
    %2828 = vmatprep.subr.bf16.mxu0 %v2792
    %2829 = vmatpush1.bf16.msra.mxu0 %v2791
    %2830 = vmatprep.subr.bf16.mxu0 %v2789
    %2831 = vmatpush1.bf16.msra.mxu0 %v2788
    %2832 = vmatprep.subr.bf16.mxu0 %v2786
    %2833 = vmatpush1.bf16.msra.mxu0 %v2785
    %2834 = vmatprep.subr.bf16.mxu0 %v2783
    %2835 = vmatpush1.bf16.msra.mxu0 %v2782
    %2836 = vmatprep.subr.bf16.mxu0 %v2780
    %2837 = vmatpush1.bf16.msra.mxu0 %v2779
    %2838 = vmatprep.subr.bf16.mxu0 %v2777
    %2839 = vmatpush1.bf16.msra.mxu0 %v2776
    %2840 = vmatprep.subr.bf16.mxu0 0
    %2841 = vmatpush2.bf16.msra.mxu0 0
    %2842 = vmatprep.subr.bf16.mxu0 0
    %2843 = vmatpush2.bf16.msra.mxu0 0
    %2844 = vmatprep.subr.bf16.mxu0 0
    %2845 = vmatpush2.bf16.msra.mxu0 0
    %2846 = vmatprep.subr.bf16.mxu0 0
    %2847 = vmatpush2.bf16.msra.mxu0 0
    %2848 = vmatprep.subr.bf16.mxu0 0
    %2849 = vmatpush2.bf16.msra.mxu0 0
    %2850 = vmatprep.subr.bf16.mxu0 0
    %2851 = vmatpush2.bf16.msra.mxu0 0
    %2852 = vmatprep.subr.bf16.mxu0 0
    %2853 = vmatpush2.bf16.msra.mxu0 0
    %2854 = vmatprep.subr.bf16.mxu0 0
    %2855 = vmatpush2.bf16.msra.mxu0 0
    %2856 = vmatprep.mubr.bf16.mxu0 0
    %2857 = vmatmul.mubr.bf16.gmra.mxu0 %v2644
    %v2858 = vpop.f32.mrf.mxu0
    %v2859 = vadd.f32 %v2684, %v2858
    %v2860 = vpop.f32.mrf.mxu0
    %v2861 = vadd.f32 %v2688, %v2860
    %v2862 = vpop.f32.mrf.mxu0
    %v2863 = vadd.f32 %v2684, %v2862
    %v2864 = vpop.f32.mrf.mxu0
    %v2865 = vadd.f32 %v2688, %v2864
    %2866 = vdwg.mxu0
    %2867 = vmatprep.subr.bf16.mxu0 0
    %2868 = vmatpush1.bf16.msra.mxu0 %v2799
    %2869 = vmatprep.subr.bf16.mxu0 0
    %2870 = vmatpush1.bf16.msra.mxu0 %v2796
    %2871 = vmatprep.subr.bf16.mxu0 0
    %2872 = vmatpush1.bf16.msra.mxu0 %v2793
    %2873 = vmatprep.subr.bf16.mxu0 0
    %2874 = vmatpush1.bf16.msra.mxu0 %v2790
    %2875 = vmatprep.subr.bf16.mxu0 0
    %2876 = vmatpush1.bf16.msra.mxu0 %v2787
    %2877 = vmatprep.subr.bf16.mxu0 0
    %2878 = vmatpush1.bf16.msra.mxu0 %v2784
    %2879 = vmatprep.subr.bf16.mxu0 0
    %2880 = vmatpush1.bf16.msra.mxu0 %v2781
    %2881 = vmatprep.subr.bf16.mxu0 0
    %2882 = vmatpush1.bf16.msra.mxu0 %v2778
    %2883 = vmatprep.subr.bf16.mxu0 0
    %2884 = vmatpush2.bf16.msra.mxu0 0
    %2885 = vmatprep.subr.bf16.mxu0 0
    %2886 = vmatpush2.bf16.msra.mxu0 0
    %2887 = vmatprep.subr.bf16.mxu0 0
    %2888 = vmatpush2.bf16.msra.mxu0 0
    %2889 = vmatprep.subr.bf16.mxu0 0
    %2890 = vmatpush2.bf16.msra.mxu0 0
    %2891 = vmatprep.subr.bf16.mxu0 0
    %2892 = vmatpush2.bf16.msra.mxu0 0
    %2893 = vmatprep.subr.bf16.mxu0 0
    %2894 = vmatpush2.bf16.msra.mxu0 0
    %2895 = vmatprep.subr.bf16.mxu0 0
    %2896 = vmatpush2.bf16.msra.mxu0 0
    %2897 = vmatprep.subr.bf16.mxu0 0
    %2898 = vmatpush2.bf16.msra.mxu0 0
    %2899 = vmatprep.mubr.bf16.mxu0 0
    %2900 = vmatmul.mubr.bf16.gmra.mxu0 %v2644
    %v2901 = vpop.f32.mrf.mxu0
    %v2902 = vadd.f32 %v2692, %v2901
    %v2903 = vpop.f32.mrf.mxu0
    %v2904 = vpop.f32.mrf.mxu0
    %v2905 = vadd.f32 %v2692, %v2904
    %v2906 = vpop.f32.mrf.mxu0
    %2907 = vdwg.mxu0
    %2910 = vrot.lane.b32.xlu0 %v2859, 64
    %v2911 = vpop.permute.xlu0 %2910
    %2912 = vrot.lane.b32.xlu0 %v2863, 64
    %v2913 = vpop.permute.xlu0 %2912
    %v2916 = vcombine.high %v2859, 0.0
    %v2918 = vunpack.c.l.s4 1983009808
    %v2919 = vunpack.c.0.s8 %v2918
    %v2920 = vlaneseq
    %v2921 = vshrl.u32 %v2920, 7
    %v2922 = vsub.s32 %v2919, %v2921
    %v2923 = vrot.slane %v2859, %v2922
    %v2925 = vunpack.c.l.s4 1983009808
    %v2926 = vunpack.c.0.s8 %v2925
    %v2927 = vlaneseq
    %v2928 = vshrl.u32 %v2927, 7
    %v2929 = vsub.s32 %v2926, %v2928
    %v2930 = vrot.slane %v2916, %v2929
    %v2931 = vcombine.high %v2911, 0.0
    %v2933 = vunpack.c.l.s4 1983009808
    %v2934 = vunpack.c.0.s8 %v2933
    %v2935 = vlaneseq
    %v2936 = vshrl.u32 %v2935, 7
    %v2937 = vsub.s32 %v2934, %v2936
    %v2938 = vrot.slane %v2911, %v2937
    %v2940 = vunpack.c.l.s4 1983009808
    %v2941 = vunpack.c.0.s8 %v2940
    %v2942 = vlaneseq
    %v2943 = vshrl.u32 %v2942, 7
    %v2944 = vsub.s32 %v2941, %v2943
    %v2945 = vrot.slane %v2931, %v2944
    %v2946 = vcombine.low %v2923, %v2938
    %v2947 = vcombine.high %v2923, %v2938
    %v2949 = vunpack.c.l.s4 1934713408
    %v2950 = vunpack.c.0.s8 %v2949
    %v2951 = vlaneseq
    %v2952 = vshrl.u32 %v2951, 7
    %v2953 = vsub.s32 %v2950, %v2952
    %v2954 = vrot.slane %v2946, %v2953
    %v2956 = vunpack.c.l.s4 1934713408
    %v2957 = vunpack.c.0.s8 %v2956
    %v2958 = vlaneseq
    %v2959 = vshrl.u32 %v2958, 7
    %v2960 = vsub.s32 %v2957, %v2959
    %v2961 = vrot.slane %v2947, %v2960
    %v2962 = vcombine.low %v2930, %v2945
    %v2963 = vcombine.high %v2930, %v2945
    %v2965 = vunpack.c.l.s4 1934713408
    %v2966 = vunpack.c.0.s8 %v2965
    %v2967 = vlaneseq
    %v2968 = vshrl.u32 %v2967, 7
    %v2969 = vsub.s32 %v2966, %v2968
    %v2970 = vrot.slane %v2962, %v2969
    %v2972 = vunpack.c.l.s4 1934713408
    %v2973 = vunpack.c.0.s8 %v2972
    %v2974 = vlaneseq
    %v2975 = vshrl.u32 %v2974, 7
    %v2976 = vsub.s32 %v2973, %v2975
    %v2977 = vrot.slane %v2963, %v2976
    %v2978 = vcombine.high %v2954, 0.0
    %v2979 = vcombine.high %v2961, 0.0
    %v2980 = vcombine.high %v2970, 0.0
    %v2981 = vcombine.high %v2977, 0.0
    %v2982 = vcombine.high %v2863, 0.0
    %v2984 = vunpack.c.l.s4 1983009808
    %v2985 = vunpack.c.0.s8 %v2984
    %v2986 = vlaneseq
    %v2987 = vshrl.u32 %v2986, 7
    %v2988 = vsub.s32 %v2985, %v2987
    %v2989 = vrot.slane %v2863, %v2988
    %v2991 = vunpack.c.l.s4 1983009808
    %v2992 = vunpack.c.0.s8 %v2991
    %v2993 = vlaneseq
    %v2994 = vshrl.u32 %v2993, 7
    %v2995 = vsub.s32 %v2992, %v2994
    %v2996 = vrot.slane %v2982, %v2995
    %v2997 = vcombine.high %v2913, 0.0
    %v2999 = vunpack.c.l.s4 1983009808
    %v3000 = vunpack.c.0.s8 %v2999
    %v3001 = vlaneseq
    %v3002 = vshrl.u32 %v3001, 7
    %v3003 = vsub.s32 %v3000, %v3002
    %v3004 = vrot.slane %v2913, %v3003
    %v3006 = vunpack.c.l.s4 1983009808
    %v3007 = vunpack.c.0.s8 %v3006
    %v3008 = vlaneseq
    %v3009 = vshrl.u32 %v3008, 7
    %v3010 = vsub.s32 %v3007, %v3009
    %v3011 = vrot.slane %v2997, %v3010
    %v3012 = vcombine.low %v2989, %v3004
    %v3013 = vcombine.high %v2989, %v3004
    %v3015 = vunpack.c.l.s4 1934713408
    %v3016 = vunpack.c.0.s8 %v3015
    %v3017 = vlaneseq
    %v3018 = vshrl.u32 %v3017, 7
    %v3019 = vsub.s32 %v3016, %v3018
    %v3020 = vrot.slane %v3012, %v3019
    %v3022 = vunpack.c.l.s4 1934713408
    %v3023 = vunpack.c.0.s8 %v3022
    %v3024 = vlaneseq
    %v3025 = vshrl.u32 %v3024, 7
    %v3026 = vsub.s32 %v3023, %v3025
    %v3027 = vrot.slane %v3013, %v3026
    %v3028 = vcombine.low %v2996, %v3011
    %v3029 = vcombine.high %v2996, %v3011
    %v3031 = vunpack.c.l.s4 1934713408
    %v3032 = vunpack.c.0.s8 %v3031
    %v3033 = vlaneseq
    %v3034 = vshrl.u32 %v3033, 7
    %v3035 = vsub.s32 %v3032, %v3034
    %v3036 = vrot.slane %v3028, %v3035
    %v3038 = vunpack.c.l.s4 1934713408
    %v3039 = vunpack.c.0.s8 %v3038
    %v3040 = vlaneseq
    %v3041 = vshrl.u32 %v3040, 7
    %v3042 = vsub.s32 %v3039, %v3041
    %v3043 = vrot.slane %v3029, %v3042
    %v3044 = vcombine.high %v3020, 0.0
    %v3045 = vcombine.high %v3027, 0.0
    %v3046 = vcombine.high %v3036, 0.0
    %v3047 = vcombine.high %v3043, 0.0
    %v3048 = vcombine.low %v2954, %v2961
    %v3050 = vunpack.c.l.s4 1983009808
    %v3051 = vunpack.c.0.s8 %v3050
    %v3052 = vlaneseq
    %v3053 = vshrl.u32 %v3052, 7
    %v3054 = vsub.s32 %v3051, %v3053
    %v3055 = vrot.slane %v3048, %v3054
    %v3056 = vcombine.low %v2978, %v2979
    %v3058 = vunpack.c.l.s4 1983009808
    %v3059 = vunpack.c.0.s8 %v3058
    %v3060 = vlaneseq
    %v3061 = vshrl.u32 %v3060, 7
    %v3062 = vsub.s32 %v3059, %v3061
    %v3063 = vrot.slane %v3056, %v3062
    %v3064 = vcombine.low %v2970, %v2977
    %v3066 = vunpack.c.l.s4 1983009808
    %v3067 = vunpack.c.0.s8 %v3066
    %v3068 = vlaneseq
    %v3069 = vshrl.u32 %v3068, 7
    %v3070 = vsub.s32 %v3067, %v3069
    %v3071 = vrot.slane %v3064, %v3070
    %v3072 = vcombine.low %v2980, %v2981
    %v3074 = vunpack.c.l.s4 1983009808
    %v3075 = vunpack.c.0.s8 %v3074
    %v3076 = vlaneseq
    %v3077 = vshrl.u32 %v3076, 7
    %v3078 = vsub.s32 %v3075, %v3077
    %v3079 = vrot.slane %v3072, %v3078
    %v3080 = vcombine.low %v3055, %v3063
    %v3082 = vunpack.c.l.s4 1934713408
    %v3083 = vunpack.c.0.s8 %v3082
    %v3084 = vlaneseq
    %v3085 = vshrl.u32 %v3084, 7
    %v3086 = vsub.s32 %v3083, %v3085
    %v3087 = vrot.slane %v3080, %v3086
    %v3088 = vcombine.low %v3071, %v3079
    %v3090 = vunpack.c.l.s4 1934713408
    %v3091 = vunpack.c.0.s8 %v3090
    %v3092 = vlaneseq
    %v3093 = vshrl.u32 %v3092, 7
    %v3094 = vsub.s32 %v3091, %v3093
    %v3095 = vrot.slane %v3088, %v3094
    %v3096 = vcombine.low %v3087, %v3095
    %v3097 = vcombine.high %v3087, %v3095
    %v3098 = vcombine.low %v3020, %v3027
    %v3100 = vunpack.c.l.s4 1983009808
    %v3101 = vunpack.c.0.s8 %v3100
    %v3102 = vlaneseq
    %v3103 = vshrl.u32 %v3102, 7
    %v3104 = vsub.s32 %v3101, %v3103
    %v3105 = vrot.slane %v3098, %v3104
    %v3106 = vcombine.low %v3044, %v3045
    %v3108 = vunpack.c.l.s4 1983009808
    %v3109 = vunpack.c.0.s8 %v3108
    %v3110 = vlaneseq
    %v3111 = vshrl.u32 %v3110, 7
    %v3112 = vsub.s32 %v3109, %v3111
    %v3113 = vrot.slane %v3106, %v3112
    %v3114 = vcombine.low %v3036, %v3043
    %v3116 = vunpack.c.l.s4 1983009808
    %v3117 = vunpack.c.0.s8 %v3116
    %v3118 = vlaneseq
    %v3119 = vshrl.u32 %v3118, 7
    %v3120 = vsub.s32 %v3117, %v3119
    %v3121 = vrot.slane %v3114, %v3120
    %v3122 = vcombine.low %v3046, %v3047
    %v3124 = vunpack.c.l.s4 1983009808
    %v3125 = vunpack.c.0.s8 %v3124
    %v3126 = vlaneseq
    %v3127 = vshrl.u32 %v3126, 7
    %v3128 = vsub.s32 %v3125, %v3127
    %v3129 = vrot.slane %v3122, %v3128
    %v3130 = vcombine.low %v3105, %v3113
    %v3132 = vunpack.c.l.s4 1934713408
    %v3133 = vunpack.c.0.s8 %v3132
    %v3134 = vlaneseq
    %v3135 = vshrl.u32 %v3134, 7
    %v3136 = vsub.s32 %v3133, %v3135
    %v3137 = vrot.slane %v3130, %v3136
    %v3138 = vcombine.low %v3121, %v3129
    %v3140 = vunpack.c.l.s4 1934713408
    %v3141 = vunpack.c.0.s8 %v3140
    %v3142 = vlaneseq
    %v3143 = vshrl.u32 %v3142, 7
    %v3144 = vsub.s32 %v3141, %v3143
    %v3145 = vrot.slane %v3138, %v3144
    %v3146 = vcombine.low %v3137, %v3145
    %v3147 = vcombine.high %v3137, %v3145
    %3150 = vrot.lane.b32.xlu0 %v2861, 64
    %v3151 = vpop.permute.xlu0 %3150
    %3152 = vrot.lane.b32.xlu0 %v2865, 64
    %v3153 = vpop.permute.xlu0 %3152
    %v3156 = vcombine.high %v2861, 0.0
    %v3158 = vunpack.c.l.s4 1983009808
    %v3159 = vunpack.c.0.s8 %v3158
    %v3160 = vlaneseq
    %v3161 = vshrl.u32 %v3160, 7
    %v3162 = vsub.s32 %v3159, %v3161
    %v3163 = vrot.slane %v2861, %v3162
    %v3165 = vunpack.c.l.s4 1983009808
    %v3166 = vunpack.c.0.s8 %v3165
    %v3167 = vlaneseq
    %v3168 = vshrl.u32 %v3167, 7
    %v3169 = vsub.s32 %v3166, %v3168
    %v3170 = vrot.slane %v3156, %v3169
    %v3171 = vcombine.high %v3151, 0.0
    %v3173 = vunpack.c.l.s4 1983009808
    %v3174 = vunpack.c.0.s8 %v3173
    %v3175 = vlaneseq
    %v3176 = vshrl.u32 %v3175, 7
    %v3177 = vsub.s32 %v3174, %v3176
    %v3178 = vrot.slane %v3151, %v3177
    %v3180 = vunpack.c.l.s4 1983009808
    %v3181 = vunpack.c.0.s8 %v3180
    %v3182 = vlaneseq
    %v3183 = vshrl.u32 %v3182, 7
    %v3184 = vsub.s32 %v3181, %v3183
    %v3185 = vrot.slane %v3171, %v3184
    %v3186 = vcombine.low %v3163, %v3178
    %v3187 = vcombine.high %v3163, %v3178
    %v3189 = vunpack.c.l.s4 1934713408
    %v3190 = vunpack.c.0.s8 %v3189
    %v3191 = vlaneseq
    %v3192 = vshrl.u32 %v3191, 7
    %v3193 = vsub.s32 %v3190, %v3192
    %v3194 = vrot.slane %v3186, %v3193
    %v3196 = vunpack.c.l.s4 1934713408
    %v3197 = vunpack.c.0.s8 %v3196
    %v3198 = vlaneseq
    %v3199 = vshrl.u32 %v3198, 7
    %v3200 = vsub.s32 %v3197, %v3199
    %v3201 = vrot.slane %v3187, %v3200
    %v3202 = vcombine.low %v3170, %v3185
    %v3203 = vcombine.high %v3170, %v3185
    %v3205 = vunpack.c.l.s4 1934713408
    %v3206 = vunpack.c.0.s8 %v3205
    %v3207 = vlaneseq
    %v3208 = vshrl.u32 %v3207, 7
    %v3209 = vsub.s32 %v3206, %v3208
    %v3210 = vrot.slane %v3202, %v3209
    %v3212 = vunpack.c.l.s4 1934713408
    %v3213 = vunpack.c.0.s8 %v3212
    %v3214 = vlaneseq
    %v3215 = vshrl.u32 %v3214, 7
    %v3216 = vsub.s32 %v3213, %v3215
    %v3217 = vrot.slane %v3203, %v3216
    %v3218 = vcombine.high %v3194, 0.0
    %v3219 = vcombine.high %v3201, 0.0
    %v3220 = vcombine.high %v3210, 0.0
    %v3221 = vcombine.high %v3217, 0.0
    %v3222 = vcombine.high %v2865, 0.0
    %v3224 = vunpack.c.l.s4 1983009808
    %v3225 = vunpack.c.0.s8 %v3224
    %v3226 = vlaneseq
    %v3227 = vshrl.u32 %v3226, 7
    %v3228 = vsub.s32 %v3225, %v3227
    %v3229 = vrot.slane %v2865, %v3228
    %v3231 = vunpack.c.l.s4 1983009808
    %v3232 = vunpack.c.0.s8 %v3231
    %v3233 = vlaneseq
    %v3234 = vshrl.u32 %v3233, 7
    %v3235 = vsub.s32 %v3232, %v3234
    %v3236 = vrot.slane %v3222, %v3235
    %v3237 = vcombine.high %v3153, 0.0
    %v3239 = vunpack.c.l.s4 1983009808
    %v3240 = vunpack.c.0.s8 %v3239
    %v3241 = vlaneseq
    %v3242 = vshrl.u32 %v3241, 7
    %v3243 = vsub.s32 %v3240, %v3242
    %v3244 = vrot.slane %v3153, %v3243
    %v3246 = vunpack.c.l.s4 1983009808
    %v3247 = vunpack.c.0.s8 %v3246
    %v3248 = vlaneseq
    %v3249 = vshrl.u32 %v3248, 7
    %v3250 = vsub.s32 %v3247, %v3249
    %v3251 = vrot.slane %v3237, %v3250
    %v3252 = vcombine.low %v3229, %v3244
    %v3253 = vcombine.high %v3229, %v3244
    %v3255 = vunpack.c.l.s4 1934713408
    %v3256 = vunpack.c.0.s8 %v3255
    %v3257 = vlaneseq
    %v3258 = vshrl.u32 %v3257, 7
    %v3259 = vsub.s32 %v3256, %v3258
    %v3260 = vrot.slane %v3252, %v3259
    %v3262 = vunpack.c.l.s4 1934713408
    %v3263 = vunpack.c.0.s8 %v3262
    %v3264 = vlaneseq
    %v3265 = vshrl.u32 %v3264, 7
    %v3266 = vsub.s32 %v3263, %v3265
    %v3267 = vrot.slane %v3253, %v3266
    %v3268 = vcombine.low %v3236, %v3251
    %v3269 = vcombine.high %v3236, %v3251
    %v3271 = vunpack.c.l.s4 1934713408
    %v3272 = vunpack.c.0.s8 %v3271
    %v3273 = vlaneseq
    %v3274 = vshrl.u32 %v3273, 7
    %v3275 = vsub.s32 %v3272, %v3274
    %v3276 = vrot.slane %v3268, %v3275
    %v3278 = vunpack.c.l.s4 1934713408
    %v3279 = vunpack.c.0.s8 %v3278
    %v3280 = vlaneseq
    %v3281 = vshrl.u32 %v3280, 7
    %v3282 = vsub.s32 %v3279, %v3281
    %v3283 = vrot.slane %v3269, %v3282
    %v3284 = vcombine.high %v3260, 0.0
    %v3285 = vcombine.high %v3267, 0.0
    %v3286 = vcombine.high %v3276, 0.0
    %v3287 = vcombine.high %v3283, 0.0
    %v3288 = vcombine.low %v3194, %v3201
    %v3290 = vunpack.c.l.s4 1983009808
    %v3291 = vunpack.c.0.s8 %v3290
    %v3292 = vlaneseq
    %v3293 = vshrl.u32 %v3292, 7
    %v3294 = vsub.s32 %v3291, %v3293
    %v3295 = vrot.slane %v3288, %v3294
    %v3296 = vcombine.low %v3218, %v3219
    %v3298 = vunpack.c.l.s4 1983009808
    %v3299 = vunpack.c.0.s8 %v3298
    %v3300 = vlaneseq
    %v3301 = vshrl.u32 %v3300, 7
    %v3302 = vsub.s32 %v3299, %v3301
    %v3303 = vrot.slane %v3296, %v3302
    %v3304 = vcombine.low %v3210, %v3217
    %v3306 = vunpack.c.l.s4 1983009808
    %v3307 = vunpack.c.0.s8 %v3306
    %v3308 = vlaneseq
    %v3309 = vshrl.u32 %v3308, 7
    %v3310 = vsub.s32 %v3307, %v3309
    %v3311 = vrot.slane %v3304, %v3310
    %v3312 = vcombine.low %v3220, %v3221
    %v3314 = vunpack.c.l.s4 1983009808
    %v3315 = vunpack.c.0.s8 %v3314
    %v3316 = vlaneseq
    %v3317 = vshrl.u32 %v3316, 7
    %v3318 = vsub.s32 %v3315, %v3317
    %v3319 = vrot.slane %v3312, %v3318
    %v3320 = vcombine.low %v3295, %v3303
    %v3322 = vunpack.c.l.s4 1934713408
    %v3323 = vunpack.c.0.s8 %v3322
    %v3324 = vlaneseq
    %v3325 = vshrl.u32 %v3324, 7
    %v3326 = vsub.s32 %v3323, %v3325
    %v3327 = vrot.slane %v3320, %v3326
    %v3328 = vcombine.low %v3311, %v3319
    %v3330 = vunpack.c.l.s4 1934713408
    %v3331 = vunpack.c.0.s8 %v3330
    %v3332 = vlaneseq
    %v3333 = vshrl.u32 %v3332, 7
    %v3334 = vsub.s32 %v3331, %v3333
    %v3335 = vrot.slane %v3328, %v3334
    %v3336 = vcombine.low %v3327, %v3335
    %v3337 = vcombine.high %v3327, %v3335
    %v3338 = vcombine.low %v3260, %v3267
    %v3340 = vunpack.c.l.s4 1983009808
    %v3341 = vunpack.c.0.s8 %v3340
    %v3342 = vlaneseq
    %v3343 = vshrl.u32 %v3342, 7
    %v3344 = vsub.s32 %v3341, %v3343
    %v3345 = vrot.slane %v3338, %v3344
    %v3346 = vcombine.low %v3284, %v3285
    %v3348 = vunpack.c.l.s4 1983009808
    %v3349 = vunpack.c.0.s8 %v3348
    %v3350 = vlaneseq
    %v3351 = vshrl.u32 %v3350, 7
    %v3352 = vsub.s32 %v3349, %v3351
    %v3353 = vrot.slane %v3346, %v3352
    %v3354 = vcombine.low %v3276, %v3283
    %v3356 = vunpack.c.l.s4 1983009808
    %v3357 = vunpack.c.0.s8 %v3356
    %v3358 = vlaneseq
    %v3359 = vshrl.u32 %v3358, 7
    %v3360 = vsub.s32 %v3357, %v3359
    %v3361 = vrot.slane %v3354, %v3360
    %v3362 = vcombine.low %v3286, %v3287
    %v3364 = vunpack.c.l.s4 1983009808
    %v3365 = vunpack.c.0.s8 %v3364
    %v3366 = vlaneseq
    %v3367 = vshrl.u32 %v3366, 7
    %v3368 = vsub.s32 %v3365, %v3367
    %v3369 = vrot.slane %v3362, %v3368
    %v3370 = vcombine.low %v3345, %v3353
    %v3372 = vunpack.c.l.s4 1934713408
    %v3373 = vunpack.c.0.s8 %v3372
    %v3374 = vlaneseq
    %v3375 = vshrl.u32 %v3374, 7
    %v3376 = vsub.s32 %v3373, %v3375
    %v3377 = vrot.slane %v3370, %v3376
    %v3378 = vcombine.low %v3361, %v3369
    %v3380 = vunpack.c.l.s4 1934713408
    %v3381 = vunpack.c.0.s8 %v3380
    %v3382 = vlaneseq
    %v3383 = vshrl.u32 %v3382, 7
    %v3384 = vsub.s32 %v3381, %v3383
    %v3385 = vrot.slane %v3378, %v3384
    %v3386 = vcombine.low %v3377, %v3385
    %v3387 = vcombine.high %v3377, %v3385
    %3390 = vrot.lane.b32.xlu0 %v2902, 64
    %v3391 = vpop.permute.xlu0 %3390
    %3392 = vrot.lane.b32.xlu0 %v2905, 64
    %v3393 = vpop.permute.xlu0 %3392
    %v3396 = vcombine.high %v2902, 0.0
    %v3398 = vunpack.c.l.s4 1983009808
    %v3399 = vunpack.c.0.s8 %v3398
    %v3400 = vlaneseq
    %v3401 = vshrl.u32 %v3400, 7
    %v3402 = vsub.s32 %v3399, %v3401
    %v3403 = vrot.slane %v2902, %v3402
    %v3405 = vunpack.c.l.s4 1983009808
    %v3406 = vunpack.c.0.s8 %v3405
    %v3407 = vlaneseq
    %v3408 = vshrl.u32 %v3407, 7
    %v3409 = vsub.s32 %v3406, %v3408
    %v3410 = vrot.slane %v3396, %v3409
    %v3411 = vcombine.high %v3391, 0.0
    %v3413 = vunpack.c.l.s4 1983009808
    %v3414 = vunpack.c.0.s8 %v3413
    %v3415 = vlaneseq
    %v3416 = vshrl.u32 %v3415, 7
    %v3417 = vsub.s32 %v3414, %v3416
    %v3418 = vrot.slane %v3391, %v3417
    %v3420 = vunpack.c.l.s4 1983009808
    %v3421 = vunpack.c.0.s8 %v3420
    %v3422 = vlaneseq
    %v3423 = vshrl.u32 %v3422, 7
    %v3424 = vsub.s32 %v3421, %v3423
    %v3425 = vrot.slane %v3411, %v3424
    %v3426 = vcombine.low %v3403, %v3418
    %v3427 = vcombine.high %v3403, %v3418
    %v3429 = vunpack.c.l.s4 1934713408
    %v3430 = vunpack.c.0.s8 %v3429
    %v3431 = vlaneseq
    %v3432 = vshrl.u32 %v3431, 7
    %v3433 = vsub.s32 %v3430, %v3432
    %v3434 = vrot.slane %v3426, %v3433
    %v3436 = vunpack.c.l.s4 1934713408
    %v3437 = vunpack.c.0.s8 %v3436
    %v3438 = vlaneseq
    %v3439 = vshrl.u32 %v3438, 7
    %v3440 = vsub.s32 %v3437, %v3439
    %v3441 = vrot.slane %v3427, %v3440
    %v3442 = vcombine.low %v3410, %v3425
    %v3443 = vcombine.high %v3410, %v3425
    %v3445 = vunpack.c.l.s4 1934713408
    %v3446 = vunpack.c.0.s8 %v3445
    %v3447 = vlaneseq
    %v3448 = vshrl.u32 %v3447, 7
    %v3449 = vsub.s32 %v3446, %v3448
    %v3450 = vrot.slane %v3442, %v3449
    %v3452 = vunpack.c.l.s4 1934713408
    %v3453 = vunpack.c.0.s8 %v3452
    %v3454 = vlaneseq
    %v3455 = vshrl.u32 %v3454, 7
    %v3456 = vsub.s32 %v3453, %v3455
    %v3457 = vrot.slane %v3443, %v3456
    %v3458 = vcombine.high %v3434, 0.0
    %v3459 = vcombine.high %v3441, 0.0
    %v3460 = vcombine.high %v3450, 0.0
    %v3461 = vcombine.high %v3457, 0.0
    %v3462 = vcombine.high %v2905, 0.0
    %v3464 = vunpack.c.l.s4 1983009808
    %v3465 = vunpack.c.0.s8 %v3464
    %v3466 = vlaneseq
    %v3467 = vshrl.u32 %v3466, 7
    %v3468 = vsub.s32 %v3465, %v3467
    %v3469 = vrot.slane %v2905, %v3468
    %v3471 = vunpack.c.l.s4 1983009808
    %v3472 = vunpack.c.0.s8 %v3471
    %v3473 = vlaneseq
    %v3474 = vshrl.u32 %v3473, 7
    %v3475 = vsub.s32 %v3472, %v3474
    %v3476 = vrot.slane %v3462, %v3475
    %v3477 = vcombine.high %v3393, 0.0
    %v3479 = vunpack.c.l.s4 1983009808
    %v3480 = vunpack.c.0.s8 %v3479
    %v3481 = vlaneseq
    %v3482 = vshrl.u32 %v3481, 7
    %v3483 = vsub.s32 %v3480, %v3482
    %v3484 = vrot.slane %v3393, %v3483
    %v3486 = vunpack.c.l.s4 1983009808
    %v3487 = vunpack.c.0.s8 %v3486
    %v3488 = vlaneseq
    %v3489 = vshrl.u32 %v3488, 7
    %v3490 = vsub.s32 %v3487, %v3489
    %v3491 = vrot.slane %v3477, %v3490
    %v3492 = vcombine.low %v3469, %v3484
    %v3493 = vcombine.high %v3469, %v3484
    %v3495 = vunpack.c.l.s4 1934713408
    %v3496 = vunpack.c.0.s8 %v3495
    %v3497 = vlaneseq
    %v3498 = vshrl.u32 %v3497, 7
    %v3499 = vsub.s32 %v3496, %v3498
    %v3500 = vrot.slane %v3492, %v3499
    %v3502 = vunpack.c.l.s4 1934713408
    %v3503 = vunpack.c.0.s8 %v3502
    %v3504 = vlaneseq
    %v3505 = vshrl.u32 %v3504, 7
    %v3506 = vsub.s32 %v3503, %v3505
    %v3507 = vrot.slane %v3493, %v3506
    %v3508 = vcombine.low %v3476, %v3491
    %v3509 = vcombine.high %v3476, %v3491
    %v3511 = vunpack.c.l.s4 1934713408
    %v3512 = vunpack.c.0.s8 %v3511
    %v3513 = vlaneseq
    %v3514 = vshrl.u32 %v3513, 7
    %v3515 = vsub.s32 %v3512, %v3514
    %v3516 = vrot.slane %v3508, %v3515
    %v3518 = vunpack.c.l.s4 1934713408
    %v3519 = vunpack.c.0.s8 %v3518
    %v3520 = vlaneseq
    %v3521 = vshrl.u32 %v3520, 7
    %v3522 = vsub.s32 %v3519, %v3521
    %v3523 = vrot.slane %v3509, %v3522
    %v3524 = vcombine.high %v3500, 0.0
    %v3525 = vcombine.high %v3507, 0.0
    %v3526 = vcombine.high %v3516, 0.0
    %v3527 = vcombine.high %v3523, 0.0
    %v3528 = vcombine.low %v3434, %v3441
    %v3530 = vunpack.c.l.s4 1983009808
    %v3531 = vunpack.c.0.s8 %v3530
    %v3532 = vlaneseq
    %v3533 = vshrl.u32 %v3532, 7
    %v3534 = vsub.s32 %v3531, %v3533
    %v3535 = vrot.slane %v3528, %v3534
    %v3536 = vcombine.low %v3458, %v3459
    %v3538 = vunpack.c.l.s4 1983009808
    %v3539 = vunpack.c.0.s8 %v3538
    %v3540 = vlaneseq
    %v3541 = vshrl.u32 %v3540, 7
    %v3542 = vsub.s32 %v3539, %v3541
    %v3543 = vrot.slane %v3536, %v3542
    %v3544 = vcombine.low %v3450, %v3457
    %v3546 = vunpack.c.l.s4 1983009808
    %v3547 = vunpack.c.0.s8 %v3546
    %v3548 = vlaneseq
    %v3549 = vshrl.u32 %v3548, 7
    %v3550 = vsub.s32 %v3547, %v3549
    %v3551 = vrot.slane %v3544, %v3550
    %v3552 = vcombine.low %v3460, %v3461
    %v3554 = vunpack.c.l.s4 1983009808
    %v3555 = vunpack.c.0.s8 %v3554
    %v3556 = vlaneseq
    %v3557 = vshrl.u32 %v3556, 7
    %v3558 = vsub.s32 %v3555, %v3557
    %v3559 = vrot.slane %v3552, %v3558
    %v3560 = vcombine.low %v3535, %v3543
    %v3562 = vunpack.c.l.s4 1934713408
    %v3563 = vunpack.c.0.s8 %v3562
    %v3564 = vlaneseq
    %v3565 = vshrl.u32 %v3564, 7
    %v3566 = vsub.s32 %v3563, %v3565
    %v3567 = vrot.slane %v3560, %v3566
    %v3568 = vcombine.low %v3551, %v3559
    %v3570 = vunpack.c.l.s4 1934713408
    %v3571 = vunpack.c.0.s8 %v3570
    %v3572 = vlaneseq
    %v3573 = vshrl.u32 %v3572, 7
    %v3574 = vsub.s32 %v3571, %v3573
    %v3575 = vrot.slane %v3568, %v3574
    %v3576 = vcombine.low %v3567, %v3575
    %v3577 = vcombine.high %v3567, %v3575
    %v3578 = vcombine.low %v3500, %v3507
    %v3580 = vunpack.c.l.s4 1983009808
    %v3581 = vunpack.c.0.s8 %v3580
    %v3582 = vlaneseq
    %v3583 = vshrl.u32 %v3582, 7
    %v3584 = vsub.s32 %v3581, %v3583
    %v3585 = vrot.slane %v3578, %v3584
    %v3586 = vcombine.low %v3524, %v3525
    %v3588 = vunpack.c.l.s4 1983009808
    %v3589 = vunpack.c.0.s8 %v3588
    %v3590 = vlaneseq
    %v3591 = vshrl.u32 %v3590, 7
    %v3592 = vsub.s32 %v3589, %v3591
    %v3593 = vrot.slane %v3586, %v3592
    %v3594 = vcombine.low %v3516, %v3523
    %v3596 = vunpack.c.l.s4 1983009808
    %v3597 = vunpack.c.0.s8 %v3596
    %v3598 = vlaneseq
    %v3599 = vshrl.u32 %v3598, 7
    %v3600 = vsub.s32 %v3597, %v3599
    %v3601 = vrot.slane %v3594, %v3600
    %v3602 = vcombine.low %v3526, %v3527
    %v3604 = vunpack.c.l.s4 1983009808
    %v3605 = vunpack.c.0.s8 %v3604
    %v3606 = vlaneseq
    %v3607 = vshrl.u32 %v3606, 7
    %v3608 = vsub.s32 %v3605, %v3607
    %v3609 = vrot.slane %v3602, %v3608
    %v3610 = vcombine.low %v3585, %v3593
    %v3612 = vunpack.c.l.s4 1934713408
    %v3613 = vunpack.c.0.s8 %v3612
    %v3614 = vlaneseq
    %v3615 = vshrl.u32 %v3614, 7
    %v3616 = vsub.s32 %v3613, %v3615
    %v3617 = vrot.slane %v3610, %v3616
    %v3618 = vcombine.low %v3601, %v3609
    %v3620 = vunpack.c.l.s4 1934713408
    %v3621 = vunpack.c.0.s8 %v3620
    %v3622 = vlaneseq
    %v3623 = vshrl.u32 %v3622, 7
    %v3624 = vsub.s32 %v3621, %v3623
    %v3625 = vrot.slane %v3618, %v3624
    %v3626 = vcombine.low %v3617, %v3625
    %v3627 = vcombine.high %v3617, %v3625
    %v3628 = vpack.c.bf16 %v3146, %v3096
    %v3629 = vpack.c.bf16 %v3147, %v3097
    %v3630 = vpack.c.bf16 %v3386, %v3336
    %v3631 = vpack.c.bf16 %v3387, %v3337
    %v3633 = vsel %vm1241, %v3628, 0
    %v3636 = vsel %vm1241, %v3630, 0
    %3638 = vmatprep.subr.bf16.mxu0 0
    %3639 = vmatpush1.bf16.xpose.msra.mxu0 0
    %3640 = vmatprep.subr.bf16.mxu0 0
    %3641 = vmatpush1.bf16.xpose.msra.mxu0 0
    %3642 = vmatprep.subr.bf16.mxu0 0
    %3643 = vmatpush1.bf16.xpose.msra.mxu0 0
    %3644 = vmatprep.subr.bf16.mxu0 0
    %3645 = vmatpush1.bf16.xpose.msra.mxu0 0
    %3646 = vmatprep.subr.bf16.mxu0 0
    %3647 = vmatpush1.bf16.xpose.msra.mxu0 0
    %3648 = vmatprep.subr.bf16.mxu0 0
    %3649 = vmatpush1.bf16.xpose.msra.mxu0 0
    %3650 = vmatprep.subr.bf16.mxu0 0
    %3651 = vmatpush1.bf16.xpose.msra.mxu0 0
    %3652 = vmatprep.subr.bf16.mxu0 0
    %3653 = vmatpush1.bf16.xpose.msra.mxu0 %v3636
    %3654 = vmatprep.subr.bf16.mxu0 0
    %3655 = vmatpush2.bf16.xpose.msra.mxu0 0
    %3656 = vmatprep.subr.bf16.mxu0 0
    %3657 = vmatpush2.bf16.xpose.msra.mxu0 0
    %3658 = vmatprep.subr.bf16.mxu0 0
    %3659 = vmatpush2.bf16.xpose.msra.mxu0 0
    %3660 = vmatprep.subr.bf16.mxu0 0
    %3661 = vmatpush2.bf16.xpose.msra.mxu0 0
    %3662 = vmatprep.subr.bf16.mxu0 0
    %3663 = vmatpush2.bf16.xpose.msra.mxu0 0
    %3664 = vmatprep.subr.bf16.mxu0 0
    %3665 = vmatpush2.bf16.xpose.msra.mxu0 0
    %3666 = vmatprep.subr.bf16.mxu0 0
    %3667 = vmatpush2.bf16.xpose.msra.mxu0 0
    %3668 = vmatprep.subr.bf16.mxu0 0
    %3669 = vmatpush2.bf16.xpose.msra.mxu0 0
    %3670 = vmatprep.mubr.bf16.mxu0 0
    %3671 = vmatmul.mubr.bf16.gmra.mxu0 %v3633
    %v3672 = vpop.f32.mrf.mxu0
    %v3673 = vadd.f32 0.0, %v3672
    %v3674 = vpop.f32.mrf.mxu0
    %v3675 = vpop.f32.mrf.mxu0
    %v3676 = vadd.f32 0.0, %v3675
    %v3677 = vpop.f32.mrf.mxu0
    %3678 = vdwg.mxu0
    %v3680 = vsel %vm1241, %v3629, 0
    %v3683 = vsel %vm1241, %v3631, 0
    %3685 = vmatprep.subr.bf16.mxu0 0
    %3686 = vmatpush1.bf16.xpose.msra.mxu0 0
    %3687 = vmatprep.subr.bf16.mxu0 0
    %3688 = vmatpush1.bf16.xpose.msra.mxu0 0
    %3689 = vmatprep.subr.bf16.mxu0 0
    %3690 = vmatpush1.bf16.xpose.msra.mxu0 0
    %3691 = vmatprep.subr.bf16.mxu0 0
    %3692 = vmatpush1.bf16.xpose.msra.mxu0 0
    %3693 = vmatprep.subr.bf16.mxu0 0
    %3694 = vmatpush1.bf16.xpose.msra.mxu0 0
    %3695 = vmatprep.subr.bf16.mxu0 0
    %3696 = vmatpush1.bf16.xpose.msra.mxu0 0
    %3697 = vmatprep.subr.bf16.mxu0 0
    %3698 = vmatpush1.bf16.xpose.msra.mxu0 0
    %3699 = vmatprep.subr.bf16.mxu0 0
    %3700 = vmatpush1.bf16.xpose.msra.mxu0 %v3683
    %3701 = vmatprep.subr.bf16.mxu0 0
    %3702 = vmatpush2.bf16.xpose.msra.mxu0 0
    %3703 = vmatprep.subr.bf16.mxu0 0
    %3704 = vmatpush2.bf16.xpose.msra.mxu0 0
    %3705 = vmatprep.subr.bf16.mxu0 0
    %3706 = vmatpush2.bf16.xpose.msra.mxu0 0
    %3707 = vmatprep.subr.bf16.mxu0 0
    %3708 = vmatpush2.bf16.xpose.msra.mxu0 0
    %3709 = vmatprep.subr.bf16.mxu0 0
    %3710 = vmatpush2.bf16.xpose.msra.mxu0 0
    %3711 = vmatprep.subr.bf16.mxu0 0
    %3712 = vmatpush2.bf16.xpose.msra.mxu0 0
    %3713 = vmatprep.subr.bf16.mxu0 0
    %3714 = vmatpush2.bf16.xpose.msra.mxu0 0
    %3715 = vmatprep.subr.bf16.mxu0 0
    %3716 = vmatpush2.bf16.xpose.msra.mxu0 0
    %3717 = vmatprep.mubr.bf16.mxu0 0
    %3718 = vmatmul.mubr.bf16.gmra.mxu0 %v3680
    %v3719 = vpop.f32.mrf.mxu0
    %v3720 = vadd.f32 0.0, %v3719
    %v3721 = vpop.f32.mrf.mxu0
    %v3722 = vpop.f32.mrf.mxu0
    %v3723 = vadd.f32 0.0, %v3722
    %v3724 = vpop.f32.mrf.mxu0
    %3725 = vdwg.mxu0
    %v3726 = vmul.f32 %v3673, 0.125
    %v3727 = vmul.f32 %v3676, 0.125
    %v3728 = vmul.f32 %v3720, 0.125
    %v3729 = vmul.f32 %v3723, 0.125
    %v3730 = vadd.f32 %v3726, %v212
    %v3731 = vadd.f32 %v3727, %v213
    %v3732 = vadd.f32 %v3728, %v212
    %v3733 = vadd.f32 %v3729, %v213
    %v3734 = vsel %vm1344, %v3730, -inf
    %3735 = vmax.xlane.f32.xlu0 %v3734
    %v3736 = vpop.xlane.xlu0 %3735
    %v3737 = vsel %vm1344, %v3731, -inf
    %3738 = vmax.xlane.f32.xlu0 %v3737
    %v3739 = vpop.xlane.xlu0 %3738
    %v3740 = vsel %vm1344, %v3732, -inf
    %3741 = vmax.xlane.f32.xlu0 %v3740
    %v3742 = vpop.xlane.xlu0 %3741
    %v3743 = vsel %vm1344, %v3733, -inf
    %3744 = vmax.xlane.f32.xlu0 %v3743
    %v3745 = vpop.xlane.xlu0 %3744
    %v3746 = vsub.f32 %v3730, %v3736
    %v3747 = vsub.f32 %v3731, %v3739
    %v3748 = vsub.f32 %v3732, %v3742
    %v3749 = vsub.f32 %v3733, %v3745
    %v3750 = vmul.f32 %v3746, 1.442695
    %v3751 = vpow.pop %v3750
    %v3752 = vmul.f32 %v3747, 1.442695
    %v3753 = vpow.pop %v3752
    %v3754 = vmul.f32 %v3748, 1.442695
    %v3755 = vpow.pop %v3754
    %v3756 = vmul.f32 %v3749, 1.442695
    %v3757 = vpow.pop %v3756
    %v3758 = vsel %vm1344, %v3751, 0.0
    %3759 = vadd.xlane.f32.xlu0 %v3758
    %v3760 = vpop.xlane.xlu0 %3759
    %v3761 = vsel %vm1344, %v3753, 0.0
    %3762 = vadd.xlane.f32.xlu0 %v3761
    %v3763 = vpop.xlane.xlu0 %3762
    %v3764 = vsel %vm1344, %v3755, 0.0
    %3765 = vadd.xlane.f32.xlu0 %v3764
    %v3766 = vpop.xlane.xlu0 %3765
    %v3767 = vsel %vm1344, %v3757, 0.0
    %3768 = vadd.xlane.f32.xlu0 %v3767
    %v3769 = vpop.xlane.xlu0 %3768
    %v3770 = vrcp.pop %v3760
    %v3771 = vrcp.pop %v3763
    %v3772 = vrcp.pop %v3766
    %v3773 = vrcp.pop %v3769
    %v3774 = vmul.f32 %v3751, %v3770
    %v3775 = vmul.f32 %v3753, %v3771
    %v3776 = vmul.f32 %v3755, %v3772
    %v3777 = vmul.f32 %v3757, %v3773
    %v3778 = vpack.c.bf16 %v3775, %v3774
    %v3779 = vpack.c.bf16 %v3777, %v3776
    %v3780 = vpack.c.bf16 %v3626, %v3576
    %v3781 = vpack.c.bf16 %v3627, %v3577
    %v3783 = vsel %vm1344, %v3778, 0
    %3785 = vmatprep.subr.bf16.mxu0 0
    %3786 = vmatpush1.bf16.msra.mxu0 0
    %3787 = vmatprep.subr.bf16.mxu0 0
    %3788 = vmatpush1.bf16.msra.mxu0 0
    %3789 = vmatprep.subr.bf16.mxu0 0
    %3790 = vmatpush1.bf16.msra.mxu0 0
    %3791 = vmatprep.subr.bf16.mxu0 0
    %3792 = vmatpush1.bf16.msra.mxu0 0
    %3793 = vmatprep.subr.bf16.mxu0 0
    %3794 = vmatpush1.bf16.msra.mxu0 0
    %3795 = vmatprep.subr.bf16.mxu0 0
    %3796 = vmatpush1.bf16.msra.mxu0 0
    %3797 = vmatprep.subr.bf16.mxu0 0
    %3798 = vmatpush1.bf16.msra.mxu0 0
    %3799 = vmatprep.subr.bf16.mxu0 0
    %3800 = vmatpush1.bf16.msra.mxu0 %v3780
    %3801 = vmatprep.subr.bf16.mxu0 0
    %3802 = vmatpush2.bf16.msra.mxu0 0
    %3803 = vmatprep.subr.bf16.mxu0 0
    %3804 = vmatpush2.bf16.msra.mxu0 0
    %3805 = vmatprep.subr.bf16.mxu0 0
    %3806 = vmatpush2.bf16.msra.mxu0 0
    %3807 = vmatprep.subr.bf16.mxu0 0
    %3808 = vmatpush2.bf16.msra.mxu0 0
    %3809 = vmatprep.subr.bf16.mxu0 0
    %3810 = vmatpush2.bf16.msra.mxu0 0
    %3811 = vmatprep.subr.bf16.mxu0 0
    %3812 = vmatpush2.bf16.msra.mxu0 0
    %3813 = vmatprep.subr.bf16.mxu0 0
    %3814 = vmatpush2.bf16.msra.mxu0 0
    %3815 = vmatprep.subr.bf16.mxu0 0
    %3816 = vmatpush2.bf16.msra.mxu0 0
    %3817 = vmatprep.mubr.bf16.mxu0 0
    %3818 = vmatmul.mubr.bf16.gmra.mxu0 %v3783
    %v3819 = vpop.f32.mrf.mxu0
    %v3820 = vadd.f32 0.0, %v3819
    %v3821 = vpop.f32.mrf.mxu0
    %v3822 = vpop.f32.mrf.mxu0
    %v3823 = vadd.f32 0.0, %v3822
    %v3824 = vpop.f32.mrf.mxu0
    %3825 = vdwg.mxu0
    %v3827 = vsel %vm1344, %v3779, 0
    %3829 = vmatprep.subr.bf16.mxu0 0
    %3830 = vmatpush1.bf16.msra.mxu0 0
    %3831 = vmatprep.subr.bf16.mxu0 0
    %3832 = vmatpush1.bf16.msra.mxu0 0
    %3833 = vmatprep.subr.bf16.mxu0 0
    %3834 = vmatpush1.bf16.msra.mxu0 0
    %3835 = vmatprep.subr.bf16.mxu0 0
    %3836 = vmatpush1.bf16.msra.mxu0 0
    %3837 = vmatprep.subr.bf16.mxu0 0
    %3838 = vmatpush1.bf16.msra.mxu0 0
    %3839 = vmatprep.subr.bf16.mxu0 0
    %3840 = vmatpush1.bf16.msra.mxu0 0
    %3841 = vmatprep.subr.bf16.mxu0 0
    %3842 = vmatpush1.bf16.msra.mxu0 0
    %3843 = vmatprep.subr.bf16.mxu0 0
    %3844 = vmatpush1.bf16.msra.mxu0 %v3781
    %3845 = vmatprep.subr.bf16.mxu0 0
    %3846 = vmatpush2.bf16.msra.mxu0 0
    %3847 = vmatprep.subr.bf16.mxu0 0
    %3848 = vmatpush2.bf16.msra.mxu0 0
    %3849 = vmatprep.subr.bf16.mxu0 0
    %3850 = vmatpush2.bf16.msra.mxu0 0
    %3851 = vmatprep.subr.bf16.mxu0 0
    %3852 = vmatpush2.bf16.msra.mxu0 0
    %3853 = vmatprep.subr.bf16.mxu0 0
    %3854 = vmatpush2.bf16.msra.mxu0 0
    %3855 = vmatprep.subr.bf16.mxu0 0
    %3856 = vmatpush2.bf16.msra.mxu0 0
    %3857 = vmatprep.subr.bf16.mxu0 0
    %3858 = vmatpush2.bf16.msra.mxu0 0
    %3859 = vmatprep.subr.bf16.mxu0 0
    %3860 = vmatpush2.bf16.msra.mxu0 0
    %3861 = vmatprep.mubr.bf16.mxu0 0
    %3862 = vmatmul.mubr.bf16.gmra.mxu0 %v3827
    %v3863 = vpop.f32.mrf.mxu0
    %v3864 = vadd.f32 0.0, %v3863
    %v3865 = vpop.f32.mrf.mxu0
    %v3866 = vpop.f32.mrf.mxu0
    %v3867 = vadd.f32 0.0, %v3866
    %v3868 = vpop.f32.mrf.mxu0
    %3869 = vdwg.mxu0
    %v3870 = vcombine.high %v3820, 0.0
    %v3872 = vunpack.c.l.s4 1983009808
    %v3873 = vunpack.c.0.s8 %v3872
    %v3874 = vlaneseq
    %v3875 = vshrl.u32 %v3874, 7
    %v3876 = vsub.s32 %v3873, %v3875
    %v3877 = vrot.slane %v3820, %v3876
    %v3879 = vunpack.c.l.s4 1983009808
    %v3880 = vunpack.c.0.s8 %v3879
    %v3881 = vlaneseq
    %v3882 = vshrl.u32 %v3881, 7
    %v3883 = vsub.s32 %v3880, %v3882
    %v3884 = vrot.slane %v3870, %v3883
    %v3885 = vcombine.high %v3864, 0.0
    %v3887 = vunpack.c.l.s4 1983009808
    %v3888 = vunpack.c.0.s8 %v3887
    %v3889 = vlaneseq
    %v3890 = vshrl.u32 %v3889, 7
    %v3891 = vsub.s32 %v3888, %v3890
    %v3892 = vrot.slane %v3864, %v3891
    %v3894 = vunpack.c.l.s4 1983009808
    %v3895 = vunpack.c.0.s8 %v3894
    %v3896 = vlaneseq
    %v3897 = vshrl.u32 %v3896, 7
    %v3898 = vsub.s32 %v3895, %v3897
    %v3899 = vrot.slane %v3885, %v3898
    %v3900 = vcombine.low %v3877, %v3892
    %v3901 = vcombine.high %v3877, %v3892
    %v3903 = vunpack.c.l.s4 1934713408
    %v3904 = vunpack.c.0.s8 %v3903
    %v3905 = vlaneseq
    %v3906 = vshrl.u32 %v3905, 7
    %v3907 = vsub.s32 %v3904, %v3906
    %v3908 = vrot.slane %v3900, %v3907
    %v3910 = vunpack.c.l.s4 1934713408
    %v3911 = vunpack.c.0.s8 %v3910
    %v3912 = vlaneseq
    %v3913 = vshrl.u32 %v3912, 7
    %v3914 = vsub.s32 %v3911, %v3913
    %v3915 = vrot.slane %v3901, %v3914
    %v3916 = vcombine.low %v3884, %v3899
    %v3917 = vcombine.high %v3884, %v3899
    %v3919 = vunpack.c.l.s4 1934713408
    %v3920 = vunpack.c.0.s8 %v3919
    %v3921 = vlaneseq
    %v3922 = vshrl.u32 %v3921, 7
    %v3923 = vsub.s32 %v3920, %v3922
    %v3924 = vrot.slane %v3916, %v3923
    %v3926 = vunpack.c.l.s4 1934713408
    %v3927 = vunpack.c.0.s8 %v3926
    %v3928 = vlaneseq
    %v3929 = vshrl.u32 %v3928, 7
    %v3930 = vsub.s32 %v3927, %v3929
    %v3931 = vrot.slane %v3917, %v3930
    %v3932 = vcombine.high %v3908, 0.0
    %v3933 = vcombine.high %v3915, 0.0
    %v3934 = vcombine.high %v3924, 0.0
    %v3935 = vcombine.high %v3931, 0.0
    %v3936 = vcombine.high %v3823, 0.0
    %v3938 = vunpack.c.l.s4 1983009808
    %v3939 = vunpack.c.0.s8 %v3938
    %v3940 = vlaneseq
    %v3941 = vshrl.u32 %v3940, 7
    %v3942 = vsub.s32 %v3939, %v3941
    %v3943 = vrot.slane %v3823, %v3942
    %v3945 = vunpack.c.l.s4 1983009808
    %v3946 = vunpack.c.0.s8 %v3945
    %v3947 = vlaneseq
    %v3948 = vshrl.u32 %v3947, 7
    %v3949 = vsub.s32 %v3946, %v3948
    %v3950 = vrot.slane %v3936, %v3949
    %v3951 = vcombine.high %v3867, 0.0
    %v3953 = vunpack.c.l.s4 1983009808
    %v3954 = vunpack.c.0.s8 %v3953
    %v3955 = vlaneseq
    %v3956 = vshrl.u32 %v3955, 7
    %v3957 = vsub.s32 %v3954, %v3956
    %v3958 = vrot.slane %v3867, %v3957
    %v3960 = vunpack.c.l.s4 1983009808
    %v3961 = vunpack.c.0.s8 %v3960
    %v3962 = vlaneseq
    %v3963 = vshrl.u32 %v3962, 7
    %v3964 = vsub.s32 %v3961, %v3963
    %v3965 = vrot.slane %v3951, %v3964
    %v3966 = vcombine.low %v3943, %v3958
    %v3967 = vcombine.high %v3943, %v3958
    %v3969 = vunpack.c.l.s4 1934713408
    %v3970 = vunpack.c.0.s8 %v3969
    %v3971 = vlaneseq
    %v3972 = vshrl.u32 %v3971, 7
    %v3973 = vsub.s32 %v3970, %v3972
    %v3974 = vrot.slane %v3966, %v3973
    %v3976 = vunpack.c.l.s4 1934713408
    %v3977 = vunpack.c.0.s8 %v3976
    %v3978 = vlaneseq
    %v3979 = vshrl.u32 %v3978, 7
    %v3980 = vsub.s32 %v3977, %v3979
    %v3981 = vrot.slane %v3967, %v3980
    %v3982 = vcombine.low %v3950, %v3965
    %v3983 = vcombine.high %v3950, %v3965
    %v3985 = vunpack.c.l.s4 1934713408
    %v3986 = vunpack.c.0.s8 %v3985
    %v3987 = vlaneseq
    %v3988 = vshrl.u32 %v3987, 7
    %v3989 = vsub.s32 %v3986, %v3988
    %v3990 = vrot.slane %v3982, %v3989
    %v3992 = vunpack.c.l.s4 1934713408
    %v3993 = vunpack.c.0.s8 %v3992
    %v3994 = vlaneseq
    %v3995 = vshrl.u32 %v3994, 7
    %v3996 = vsub.s32 %v3993, %v3995
    %v3997 = vrot.slane %v3983, %v3996
    %v3998 = vcombine.high %v3974, 0.0
    %v3999 = vcombine.high %v3981, 0.0
    %v4000 = vcombine.high %v3990, 0.0
    %v4001 = vcombine.high %v3997, 0.0
    %v4002 = vcombine.low %v3908, %v3915
    %v4004 = vunpack.c.l.s4 1983009808
    %v4005 = vunpack.c.0.s8 %v4004
    %v4006 = vlaneseq
    %v4007 = vshrl.u32 %v4006, 7
    %v4008 = vsub.s32 %v4005, %v4007
    %v4009 = vrot.slane %v4002, %v4008
    %v4010 = vcombine.low %v3932, %v3933
    %v4012 = vunpack.c.l.s4 1983009808
    %v4013 = vunpack.c.0.s8 %v4012
    %v4014 = vlaneseq
    %v4015 = vshrl.u32 %v4014, 7
    %v4016 = vsub.s32 %v4013, %v4015
    %v4017 = vrot.slane %v4010, %v4016
    %v4018 = vcombine.low %v3924, %v3931
    %v4020 = vunpack.c.l.s4 1983009808
    %v4021 = vunpack.c.0.s8 %v4020
    %v4022 = vlaneseq
    %v4023 = vshrl.u32 %v4022, 7
    %v4024 = vsub.s32 %v4021, %v4023
    %v4025 = vrot.slane %v4018, %v4024
    %v4026 = vcombine.low %v3934, %v3935
    %v4028 = vunpack.c.l.s4 1983009808
    %v4029 = vunpack.c.0.s8 %v4028
    %v4030 = vlaneseq
    %v4031 = vshrl.u32 %v4030, 7
    %v4032 = vsub.s32 %v4029, %v4031
    %v4033 = vrot.slane %v4026, %v4032
    %v4034 = vcombine.low %v4009, %v4017
    %v4036 = vunpack.c.l.s4 1934713408
    %v4037 = vunpack.c.0.s8 %v4036
    %v4038 = vlaneseq
    %v4039 = vshrl.u32 %v4038, 7
    %v4040 = vsub.s32 %v4037, %v4039
    %v4041 = vrot.slane %v4034, %v4040
    %v4042 = vcombine.low %v4025, %v4033
    %v4044 = vunpack.c.l.s4 1934713408
    %v4045 = vunpack.c.0.s8 %v4044
    %v4046 = vlaneseq
    %v4047 = vshrl.u32 %v4046, 7
    %v4048 = vsub.s32 %v4045, %v4047
    %v4049 = vrot.slane %v4042, %v4048
    %v4050 = vcombine.low %v4041, %v4049
    %v4051 = vcombine.high %v4041, %v4049
    %v4052 = vcombine.low %v3974, %v3981
    %v4054 = vunpack.c.l.s4 1983009808
    %v4055 = vunpack.c.0.s8 %v4054
    %v4056 = vlaneseq
    %v4057 = vshrl.u32 %v4056, 7
    %v4058 = vsub.s32 %v4055, %v4057
    %v4059 = vrot.slane %v4052, %v4058
    %v4060 = vcombine.low %v3998, %v3999
    %v4062 = vunpack.c.l.s4 1983009808
    %v4063 = vunpack.c.0.s8 %v4062
    %v4064 = vlaneseq
    %v4065 = vshrl.u32 %v4064, 7
    %v4066 = vsub.s32 %v4063, %v4065
    %v4067 = vrot.slane %v4060, %v4066
    %v4068 = vcombine.low %v3990, %v3997
    %v4070 = vunpack.c.l.s4 1983009808
    %v4071 = vunpack.c.0.s8 %v4070
    %v4072 = vlaneseq
    %v4073 = vshrl.u32 %v4072, 7
    %v4074 = vsub.s32 %v4071, %v4073
    %v4075 = vrot.slane %v4068, %v4074
    %v4076 = vcombine.low %v4000, %v4001
    %v4078 = vunpack.c.l.s4 1983009808
    %v4079 = vunpack.c.0.s8 %v4078
    %v4080 = vlaneseq
    %v4081 = vshrl.u32 %v4080, 7
    %v4082 = vsub.s32 %v4079, %v4081
    %v4083 = vrot.slane %v4076, %v4082
    %v4084 = vcombine.low %v4059, %v4067
    %v4086 = vunpack.c.l.s4 1934713408
    %v4087 = vunpack.c.0.s8 %v4086
    %v4088 = vlaneseq
    %v4089 = vshrl.u32 %v4088, 7
    %v4090 = vsub.s32 %v4087, %v4089
    %v4091 = vrot.slane %v4084, %v4090
    %v4092 = vcombine.low %v4075, %v4083
    %v4094 = vunpack.c.l.s4 1934713408
    %v4095 = vunpack.c.0.s8 %v4094
    %v4096 = vlaneseq
    %v4097 = vshrl.u32 %v4096, 7
    %v4098 = vsub.s32 %v4095, %v4097
    %v4099 = vrot.slane %v4092, %v4098
    %v4100 = vcombine.low %v4091, %v4099
    %v4101 = vcombine.high %v4091, %v4099
    %4104 = vrot.lane.b32.xlu0 %v4051, 64
    %v4105 = vpop.permute.xlu0 %4104
    %4106 = vrot.lane.b32.xlu0 %v4101, 64
    %v4107 = vpop.permute.xlu0 %4106
    %v4110 = vsel %vm1241, %v4050, %v4105
    %v4111 = vsel %vm1241, %v4100, %v4107
    %v4112 = vpack.c.bf16 %v4111, %v4110
    %s4113 = scalar_lea.vmem [#allocation10], 64
    %v4114 = vld [vmem:[%s4113] sm:$0xf]
    %v4115 = vld [vmem:[%s4113 + $0x4] sm:$0xf]
    %v4116 = vld [vmem:[%s4113 + $0x8] sm:$0xf]
    %v4117 = vld [vmem:[%s4113 + $0xc] sm:$0xf]
    %v4118 = vld [vmem:[%s4113 + $0x10] sm:$0xf]
    %v4119 = vld [vmem:[%s4113 + $0x14] sm:$0xf]
    %v4120 = vld [vmem:[%s4113 + $0x18] sm:$0xf]
    %v4121 = vld [vmem:[%s4113 + $0x1c] sm:$0xf]
    %v4122 = vld [vmem:[%s4113 + $0x20] sm:$0xf]
    %v4123 = vld [vmem:[%s4113 + $0x24] sm:$0xf]
    %v4124 = vld [vmem:[%s4113 + $0x28] sm:$0xf]
    %v4125 = vld [vmem:[%s4113 + $0x2c] sm:$0xf]
    %v4126 = vld [vmem:[%s4113 + $0x30] sm:$0xf]
    %v4127 = vld [vmem:[%s4113 + $0x34] sm:$0xf]
    %v4128 = vld [vmem:[%s4113 + $0x38] sm:$0xf]
    %v4129 = vld [vmem:[%s4113 + $0x3c] sm:$0xf]
    %s4130 = scalar_lea.vmem [#allocation11], 1
    %v4131 = vld [vmem:[%s4130] sm:$0x1]
    %v4133 = vlaneseq
    %v4134 = vshrl.u32 %v4133, 7
    %v4135 = vsub.s32 0, %v4134
    %v4136 = vrot.slane %v4131, %v4135
    %v4154 = vunpack.c.l.b16 %v4114
    %v4155 = vunpack.c.l.b16 %v4115
    %v4156 = vunpack.c.l.b16 %v4116
    %v4157 = vunpack.c.l.b16 %v4117
    %v4158 = vunpack.c.l.b16 %v4118
    %v4159 = vunpack.c.l.b16 %v4119
    %v4160 = vunpack.c.l.b16 %v4120
    %v4161 = vunpack.c.l.b16 %v4121
    %v4162 = vunpack.c.l.b16 %v4122
    %v4163 = vunpack.c.l.b16 %v4123
    %v4164 = vunpack.c.l.b16 %v4124
    %v4165 = vunpack.c.l.b16 %v4125
    %v4166 = vunpack.c.l.b16 %v4126
    %v4167 = vunpack.c.l.b16 %v4127
    %v4168 = vunpack.c.l.b16 %v4128
    %v4169 = vunpack.c.l.b16 %v4129
    %v4170 = vpack.c.b16 %v4155, %v4154
    %v4171 = vpack.c.b16 %v4157, %v4156
    %v4172 = vpack.c.b16 %v4159, %v4158
    %v4173 = vpack.c.b16 %v4161, %v4160
    %v4174 = vpack.c.b16 %v4163, %v4162
    %v4175 = vpack.c.b16 %v4165, %v4164
    %v4176 = vpack.c.b16 %v4167, %v4166
    %v4177 = vpack.c.b16 %v4169, %v4168
    %4186 = vmatprep.subr.bf16.mxu0 0
    %4187 = vmatpush1.bf16.msra.mxu0 %v4177
    %4188 = vmatprep.subr.bf16.mxu0 0
    %4189 = vmatpush1.bf16.msra.mxu0 %v4176
    %4190 = vmatprep.subr.bf16.mxu0 0
    %4191 = vmatpush1.bf16.msra.mxu0 %v4175
    %4192 = vmatprep.subr.bf16.mxu0 0
    %4193 = vmatpush1.bf16.msra.mxu0 %v4174
    %4194 = vmatprep.subr.bf16.mxu0 0
    %4195 = vmatpush1.bf16.msra.mxu0 %v4173
    %4196 = vmatprep.subr.bf16.mxu0 0
    %4197 = vmatpush1.bf16.msra.mxu0 %v4172
    %4198 = vmatprep.subr.bf16.mxu0 0
    %4199 = vmatpush1.bf16.msra.mxu0 %v4171
    %4200 = vmatprep.subr.bf16.mxu0 0
    %4201 = vmatpush1.bf16.msra.mxu0 %v4170
    %4202 = vmatprep.subr.bf16.mxu0 0
    %4203 = vmatpush2.bf16.msra.mxu0 0
    %4204 = vmatprep.subr.bf16.mxu0 0
    %4205 = vmatpush2.bf16.msra.mxu0 0
    %4206 = vmatprep.subr.bf16.mxu0 0
    %4207 = vmatpush2.bf16.msra.mxu0 0
    %4208 = vmatprep.subr.bf16.mxu0 0
    %4209 = vmatpush2.bf16.msra.mxu0 0
    %4210 = vmatprep.subr.bf16.mxu0 0
    %4211 = vmatpush2.bf16.msra.mxu0 0
    %4212 = vmatprep.subr.bf16.mxu0 0
    %4213 = vmatpush2.bf16.msra.mxu0 0
    %4214 = vmatprep.subr.bf16.mxu0 0
    %4215 = vmatpush2.bf16.msra.mxu0 0
    %4216 = vmatprep.subr.bf16.mxu0 0
    %4217 = vmatpush2.bf16.msra.mxu0 0
    %4218 = vmatprep.mubr.bf16.mxu0 0
    %4219 = vmatmul.mubr.bf16.gmra.mxu0 %v4112
    %v4220 = vpop.f32.mrf.mxu0
    %v4221 = vadd.f32 %v4136, %v4220
    %v4222 = vpop.f32.mrf.mxu0
    %v4223 = vpop.f32.mrf.mxu0
    %v4224 = vadd.f32 %v4136, %v4223
    %v4225 = vpop.f32.mrf.mxu0
    %4226 = vdwg.mxu0
    %v4227 = vadd.f32 %v2600, %v4221
    %v4228 = vadd.f32 %v2601, %v4224
    %s4229 = scalar_lea.vmem [#allocation13], 1
    %v4230 = vld [vmem:[%s4229] sm:$0x1]
    %s4231 = scalar_lea.vmem [#allocation14], 1
    %v4232 = vld [vmem:[%s4231] sm:$0x1]
    %4233 = vadd.xlane.f32.xlu0 %v4227
    %v4234 = vpop.xlane.xlu0 %4233
    %4235 = vadd.xlane.f32.xlu0 %v4228
    %v4236 = vpop.xlane.xlu0 %4235
    %v4237 = vmul.f32 %v4234, %v220
    %v4238 = vmul.f32 %v4236, %v220
    %v4239 = vsub.f32 %v4227, %v4237
    %v4240 = vsub.f32 %v4228, %v4238
    %v4241 = vmul.f32 %v4239, %v4239
    %v4242 = vmul.f32 %v4240, %v4240
    %4243 = vadd.xlane.f32.xlu0 %v4241
    %v4244 = vpop.xlane.xlu0 %4243
    %4245 = vadd.xlane.f32.xlu0 %v4242
    %v4246 = vpop.xlane.xlu0 %4245
    %v4247 = vmul.f32 %v4244, %v220
    %v4248 = vmul.f32 %v4246, %v220
    %v4249 = vadd.f32 %v4247, 1e-05
    %v4250 = vadd.f32 %v4248, 1e-05
    %v4251 = vrsqrt.pop %v4249
    %v4252 = vrsqrt.pop %v4250
    %v4253 = vmul.f32 %v4239, %v4251
    %v4254 = vmul.f32 %v4240, %v4252
    %v4256 = vlaneseq
    %v4257 = vshrl.u32 %v4256, 7
    %v4258 = vsub.s32 0, %v4257
    %v4259 = vrot.slane %v4230, %v4258
    %v4261 = vmul.f32 %v4253, %v4259
    %v4262 = vmul.f32 %v4254, %v4259
    %v4264 = vlaneseq
    %v4265 = vshrl.u32 %v4264, 7
    %v4266 = vsub.s32 0, %v4265
    %v4267 = vrot.slane %v4232, %v4266
    %v4269 = vadd.f32 %v4261, %v4267
    %v4270 = vadd.f32 %v4262, %v4267
    %v4271 = vpack.c.bf16 %v4270, %v4269
    %s4272 = scalar_lea.vmem [#allocation16], 256
    %v4273 = vld [vmem:[%s4272] sm:$0xff]
    %v4274 = vld [vmem:[%s4272 + $0x8] sm:$0xff]
    %v4275 = vld [vmem:[%s4272 + $0x10] sm:$0xff]
    %v4276 = vld [vmem:[%s4272 + $0x18] sm:$0xff]
    %v4277 = vld [vmem:[%s4272 + $0x20] sm:$0xff]
    %v4278 = vld [vmem:[%s4272 + $0x28] sm:$0xff]
    %v4279 = vld [vmem:[%s4272 + $0x30] sm:$0xff]
    %v4280 = vld [vmem:[%s4272 + $0x38] sm:$0xff]
    %v4281 = vld [vmem:[%s4272 + $0x40] sm:$0xff]
    %v4282 = vld [vmem:[%s4272 + $0x48] sm:$0xff]
    %v4283 = vld [vmem:[%s4272 + $0x50] sm:$0xff]
    %v4284 = vld [vmem:[%s4272 + $0x58] sm:$0xff]
    %v4285 = vld [vmem:[%s4272 + $0x60] sm:$0xff]
    %v4286 = vld [vmem:[%s4272 + $0x68] sm:$0xff]
    %v4287 = vld [vmem:[%s4272 + $0x70] sm:$0xff]
    %v4288 = vld [vmem:[%s4272 + $0x78] sm:$0xff]
    %v4289 = vld [vmem:[%s4272 + $0x80] sm:$0xff]
    %v4290 = vld [vmem:[%s4272 + $0x88] sm:$0xff]
    %v4291 = vld [vmem:[%s4272 + $0x90] sm:$0xff]
    %v4292 = vld [vmem:[%s4272 + $0x98] sm:$0xff]
    %v4293 = vld [vmem:[%s4272 + $0xa0] sm:$0xff]
    %v4294 = vld [vmem:[%s4272 + $0xa8] sm:$0xff]
    %v4295 = vld [vmem:[%s4272 + $0xb0] sm:$0xff]
    %v4296 = vld [vmem:[%s4272 + $0xb8] sm:$0xff]
    %v4297 = vld [vmem:[%s4272 + $0xc0] sm:$0xff]
    %v4298 = vld [vmem:[%s4272 + $0xc8] sm:$0xff]
    %v4299 = vld [vmem:[%s4272 + $0xd0] sm:$0xff]
    %v4300 = vld [vmem:[%s4272 + $0xd8] sm:$0xff]
    %v4301 = vld [vmem:[%s4272 + $0xe0] sm:$0xff]
    %v4302 = vld [vmem:[%s4272 + $0xe8] sm:$0xff]
    %v4303 = vld [vmem:[%s4272 + $0xf0] sm:$0xff]
    %v4304 = vld [vmem:[%s4272 + $0xf8] sm:$0xff]
    %s4305 = scalar_lea.vmem %s11, 4
    %v4306 = vld [vmem:[%s4305] sm:$0xf]
    %v4308 = vlaneseq
    %v4309 = vshrl.u32 %v4308, 7
    %v4310 = vsub.s32 0, %v4309
    %v4311 = vrot.slane %v4306, %v4310
    %v4312 = vlaneseq
    %v4313 = vshrl.u32 %v4312, 7
    %v4314 = vsub.s32 1, %v4313
    %v4315 = vrot.slane %v4306, %v4314
    %v4316 = vlaneseq
    %v4317 = vshrl.u32 %v4316, 7
    %v4318 = vsub.s32 2, %v4317
    %v4319 = vrot.slane %v4306, %v4318
    %v4320 = vlaneseq
    %v4321 = vshrl.u32 %v4320, 7
    %v4322 = vsub.s32 3, %v4321
    %v4323 = vrot.slane %v4306, %v4322
    %v4360 = vunpack.c.l.b16 %v4273
    %v4361 = vunpack.c.h.b16 %v4273
    %v4362 = vunpack.c.l.b16 %v4274
    %v4363 = vunpack.c.h.b16 %v4274
    %v4364 = vunpack.c.l.b16 %v4275
    %v4365 = vunpack.c.h.b16 %v4275
    %v4366 = vunpack.c.l.b16 %v4276
    %v4367 = vunpack.c.h.b16 %v4276
    %v4368 = vunpack.c.l.b16 %v4277
    %v4369 = vunpack.c.h.b16 %v4277
    %v4370 = vunpack.c.l.b16 %v4278
    %v4371 = vunpack.c.h.b16 %v4278
    %v4372 = vunpack.c.l.b16 %v4279
    %v4373 = vunpack.c.h.b16 %v4279
    %v4374 = vunpack.c.l.b16 %v4280
    %v4375 = vunpack.c.h.b16 %v4280
    %v4376 = vunpack.c.l.b16 %v4281
    %v4377 = vunpack.c.h.b16 %v4281
    %v4378 = vunpack.c.l.b16 %v4282
    %v4379 = vunpack.c.h.b16 %v4282
    %v4380 = vunpack.c.l.b16 %v4283
    %v4381 = vunpack.c.h.b16 %v4283
    %v4382 = vunpack.c.l.b16 %v4284
    %v4383 = vunpack.c.h.b16 %v4284
    %v4384 = vunpack.c.l.b16 %v4285
    %v4385 = vunpack.c.h.b16 %v4285
    %v4386 = vunpack.c.l.b16 %v4286
    %v4387 = vunpack.c.h.b16 %v4286
    %v4388 = vunpack.c.l.b16 %v4287
    %v4389 = vunpack.c.h.b16 %v4287
    %v4390 = vunpack.c.l.b16 %v4288
    %v4391 = vunpack.c.h.b16 %v4288
    %v4392 = vunpack.c.l.b16 %v4289
    %v4393 = vunpack.c.h.b16 %v4289
    %v4394 = vunpack.c.l.b16 %v4290
    %v4395 = vunpack.c.h.b16 %v4290
    %v4396 = vunpack.c.l.b16 %v4291
    %v4397 = vunpack.c.h.b16 %v4291
    %v4398 = vunpack.c.l.b16 %v4292
    %v4399 = vunpack.c.h.b16 %v4292
    %v4400 = vunpack.c.l.b16 %v4293
    %v4401 = vunpack.c.h.b16 %v4293
    %v4402 = vunpack.c.l.b16 %v4294
    %v4403 = vunpack.c.h.b16 %v4294
    %v4404 = vunpack.c.l.b16 %v4295
    %v4405 = vunpack.c.h.b16 %v4295
    %v4406 = vunpack.c.l.b16 %v4296
    %v4407 = vunpack.c.h.b16 %v4296
    %v4408 = vunpack.c.l.b16 %v4297
    %v4409 = vunpack.c.h.b16 %v4297
    %v4410 = vunpack.c.l.b16 %v4298
    %v4411 = vunpack.c.h.b16 %v4298
    %v4412 = vunpack.c.l.b16 %v4299
    %v4413 = vunpack.c.h.b16 %v4299
    %v4414 = vunpack.c.l.b16 %v4300
    %v4415 = vunpack.c.h.b16 %v4300
    %v4416 = vunpack.c.l.b16 %v4301
    %v4417 = vunpack.c.h.b16 %v4301
    %v4418 = vunpack.c.l.b16 %v4302
    %v4419 = vunpack.c.h.b16 %v4302
    %v4420 = vunpack.c.l.b16 %v4303
    %v4421 = vunpack.c.h.b16 %v4303
    %v4422 = vunpack.c.l.b16 %v4304
    %v4423 = vunpack.c.h.b16 %v4304
    %v4424 = vpack.c.b16 %v4364, %v4360
    %v4425 = vpack.c.b16 %v4365, %v4361
    %v4426 = vpack.c.b16 %v4366, %v4362
    %v4427 = vpack.c.b16 %v4367, %v4363
    %v4428 = vpack.c.b16 %v4372, %v4368
    %v4429 = vpack.c.b16 %v4373, %v4369
    %v4430 = vpack.c.b16 %v4374, %v4370
    %v4431 = vpack.c.b16 %v4375, %v4371
    %v4432 = vpack.c.b16 %v4380, %v4376
    %v4433 = vpack.c.b16 %v4381, %v4377
    %v4434 = vpack.c.b16 %v4382, %v4378
    %v4435 = vpack.c.b16 %v4383, %v4379
    %v4436 = vpack.c.b16 %v4388, %v4384
    %v4437 = vpack.c.b16 %v4389, %v4385
    %v4438 = vpack.c.b16 %v4390, %v4386
    %v4439 = vpack.c.b16 %v4391, %v4387
    %v4440 = vpack.c.b16 %v4396, %v4392
    %v4441 = vpack.c.b16 %v4397, %v4393
    %v4442 = vpack.c.b16 %v4398, %v4394
    %v4443 = vpack.c.b16 %v4399, %v4395
    %v4444 = vpack.c.b16 %v4404, %v4400
    %v4445 = vpack.c.b16 %v4405, %v4401
    %v4446 = vpack.c.b16 %v4406, %v4402
    %v4447 = vpack.c.b16 %v4407, %v4403
    %v4448 = vpack.c.b16 %v4412, %v4408
    %v4449 = vpack.c.b16 %v4413, %v4409
    %v4450 = vpack.c.b16 %v4414, %v4410
    %v4451 = vpack.c.b16 %v4415, %v4411
    %v4452 = vpack.c.b16 %v4420, %v4416
    %v4453 = vpack.c.b16 %v4421, %v4417
    %v4454 = vpack.c.b16 %v4422, %v4418
    %v4455 = vpack.c.b16 %v4423, %v4419
    %4488 = vmatprep.subr.bf16.mxu0 %v4453
    %4489 = vmatpush1.bf16.msra.mxu0 %v4452
    %4490 = vmatprep.subr.bf16.mxu0 %v4449
    %4491 = vmatpush1.bf16.msra.mxu0 %v4448
    %4492 = vmatprep.subr.bf16.mxu0 %v4445
    %4493 = vmatpush1.bf16.msra.mxu0 %v4444
    %4494 = vmatprep.subr.bf16.mxu0 %v4441
    %4495 = vmatpush1.bf16.msra.mxu0 %v4440
    %4496 = vmatprep.subr.bf16.mxu0 %v4437
    %4497 = vmatpush1.bf16.msra.mxu0 %v4436
    %4498 = vmatprep.subr.bf16.mxu0 %v4433
    %4499 = vmatpush1.bf16.msra.mxu0 %v4432
    %4500 = vmatprep.subr.bf16.mxu0 %v4429
    %4501 = vmatpush1.bf16.msra.mxu0 %v4428
    %4502 = vmatprep.subr.bf16.mxu0 %v4425
    %4503 = vmatpush1.bf16.msra.mxu0 %v4424
    %4504 = vmatprep.subr.bf16.mxu0 0
    %4505 = vmatpush2.bf16.msra.mxu0 0
    %4506 = vmatprep.subr.bf16.mxu0 0
    %4507 = vmatpush2.bf16.msra.mxu0 0
    %4508 = vmatprep.subr.bf16.mxu0 0
    %4509 = vmatpush2.bf16.msra.mxu0 0
    %4510 = vmatprep.subr.bf16.mxu0 0
    %4511 = vmatpush2.bf16.msra.mxu0 0
    %4512 = vmatprep.subr.bf16.mxu0 0
    %4513 = vmatpush2.bf16.msra.mxu0 0
    %4514 = vmatprep.subr.bf16.mxu0 0
    %4515 = vmatpush2.bf16.msra.mxu0 0
    %4516 = vmatprep.subr.bf16.mxu0 0
    %4517 = vmatpush2.bf16.msra.mxu0 0
    %4518 = vmatprep.subr.bf16.mxu0 0
    %4519 = vmatpush2.bf16.msra.mxu0 0
    %4520 = vmatprep.mubr.bf16.mxu0 0
    %4521 = vmatmul.mubr.bf16.gmra.mxu0 %v4271
    %v4522 = vpop.f32.mrf.mxu0
    %v4523 = vadd.f32 %v4311, %v4522
    %v4524 = vpop.f32.mrf.mxu0
    %v4525 = vadd.f32 %v4315, %v4524
    %v4526 = vpop.f32.mrf.mxu0
    %v4527 = vadd.f32 %v4311, %v4526
    %v4528 = vpop.f32.mrf.mxu0
    %v4529 = vadd.f32 %v4315, %v4528
    %4530 = vdwg.mxu0
    %4531 = vmatprep.subr.bf16.mxu0 %v4455
    %4532 = vmatpush1.bf16.msra.mxu0 %v4454
    %4533 = vmatprep.subr.bf16.mxu0 %v4451
    %4534 = vmatpush1.bf16.msra.mxu0 %v4450
    %4535 = vmatprep.subr.bf16.mxu0 %v4447
    %4536 = vmatpush1.bf16.msra.mxu0 %v4446
    %4537 = vmatprep.subr.bf16.mxu0 %v4443
    %4538 = vmatpush1.bf16.msra.mxu0 %v4442
    %4539 = vmatprep.subr.bf16.mxu0 %v4439
    %4540 = vmatpush1.bf16.msra.mxu0 %v4438
    %4541 = vmatprep.subr.bf16.mxu0 %v4435
    %4542 = vmatpush1.bf16.msra.mxu0 %v4434
    %4543 = vmatprep.subr.bf16.mxu0 %v4431
    %4544 = vmatpush1.bf16.msra.mxu0 %v4430
    %4545 = vmatprep.subr.bf16.mxu0 %v4427
    %4546 = vmatpush1.bf16.msra.mxu0 %v4426
    %4547 = vmatprep.subr.bf16.mxu0 0
    %4548 = vmatpush2.bf16.msra.mxu0 0
    %4549 = vmatprep.subr.bf16.mxu0 0
    %4550 = vmatpush2.bf16.msra.mxu0 0
    %4551 = vmatprep.subr.bf16.mxu0 0
    %4552 = vmatpush2.bf16.msra.mxu0 0
    %4553 = vmatprep.subr.bf16.mxu0 0
    %4554 = vmatpush2.bf16.msra.mxu0 0
    %4555 = vmatprep.subr.bf16.mxu0 0
    %4556 = vmatpush2.bf16.msra.mxu0 0
    %4557 = vmatprep.subr.bf16.mxu0 0
    %4558 = vmatpush2.bf16.msra.mxu0 0
    %4559 = vmatprep.subr.bf16.mxu0 0
    %4560 = vmatpush2.bf16.msra.mxu0 0
    %4561 = vmatprep.subr.bf16.mxu0 0
    %4562 = vmatpush2.bf16.msra.mxu0 0
    %4563 = vmatprep.mubr.bf16.mxu0 0
    %4564 = vmatmul.mubr.bf16.gmra.mxu0 %v4271
    %v4565 = vpop.f32.mrf.mxu0
    %v4566 = vadd.f32 %v4319, %v4565
    %v4567 = vpop.f32.mrf.mxu0
    %v4568 = vadd.f32 %v4323, %v4567
    %v4569 = vpop.f32.mrf.mxu0
    %v4570 = vadd.f32 %v4319, %v4569
    %v4571 = vpop.f32.mrf.mxu0
    %v4572 = vadd.f32 %v4323, %v4571
    %4573 = vdwg.mxu0
    %v4574 = vmul.f32 %v4523, 0.5
    %v4575 = vmul.f32 %v4525, 0.5
    %v4576 = vmul.f32 %v4566, 0.5
    %v4577 = vmul.f32 %v4568, 0.5
    %v4578 = vmul.f32 %v4527, 0.5
    %v4579 = vmul.f32 %v4529, 0.5
    %v4580 = vmul.f32 %v4570, 0.5
    %v4581 = vmul.f32 %v4572, 0.5
    %v4582 = vmul.f32 %v4523, 0.044715
    %v4583 = vmul.f32 %v4525, 0.044715
    %v4584 = vmul.f32 %v4566, 0.044715
    %v4585 = vmul.f32 %v4568, 0.044715
    %v4586 = vmul.f32 %v4527, 0.044715
    %v4587 = vmul.f32 %v4529, 0.044715
    %v4588 = vmul.f32 %v4570, 0.044715
    %v4589 = vmul.f32 %v4572, 0.044715
    %v4590 = vmul.f32 %v4582, %v4523
    %v4591 = vmul.f32 %v4583, %v4525
    %v4592 = vmul.f32 %v4584, %v4566
    %v4593 = vmul.f32 %v4585, %v4568
    %v4594 = vmul.f32 %v4586, %v4527
    %v4595 = vmul.f32 %v4587, %v4529
    %v4596 = vmul.f32 %v4588, %v4570
    %v4597 = vmul.f32 %v4589, %v4572
    %v4598 = vmul.f32 %v4590, %v4523
    %v4599 = vmul.f32 %v4591, %v4525
    %v4600 = vmul.f32 %v4592, %v4566
    %v4601 = vmul.f32 %v4593, %v4568
    %v4602 = vmul.f32 %v4594, %v4527
    %v4603 = vmul.f32 %v4595, %v4529
    %v4604 = vmul.f32 %v4596, %v4570
    %v4605 = vmul.f32 %v4597, %v4572
    %v4606 = vadd.f32 %v4523, %v4598
    %v4607 = vadd.f32 %v4525, %v4599
    %v4608 = vadd.f32 %v4566, %v4600
    %v4609 = vadd.f32 %v4568, %v4601
    %v4610 = vadd.f32 %v4527, %v4602
    %v4611 = vadd.f32 %v4529, %v4603
    %v4612 = vadd.f32 %v4570, %v4604
    %v4613 = vadd.f32 %v4572, %v4605
    %v4614 = vmul.f32 %v4606, 0.7978845
    %v4615 = vmul.f32 %v4607, 0.7978845
    %v4616 = vmul.f32 %v4608, 0.7978845
    %v4617 = vmul.f32 %v4609, 0.7978845
    %v4618 = vmul.f32 %v4610, 0.7978845
    %v4619 = vmul.f32 %v4611, 0.7978845
    %v4620 = vmul.f32 %v4612, 0.7978845
    %v4621 = vmul.f32 %v4613, 0.7978845
    %v4622 = vtanh.pop %v4614
    %v4623 = vtanh.pop %v4615
    %v4624 = vtanh.pop %v4616
    %v4625 = vtanh.pop %v4617
    %v4626 = vtanh.pop %v4618
    %v4627 = vtanh.pop %v4619
    %v4628 = vtanh.pop %v4620
    %v4629 = vtanh.pop %v4621
    %v4630 = vadd.f32 %v4622, 1.0
    %v4631 = vadd.f32 %v4623, 1.0
    %v4632 = vadd.f32 %v4624, 1.0
    %v4633 = vadd.f32 %v4625, 1.0
    %v4634 = vadd.f32 %v4626, 1.0
    %v4635 = vadd.f32 %v4627, 1.0
    %v4636 = vadd.f32 %v4628, 1.0
    %v4637 = vadd.f32 %v4629, 1.0
    %v4638 = vmul.f32 %v4574, %v4630
    %v4639 = vmul.f32 %v4575, %v4631
    %v4640 = vmul.f32 %v4576, %v4632
    %v4641 = vmul.f32 %v4577, %v4633
    %v4642 = vmul.f32 %v4578, %v4634
    %v4643 = vmul.f32 %v4579, %v4635
    %v4644 = vmul.f32 %v4580, %v4636
    %v4645 = vmul.f32 %v4581, %v4637
    %v4646 = vpack.c.bf16 %v4642, %v4638
    %v4647 = vpack.c.bf16 %v4643, %v4639
    %v4648 = vpack.c.bf16 %v4644, %v4640
    %v4649 = vpack.c.bf16 %v4645, %v4641
    %s4650 = scalar_lea.vmem [#allocation17], 256
    %v4651 = vld [vmem:[%s4650] sm:$0xf]
    %v4652 = vld [vmem:[%s4650 + $0x4] sm:$0xf]
    %v4653 = vld [vmem:[%s4650 + $0x8] sm:$0xf]
    %v4654 = vld [vmem:[%s4650 + $0xc] sm:$0xf]
    %v4655 = vld [vmem:[%s4650 + $0x10] sm:$0xf]
    %v4656 = vld [vmem:[%s4650 + $0x14] sm:$0xf]
    %v4657 = vld [vmem:[%s4650 + $0x18] sm:$0xf]
    %v4658 = vld [vmem:[%s4650 + $0x1c] sm:$0xf]
    %v4659 = vld [vmem:[%s4650 + $0x20] sm:$0xf]
    %v4660 = vld [vmem:[%s4650 + $0x24] sm:$0xf]
    %v4661 = vld [vmem:[%s4650 + $0x28] sm:$0xf]
    %v4662 = vld [vmem:[%s4650 + $0x2c] sm:$0xf]
    %v4663 = vld [vmem:[%s4650 + $0x30] sm:$0xf]
    %v4664 = vld [vmem:[%s4650 + $0x34] sm:$0xf]
    %v4665 = vld [vmem:[%s4650 + $0x38] sm:$0xf]
    %v4666 = vld [vmem:[%s4650 + $0x3c] sm:$0xf]
    %v4667 = vld [vmem:[%s4650 + $0x40] sm:$0xf]
    %v4668 = vld [vmem:[%s4650 + $0x44] sm:$0xf]
    %v4669 = vld [vmem:[%s4650 + $0x48] sm:$0xf]
    %v4670 = vld [vmem:[%s4650 + $0x4c] sm:$0xf]
    %v4671 = vld [vmem:[%s4650 + $0x50] sm:$0xf]
    %v4672 = vld [vmem:[%s4650 + $0x54] sm:$0xf]
    %v4673 = vld [vmem:[%s4650 + $0x58] sm:$0xf]
    %v4674 = vld [vmem:[%s4650 + $0x5c] sm:$0xf]
    %v4675 = vld [vmem:[%s4650 + $0x60] sm:$0xf]
    %v4676 = vld [vmem:[%s4650 + $0x64] sm:$0xf]
    %v4677 = vld [vmem:[%s4650 + $0x68] sm:$0xf]
    %v4678 = vld [vmem:[%s4650 + $0x6c] sm:$0xf]
    %v4679 = vld [vmem:[%s4650 + $0x70] sm:$0xf]
    %v4680 = vld [vmem:[%s4650 + $0x74] sm:$0xf]
    %v4681 = vld [vmem:[%s4650 + $0x78] sm:$0xf]
    %v4682 = vld [vmem:[%s4650 + $0x7c] sm:$0xf]
    %v4683 = vld [vmem:[%s4650 + $0x80] sm:$0xf]
    %v4684 = vld [vmem:[%s4650 + $0x84] sm:$0xf]
    %v4685 = vld [vmem:[%s4650 + $0x88] sm:$0xf]
    %v4686 = vld [vmem:[%s4650 + $0x8c] sm:$0xf]
    %v4687 = vld [vmem:[%s4650 + $0x90] sm:$0xf]
    %v4688 = vld [vmem:[%s4650 + $0x94] sm:$0xf]
    %v4689 = vld [vmem:[%s4650 + $0x98] sm:$0xf]
    %v4690 = vld [vmem:[%s4650 + $0x9c] sm:$0xf]
    %v4691 = vld [vmem:[%s4650 + $0xa0] sm:$0xf]
    %v4692 = vld [vmem:[%s4650 + $0xa4] sm:$0xf]
    %v4693 = vld [vmem:[%s4650 + $0xa8] sm:$0xf]
    %v4694 = vld [vmem:[%s4650 + $0xac] sm:$0xf]
    %v4695 = vld [vmem:[%s4650 + $0xb0] sm:$0xf]
    %v4696 = vld [vmem:[%s4650 + $0xb4] sm:$0xf]
    %v4697 = vld [vmem:[%s4650 + $0xb8] sm:$0xf]
    %v4698 = vld [vmem:[%s4650 + $0xbc] sm:$0xf]
    %v4699 = vld [vmem:[%s4650 + $0xc0] sm:$0xf]
    %v4700 = vld [vmem:[%s4650 + $0xc4] sm:$0xf]
    %v4701 = vld [vmem:[%s4650 + $0xc8] sm:$0xf]
    %v4702 = vld [vmem:[%s4650 + $0xcc] sm:$0xf]
    %v4703 = vld [vmem:[%s4650 + $0xd0] sm:$0xf]
    %v4704 = vld [vmem:[%s4650 + $0xd4] sm:$0xf]
    %v4705 = vld [vmem:[%s4650 + $0xd8] sm:$0xf]
    %v4706 = vld [vmem:[%s4650 + $0xdc] sm:$0xf]
    %v4707 = vld [vmem:[%s4650 + $0xe0] sm:$0xf]
    %v4708 = vld [vmem:[%s4650 + $0xe4] sm:$0xf]
    %v4709 = vld [vmem:[%s4650 + $0xe8] sm:$0xf]
    %v4710 = vld [vmem:[%s4650 + $0xec] sm:$0xf]
    %v4711 = vld [vmem:[%s4650 + $0xf0] sm:$0xf]
    %v4712 = vld [vmem:[%s4650 + $0xf4] sm:$0xf]
    %v4713 = vld [vmem:[%s4650 + $0xf8] sm:$0xf]
    %v4714 = vld [vmem:[%s4650 + $0xfc] sm:$0xf]
    %s4715 = scalar_lea.vmem %s13, 1
    %v4716 = vld [vmem:[%s4715] sm:$0x1]
    %v4718 = vlaneseq
    %v4719 = vshrl.u32 %v4718, 7
    %v4720 = vsub.s32 0, %v4719
    %v4721 = vrot.slane %v4716, %v4720
    %v4787 = vunpack.c.l.b16 %v4651
    %v4788 = vunpack.c.l.b16 %v4652
    %v4789 = vunpack.c.l.b16 %v4653
    %v4790 = vunpack.c.l.b16 %v4654
    %v4791 = vunpack.c.l.b16 %v4655
    %v4792 = vunpack.c.l.b16 %v4656
    %v4793 = vunpack.c.l.b16 %v4657
    %v4794 = vunpack.c.l.b16 %v4658
    %v4795 = vunpack.c.l.b16 %v4659
    %v4796 = vunpack.c.l.b16 %v4660
    %v4797 = vunpack.c.l.b16 %v4661
    %v4798 = vunpack.c.l.b16 %v4662
    %v4799 = vunpack.c.l.b16 %v4663
    %v4800 = vunpack.c.l.b16 %v4664
    %v4801 = vunpack.c.l.b16 %v4665
    %v4802 = vunpack.c.l.b16 %v4666
    %v4803 = vunpack.c.l.b16 %v4667
    %v4804 = vunpack.c.l.b16 %v4668
    %v4805 = vunpack.c.l.b16 %v4669
    %v4806 = vunpack.c.l.b16 %v4670
    %v4807 = vunpack.c.l.b16 %v4671
    %v4808 = vunpack.c.l.b16 %v4672
    %v4809 = vunpack.c.l.b16 %v4673
    %v4810 = vunpack.c.l.b16 %v4674
    %v4811 = vunpack.c.l.b16 %v4675
    %v4812 = vunpack.c.l.b16 %v4676
    %v4813 = vunpack.c.l.b16 %v4677
    %v4814 = vunpack.c.l.b16 %v4678
    %v4815 = vunpack.c.l.b16 %v4679
    %v4816 = vunpack.c.l.b16 %v4680
    %v4817 = vunpack.c.l.b16 %v4681
    %v4818 = vunpack.c.l.b16 %v4682
    %v4819 = vunpack.c.l.b16 %v4683
    %v4820 = vunpack.c.l.b16 %v4684
    %v4821 = vunpack.c.l.b16 %v4685
    %v4822 = vunpack.c.l.b16 %v4686
    %v4823 = vunpack.c.l.b16 %v4687
    %v4824 = vunpack.c.l.b16 %v4688
    %v4825 = vunpack.c.l.b16 %v4689
    %v4826 = vunpack.c.l.b16 %v4690
    %v4827 = vunpack.c.l.b16 %v4691
    %v4828 = vunpack.c.l.b16 %v4692
    %v4829 = vunpack.c.l.b16 %v4693
    %v4830 = vunpack.c.l.b16 %v4694
    %v4831 = vunpack.c.l.b16 %v4695
    %v4832 = vunpack.c.l.b16 %v4696
    %v4833 = vunpack.c.l.b16 %v4697
    %v4834 = vunpack.c.l.b16 %v4698
    %v4835 = vunpack.c.l.b16 %v4699
    %v4836 = vunpack.c.l.b16 %v4700
    %v4837 = vunpack.c.l.b16 %v4701
    %v4838 = vunpack.c.l.b16 %v4702
    %v4839 = vunpack.c.l.b16 %v4703
    %v4840 = vunpack.c.l.b16 %v4704
    %v4841 = vunpack.c.l.b16 %v4705
    %v4842 = vunpack.c.l.b16 %v4706
    %v4843 = vunpack.c.l.b16 %v4707
    %v4844 = vunpack.c.l.b16 %v4708
    %v4845 = vunpack.c.l.b16 %v4709
    %v4846 = vunpack.c.l.b16 %v4710
    %v4847 = vunpack.c.l.b16 %v4711
    %v4848 = vunpack.c.l.b16 %v4712
    %v4849 = vunpack.c.l.b16 %v4713
    %v4850 = vunpack.c.l.b16 %v4714
    %v4851 = vpack.c.b16 %v4788, %v4787
    %v4852 = vpack.c.b16 %v4790, %v4789
    %v4853 = vpack.c.b16 %v4792, %v4791
    %v4854 = vpack.c.b16 %v4794, %v4793
    %v4855 = vpack.c.b16 %v4796, %v4795
    %v4856 = vpack.c.b16 %v4798, %v4797
    %v4857 = vpack.c.b16 %v4800, %v4799
    %v4858 = vpack.c.b16 %v4802, %v4801
    %v4859 = vpack.c.b16 %v4804, %v4803
    %v4860 = vpack.c.b16 %v4806, %v4805
    %v4861 = vpack.c.b16 %v4808, %v4807
    %v4862 = vpack.c.b16 %v4810, %v4809
    %v4863 = vpack.c.b16 %v4812, %v4811
    %v4864 = vpack.c.b16 %v4814, %v4813
    %v4865 = vpack.c.b16 %v4816, %v4815
    %v4866 = vpack.c.b16 %v4818, %v4817
    %v4867 = vpack.c.b16 %v4820, %v4819
    %v4868 = vpack.c.b16 %v4822, %v4821
    %v4869 = vpack.c.b16 %v4824, %v4823
    %v4870 = vpack.c.b16 %v4826, %v4825
    %v4871 = vpack.c.b16 %v4828, %v4827
    %v4872 = vpack.c.b16 %v4830, %v4829
    %v4873 = vpack.c.b16 %v4832, %v4831
    %v4874 = vpack.c.b16 %v4834, %v4833
    %v4875 = vpack.c.b16 %v4836, %v4835
    %v4876 = vpack.c.b16 %v4838, %v4837
    %v4877 = vpack.c.b16 %v4840, %v4839
    %v4878 = vpack.c.b16 %v4842, %v4841
    %v4879 = vpack.c.b16 %v4844, %v4843
    %v4880 = vpack.c.b16 %v4846, %v4845
    %v4881 = vpack.c.b16 %v4848, %v4847
    %v4882 = vpack.c.b16 %v4850, %v4849
    %4915 = vmatprep.subr.bf16.mxu0 0
    %4916 = vmatpush1.bf16.msra.mxu0 %v4858
    %4917 = vmatprep.subr.bf16.mxu0 0
    %4918 = vmatpush1.bf16.msra.mxu0 %v4857
    %4919 = vmatprep.subr.bf16.mxu0 0
    %4920 = vmatpush1.bf16.msra.mxu0 %v4856
    %4921 = vmatprep.subr.bf16.mxu0 0
    %4922 = vmatpush1.bf16.msra.mxu0 %v4855
    %4923 = vmatprep.subr.bf16.mxu0 0
    %4924 = vmatpush1.bf16.msra.mxu0 %v4854
    %4925 = vmatprep.subr.bf16.mxu0 0
    %4926 = vmatpush1.bf16.msra.mxu0 %v4853
    %4927 = vmatprep.subr.bf16.mxu0 0
    %4928 = vmatpush1.bf16.msra.mxu0 %v4852
    %4929 = vmatprep.subr.bf16.mxu0 0
    %4930 = vmatpush1.bf16.msra.mxu0 %v4851
    %4931 = vmatprep.subr.bf16.mxu0 0
    %4932 = vmatpush2.bf16.msra.mxu0 %v4866
    %4933 = vmatprep.subr.bf16.mxu0 0
    %4934 = vmatpush2.bf16.msra.mxu0 %v4865
    %4935 = vmatprep.subr.bf16.mxu0 0
    %4936 = vmatpush2.bf16.msra.mxu0 %v4864
    %4937 = vmatprep.subr.bf16.mxu0 0
    %4938 = vmatpush2.bf16.msra.mxu0 %v4863
    %4939 = vmatprep.subr.bf16.mxu0 0
    %4940 = vmatpush2.bf16.msra.mxu0 %v4862
    %4941 = vmatprep.subr.bf16.mxu0 0
    %4942 = vmatpush2.bf16.msra.mxu0 %v4861
    %4943 = vmatprep.subr.bf16.mxu0 0
    %4944 = vmatpush2.bf16.msra.mxu0 %v4860
    %4945 = vmatprep.subr.bf16.mxu0 0
    %4946 = vmatpush2.bf16.msra.mxu0 %v4859
    %4947 = vmatprep.mubr.bf16.mxu0 %v4647
    %4948 = vmatmul.mubr.bf16.gmra.mxu0 %v4646
    %v4949 = vpop.f32.mrf.mxu0
    %v4950 = vadd.f32 %v4721, %v4949
    %v4951 = vpop.f32.mrf.mxu0
    %v4952 = vpop.f32.mrf.mxu0
    %v4953 = vadd.f32 %v4721, %v4952
    %v4954 = vpop.f32.mrf.mxu0
    %4955 = vdwg.mxu0
    %4956 = vmatprep.subr.bf16.mxu0 0
    %4957 = vmatpush1.bf16.msra.mxu0 %v4874
    %4958 = vmatprep.subr.bf16.mxu0 0
    %4959 = vmatpush1.bf16.msra.mxu0 %v4873
    %4960 = vmatprep.subr.bf16.mxu0 0
    %4961 = vmatpush1.bf16.msra.mxu0 %v4872
    %4962 = vmatprep.subr.bf16.mxu0 0
    %4963 = vmatpush1.bf16.msra.mxu0 %v4871
    %4964 = vmatprep.subr.bf16.mxu0 0
    %4965 = vmatpush1.bf16.msra.mxu0 %v4870
    %4966 = vmatprep.subr.bf16.mxu0 0
    %4967 = vmatpush1.bf16.msra.mxu0 %v4869
    %4968 = vmatprep.subr.bf16.mxu0 0
    %4969 = vmatpush1.bf16.msra.mxu0 %v4868
    %4970 = vmatprep.subr.bf16.mxu0 0
    %4971 = vmatpush1.bf16.msra.mxu0 %v4867
    %4972 = vmatprep.subr.bf16.mxu0 0
    %4973 = vmatpush2.bf16.msra.mxu0 %v4882
    %4974 = vmatprep.subr.bf16.mxu0 0
    %4975 = vmatpush2.bf16.msra.mxu0 %v4881
    %4976 = vmatprep.subr.bf16.mxu0 0
    %4977 = vmatpush2.bf16.msra.mxu0 %v4880
    %4978 = vmatprep.subr.bf16.mxu0 0
    %4979 = vmatpush2.bf16.msra.mxu0 %v4879
    %4980 = vmatprep.subr.bf16.mxu0 0
    %4981 = vmatpush2.bf16.msra.mxu0 %v4878
    %4982 = vmatprep.subr.bf16.mxu0 0
    %4983 = vmatpush2.bf16.msra.mxu0 %v4877
    %4984 = vmatprep.subr.bf16.mxu0 0
    %4985 = vmatpush2.bf16.msra.mxu0 %v4876
    %4986 = vmatprep.subr.bf16.mxu0 0
    %4987 = vmatpush2.bf16.msra.mxu0 %v4875
    %4988 = vmatprep.mubr.bf16.mxu0 %v4649
    %4989 = vmatmul.mubr.bf16.gmra.mxu0 %v4648
    %v4990 = vpop.f32.mrf.mxu0
    %v4991 = vadd.f32 %v4950, %v4990
    %v4992 = vpop.f32.mrf.mxu0
    %v4993 = vpop.f32.mrf.mxu0
    %v4994 = vadd.f32 %v4953, %v4993
    %v4995 = vpop.f32.mrf.mxu0
    %4996 = vdwg.mxu0
    %v4997 = vadd.f32 %v4227, %v4991
    %v4998 = vadd.f32 %v4228, %v4994
    %v5000 = vrot.slane %v4997, 7
    %v5003 = vrot.slane %v4998, 6
    %vm5005 = vcmask 1040384
    %v5006 = vsel %vm5005, %v5000, %v5003
    %v5007 = vld [vmem:[%s14] sm:$0x1]
    %v5008 = vld [vmem:[%s15] sm:$0x1]
    %vm5009 = vcmask 1041408
    %v5010 = vsel %vm5009, %v5006, 0.0
    %5011 = vadd.xlane.f32.xlu0 %v5010
    %v5012 = vpop.xlane.xlu0 %5011
    %v5013 = vmul.f32 %v5012, %v220
    %v5014 = vsub.f32 %v5006, %v5013
    %v5015 = vmul.f32 %v5014, %v5014
    %v5016 = vsel %vm5009, %v5015, 0.0
    %5017 = vadd.xlane.f32.xlu0 %v5016
    %v5018 = vpop.xlane.xlu0 %5017
    %v5019 = vmul.f32 %v5018, %v220
    %v5020 = vadd.f32 %v5019, 1e-05
    %v5021 = vrsqrt.pop %v5020
    %v5022 = vmul.f32 %v5014, %v5021
    %v5024 = vlaneseq
    %v5025 = vshrl.u32 %v5024, 7
    %v5026 = vsub.s32 0, %v5025
    %v5027 = vrot.slane %v5007, %v5026
    %v5029 = vmul.f32 %v5022, %v5027
    %v5031 = vlaneseq
    %v5032 = vshrl.u32 %v5031, 7
    %v5033 = vsub.s32 0, %v5032
    %v5034 = vrot.slane %v5008, %v5033
    %v5036 = vadd.f32 %v5029, %v5034
    %v5037 = vpack.c.bf16 %v5036, %v5036
    %v5038 = vld [vmem:[#allocation19] sm:$0xf]
    %v5039 = vld [vmem:[#allocation19 + $0x4] sm:$0xf]
    %v5040 = vld [vmem:[#allocation19 + $0x8] sm:$0xf]
    %v5041 = vld [vmem:[#allocation19 + $0xc] sm:$0xf]
    %v5042 = vld [vmem:[#allocation19 + $0x10] sm:$0xf]
    %v5043 = vld [vmem:[#allocation19 + $0x14] sm:$0xf]
    %v5044 = vld [vmem:[#allocation19 + $0x18] sm:$0xf]
    %v5045 = vld [vmem:[#allocation19 + $0x1c] sm:$0xf]
    %v5046 = vld [vmem:[#allocation19 + $0x20] sm:$0xf]
    %v5047 = vld [vmem:[#allocation19 + $0x24] sm:$0xf]
    %v5048 = vld [vmem:[#allocation19 + $0x28] sm:$0xf]
    %v5049 = vld [vmem:[#allocation19 + $0x2c] sm:$0xf]
    %v5050 = vld [vmem:[#allocation19 + $0x30] sm:$0xf]
    %v5051 = vld [vmem:[#allocation19 + $0x34] sm:$0xf]
    %v5052 = vld [vmem:[#allocation19 + $0x38] sm:$0xf]
    %v5053 = vld [vmem:[#allocation19 + $0x3c] sm:$0xf]
    %v5054 = vld [vmem:[%s17] sm:$0x1]
    %v5056 = vlaneseq
    %v5057 = vshrl.u32 %v5056, 7
    %v5058 = vsub.s32 0, %v5057
    %v5059 = vrot.slane %v5054, %v5058
    %v5077 = vunpack.c.l.b16 %v5038
    %v5078 = vunpack.c.l.b16 %v5039
    %v5079 = vunpack.c.l.b16 %v5040
    %v5080 = vunpack.c.l.b16 %v5041
    %v5081 = vunpack.c.l.b16 %v5042
    %v5082 = vunpack.c.l.b16 %v5043
    %v5083 = vunpack.c.l.b16 %v5044
    %v5084 = vunpack.c.l.b16 %v5045
    %v5085 = vunpack.c.l.b16 %v5046
    %v5086 = vunpack.c.l.b16 %v5047
    %v5087 = vunpack.c.l.b16 %v5048
    %v5088 = vunpack.c.l.b16 %v5049
    %v5089 = vunpack.c.l.b16 %v5050
    %v5090 = vunpack.c.l.b16 %v5051
    %v5091 = vunpack.c.l.b16 %v5052
    %v5092 = vunpack.c.l.b16 %v5053
    %v5093 = vpack.c.b16 %v5078, %v5077
    %v5094 = vpack.c.b16 %v5080, %v5079
    %v5095 = vpack.c.b16 %v5082, %v5081
    %v5096 = vpack.c.b16 %v5084, %v5083
    %v5097 = vpack.c.b16 %v5086, %v5085
    %v5098 = vpack.c.b16 %v5088, %v5087
    %v5099 = vpack.c.b16 %v5090, %v5089
    %v5100 = vpack.c.b16 %v5092, %v5091
    %5109 = vmatprep.subr.bf16.mxu0 0
    %5110 = vmatpush1.bf16.msra.mxu0 %v5100
    %5111 = vmatprep.subr.bf16.mxu0 0
    %5112 = vmatpush1.bf16.msra.mxu0 %v5099
    %5113 = vmatprep.subr.bf16.mxu0 0
    %5114 = vmatpush1.bf16.msra.mxu0 %v5098
    %5115 = vmatprep.subr.bf16.mxu0 0
    %5116 = vmatpush1.bf16.msra.mxu0 %v5097
    %5117 = vmatprep.subr.bf16.mxu0 0
    %5118 = vmatpush1.bf16.msra.mxu0 %v5096
    %5119 = vmatprep.subr.bf16.mxu0 0
    %5120 = vmatpush1.bf16.msra.mxu0 %v5095
    %5121 = vmatprep.subr.bf16.mxu0 0
    %5122 = vmatpush1.bf16.msra.mxu0 %v5094
    %5123 = vmatprep.subr.bf16.mxu0 0
    %5124 = vmatpush1.bf16.msra.mxu0 %v5093
    %5125 = vmatprep.subr.bf16.mxu0 0
    %5126 = vmatpush2.bf16.msra.mxu0 0
    %5127 = vmatprep.subr.bf16.mxu0 0
    %5128 = vmatpush2.bf16.msra.mxu0 0
    %5129 = vmatprep.subr.bf16.mxu0 0
    %5130 = vmatpush2.bf16.msra.mxu0 0
    %5131 = vmatprep.subr.bf16.mxu0 0
    %5132 = vmatpush2.bf16.msra.mxu0 0
    %5133 = vmatprep.subr.bf16.mxu0 0
    %5134 = vmatpush2.bf16.msra.mxu0 0
    %5135 = vmatprep.subr.bf16.mxu0 0
    %5136 = vmatpush2.bf16.msra.mxu0 0
    %5137 = vmatprep.subr.bf16.mxu0 0
    %5138 = vmatpush2.bf16.msra.mxu0 0
    %5139 = vmatprep.subr.bf16.mxu0 0
    %5140 = vmatpush2.bf16.msra.mxu0 0
    %5141 = vmatprep.mubr.bf16.mxu0 0
    %5142 = vmatmul.mubr.bf16.gmra.mxu0 %v5037
    %v5143 = vpop.f32.mrf.mxu0
    %v5144 = vadd.f32 %v5059, %v5143
    %v5145 = vpop.f32.mrf.mxu0
    %v5146 = vpop.f32.mrf.mxu0
    %v5147 = vpop.f32.mrf.mxu0
    %5148 = vdwg.mxu0
    %5149 = vst [vmem:[#allocation20] sm:$0x3] %v5144
    // Predicated region
    $region118: #{tpu_custom_call.1} parent=1 // pred_check
      _
    $region119: #{tpu_custom_call.1} parent=1 // pred_check_branch
      %5151 = sbr.rel (0) target = $region121
    $region120: #{tpu_custom_call.1} parent=1 // pred_region
      %s5153 = ssub.s32 32, 32
      %5154 = vsyncadd [#allocation4], %s5153
      %s5156 = sshll.u32 [#allocation20], 4
      %s5157 = int_to_ptr.vmem [resolvable:$true] %s5156
      %5159 = dma.vmem_to_hbm [thread:$0]  %s5157, 32, %s18, [#allocation4]
    $region121: #{tpu_custom_call.1} parent=1 // pred_fallthru
      _
    // Predicated region
    $region122: #{tpu_custom_call.1} parent=1 // pred_check
      _
    $region123: #{tpu_custom_call.1} parent=1 // pred_check_branch
      %5161 = sbr.rel (0) target = $region125
    $region124: #{tpu_custom_call.1} parent=1 // pred_region
      %5162 = dma.done [#allocation4], 32
    $region125: #{tpu_custom_call.1} parent=1 // pred_fallthru
      _
    %5163 = vsyncpa [#allocation3], 1
    %5164 = vsyncpa [#allocation6], 1
    %5165 = vsyncpa [#allocation9], 1
    %5166 = vsyncpa [#allocation12], 1
    %5167 = vsyncpa [#allocation15], 1
    %5168 = vsyncpa [#allocation18], 1
    %5169 = vsyncpa [#allocation4], 1

</llo_original>
